<compile_context>
chip_gen: v6e
topology: v6e:2x2x1
jax: 0.10.0
libtpu: 0.0.40
codegen_flags: <defaults>
</compile_context>

<pallas_src>
import functools
import math

import jax
import jax.numpy as jnp
from jax.experimental import pallas as pl
from jax.experimental.pallas import tpu as pltpu


_LANE = 128      # f32/bf16 lane width
_SUBLANE = 8     # f32 sublane count; also the batch-tile size
_UNROLL_T = 32   # fully unroll the time loop up to this many steps


def _round_up(x, m):
    return ((x + m - 1) // m) * m


def _activation(name):
    if name is None:
        return lambda v: v
    if name == "tanh":
        return jnp.tanh
    if name == "sigmoid":
        return jax.nn.sigmoid
    raise ValueError(f"unsupported activation: {name}")


# ----------------------------------------------------------------------------
# Fused kernel: the whole Encoder (all LSTM layers) for one 8-row batch tile.
#
# Inputs : x_ref (T*Bt, P) bf16 (time-major within the batch tile), then per
#          layer W_ih^T (P, 4P) bf16, W_hh^T (P, 4P) bf16, bias (1, 4P) f32.
# Output : hn_ref (Bt, P) f32 = out_activ(h_n) of the last layer.
# Scratch: gx_ref (T*Bt, 4P) f32 hoisted x-projection; y_ref (T*Bt, P) bf16
#          layer-output sequence (reused in place across layers).
# Gate-block order along the 4P axis is [i, f, o, g], one 128-lane block per
# gate (padded lanes hold zero weights/bias, so padded hidden lanes of h/c
# stay exactly zero through the recurrence).
# ----------------------------------------------------------------------------
def _encoder_kernel(x_ref, *args, num_layers, seq_len, btile, pdim,
                    h_activ, out_activ):
    L, T, Bt, P = num_layers, seq_len, btile, pdim
    w_refs = args[:3 * L]
    hn_ref = args[3 * L]
    gx_ref = args[3 * L + 1]
    y_ref = args[3 * L + 2]

    h_act = _activation(h_activ)
    o_act = _activation(out_activ)

    h = None
    for l in range(L):
        wih_ref, whh_ref, b_ref = w_refs[3 * l:3 * l + 3]
        is_last = l == L - 1

        # ---- hoisted input projection: one MXU-friendly GEMM, bias folded ----
        src = x_ref[...] if l == 0 else y_ref[...]          # (T*Bt, P) bf16
        gx_ref[...] = (jnp.dot(src, wih_ref[...],
                               preferred_element_type=jnp.float32)
                       + b_ref[...])                        # (T*Bt, 4P) f32

        h = jnp.zeros((Bt, P), jnp.float32)
        c = jnp.zeros((Bt, P), jnp.float32)

        def step(t, h, c, *, static):
            base = t * Bt if static else pl.multiple_of(t * Bt, Bt)
            gx_t = gx_ref[pl.ds(base, Bt), :]               # (Bt, 4P) aligned
            # W_hh is re-read from VMEM each step (no 32-vreg value pinned
            # across the unrolled layer body); Mosaic can keep it MXU-staged.
            g = gx_t + jnp.dot(h.astype(jnp.bfloat16), whh_ref[...],
                               preferred_element_type=jnp.float32)
            # Gate blocks ordered [i, f, o, g]: one sigmoid pass over the
            # contiguous 3x128-lane block, one tanh over the last block.
            sig = jax.nn.sigmoid(g[:, 0:3 * P])
            i_g = sig[:, 0 * P:1 * P]
            f_g = sig[:, 1 * P:2 * P]
            o_g = sig[:, 2 * P:3 * P]
            g_g = jnp.tanh(g[:, 3 * P:4 * P])
            c = f_g * c + i_g * g_g
            h = o_g * jnp.tanh(c)
            if not is_last:
                # intermediate layers: y = h_activ(h), stored directly as the
                # bf16 matmul operand of the next layer (no later cast pass).
                y_ref[pl.ds(base, Bt), :] = h_act(h).astype(jnp.bfloat16)
            return h, c

        if T <= _UNROLL_T:
            # Small static T: full unroll -> static tile-aligned slices and
            # full scheduler visibility across steps.
            for t in range(T):
                h, c = step(t, h, c, static=True)
        else:
            # Long sequences: bounded code size, modest unroll for LLO.
            def body(t, carry):
                return step(t, carry[0], carry[1], static=False)
            h, c = jax.lax.fori_loop(0, T, body, (h, c), unroll=4)

    hn_ref[...] = o_act(h)


# ----------------------------------------------------------------------------
# Encoder wrapper (mirrors the PyTorch module)
# ----------------------------------------------------------------------------
class EncoderPallas:
    def __init__(self, input_dim, out_dim, h_dims, key,
                 h_activ="sigmoid", out_activ="tanh"):
        layer_dims = [input_dim] + list(h_dims) + [out_dim]
        self.layer_dims = layer_dims
        self.num_layers = len(layer_dims) - 1
        self.out_dim = out_dim
        self.h_activ = h_activ
        self.out_activ = out_activ
        self.pdim = _round_up(max(layer_dims), _LANE)
        P = self.pdim

        # Kernel gate-block order [i, f, o, g] (PyTorch order is [i, f, g, o]).
        gate_order = (0, 1, 3, 2)

        self.params_raw = []      # unpadded f32 (used by the pure-JAX reference)
        self.params_padded = []   # gate-blocked, 128-lane padded, bf16 weights
        for idx in range(self.num_layers):
            D, H = layer_dims[idx], layer_dims[idx + 1]
            key, k1, k2, k3, k4 = jax.random.split(key, 5)
            bound = 1.0 / math.sqrt(H)
            # Stored pre-transposed: W_ih^T (D, 4H), W_hh^T (H, 4H); b = b_ih+b_hh.
            wih_t = jax.random.uniform(k1, (D, 4 * H), jnp.float32, -bound, bound)
            whh_t = jax.random.uniform(k2, (H, 4 * H), jnp.float32, -bound, bound)
            b_ih = jax.random.uniform(k3, (4 * H,), jnp.float32, -bound, bound)
            b_hh = jax.random.uniform(k4, (4 * H,), jnp.float32, -bound, bound)
            b = b_ih + b_hh
            self.params_raw.append((wih_t, whh_t, b))

            # Gate-blocked padded layout: kernel block `blk` holds PyTorch gate
            # gate_order[blk] in lanes [blk*P, blk*P + H); padded rows/lanes are
            # zero, contributing exact zeros on the MXU.
            wih_p = jnp.zeros((P, 4 * P), jnp.float32)
            whh_p = jnp.zeros((P, 4 * P), jnp.float32)
            b_p = jnp.zeros((1, 4 * P), jnp.float32)
            for blk, gi in enumerate(gate_order):
                wih_p = wih_p.at[:D, blk * P:blk * P + H].set(
                    wih_t[:, gi * H:(gi + 1) * H])
                whh_p = whh_p.at[:H, blk * P:blk * P + H].set(
                    whh_t[:, gi * H:(gi + 1) * H])
                b_p = b_p.at[0, blk * P:blk * P + H].set(b[gi * H:(gi + 1) * H])
            self.params_padded.append((wih_p.astype(jnp.bfloat16),
                                       whh_p.astype(jnp.bfloat16),
                                       b_p))

        self._flat_params = []
        for wih_p, whh_p, b_p in self.params_padded:
            self._flat_params += [wih_p, whh_p, b_p]

        # One traced region: layout prep + pallas_call + final slice.
        self._forward = jax.jit(self._forward_impl)

    def _forward_impl(self, x, *flat_params):
        B, T, D = x.shape
        assert D == self.layer_dims[0]
        P, L = self.pdim, self.num_layers
        Bt = _SUBLANE
        Bp = _round_up(max(B, Bt), Bt)
        nb = Bp // Bt

        # Batch-tile-major, time-major-within-tile flat layout, padded to
        # (8,128) tiles, built directly in bf16 (the matmul operand dtype).
        xb = jnp.zeros((Bp, T, P), jnp.bfloat16).at[:B, :, :D].set(
            x.astype(jnp.bfloat16))
        x_flat = (xb.reshape(nb, Bt, T, P)
                    .transpose(0, 2, 1, 3)
                    .reshape(nb * T * Bt, P))

        kernel = functools.partial(
            _encoder_kernel, num_layers=L, seq_len=T, btile=Bt, pdim=P,
            h_activ=self.h_activ, out_activ=self.out_activ)

        # Grid over independent 8-row batch tiles ("parallel" -> both TCs on
        # v7x when nb > 1); layers and time stay inside the kernel body.
        in_specs = [pl.BlockSpec((T * Bt, P), lambda b: (b, 0))]
        for _ in range(L):
            in_specs += [pl.BlockSpec((P, 4 * P), lambda b: (0, 0)),
                         pl.BlockSpec((P, 4 * P), lambda b: (0, 0)),
                         pl.BlockSpec((1, 4 * P), lambda b: (0, 0))]
        out_specs = pl.BlockSpec((Bt, P), lambda b: (b, 0))

        # Advisory cost hint for the XLA scheduler.
        flops = int(L * nb * (4 * T * Bt * P * 4 * P + 12 * T * Bt * P))
        transcendentals = int(L * nb * T * Bt * 5 * P)
        param_bytes = sum(w.size * 2 + u.size * 2 + bb.size * 4
                          for w, u, bb in self.params_padded)
        bytes_accessed = int(x_flat.size * 2 + param_bytes + Bp * P * 4)

        hn = pl.pallas_call(
            kernel,
            out_shape=jax.ShapeDtypeStruct((Bp, P), jnp.float32),
            grid_spec=pltpu.PrefetchScalarGridSpec(
                num_scalar_prefetch=0,
                grid=(nb,),
                in_specs=in_specs,
                out_specs=out_specs,
                scratch_shapes=[
                    pltpu.VMEM((T * Bt, 4 * P), jnp.float32),   # hoisted gates
                    pltpu.VMEM((T * Bt, P), jnp.bfloat16),      # layer outputs
                ]),
            compiler_params=pltpu.CompilerParams(
                dimension_semantics=("parallel",),
                vmem_limit_bytes=32 * 1024 * 1024),
            cost_estimate=pl.CostEstimate(
                flops=flops, transcendentals=transcendentals,
                bytes_accessed=bytes_accessed),
        )(x_flat, *flat_params)

        out = hn[:B, :self.out_dim]
        # PyTorch: out_activ(h_n).squeeze(); h_n is (1, B, H) -> squeeze drops
        # all singleton dims (so (H,) when B == 1, (B, H) otherwise).
        return jnp.squeeze(out[None])

    def __call__(self, x):
        return self._forward(x, *self._flat_params)


# ----------------------------------------------------------------------------
# Pure-JAX reference (same bf16-operand / f32-accumulate math, unpadded)
# ----------------------------------------------------------------------------
def _lstm_layer_ref(x_btd, wih_t, whh_t, b, h_activ, is_last):
    B, T, D = x_btd.shape
    H = whh_t.shape[0]
    wih_b = wih_t.astype(jnp.bfloat16)
    whh_b = whh_t.astype(jnp.bfloat16)
    h_act = _activation(h_activ)

    def step(carry, xt):
        h, c = carry
        gates = (jnp.dot(xt.astype(jnp.bfloat16), wih_b,
                         preferred_element_type=jnp.float32)
                 + jnp.dot(h.astype(jnp.bfloat16), whh_b,
                           preferred_element_type=jnp.float32)
                 + b)
        i = jax.nn.sigmoid(gates[:, 0 * H:1 * H])
        f = jax.nn.sigmoid(gates[:, 1 * H:2 * H])
        g = jnp.tanh(gates[:, 2 * H:3 * H])
        o = jax.nn.sigmoid(gates[:, 3 * H:4 * H])
        c_new = f * c + i * g
        h_new = o * jnp.tanh(c_new)
        y_t = h_new if is_last else h_act(h_new)
        return (h_new, c_new), y_t

    init = (jnp.zeros((B, H), jnp.float32), jnp.zeros((B, H), jnp.float32))
    (h_f, _), y_tbh = jax.lax.scan(step, init, jnp.transpose(x_btd, (1, 0, 2)))
    return jnp.transpose(y_tbh, (1, 0, 2)), h_f


def encoder_ref(enc, x):
    y = x.astype(jnp.float32)
    h_n = None
    for idx, (wih_t, whh_t, b) in enumerate(enc.params_raw):
        is_last = idx == enc.num_layers - 1
        y, h_n = _lstm_layer_ref(y, wih_t, whh_t, b, enc.h_activ, is_last)
    return _activation(enc.out_activ)(h_n)


# ----------------------------------------------------------------------------
if __name__ == "__main__":
    key = jax.random.PRNGKey(0)
    k_x, k_p = jax.random.split(key)

    batch, seq, input_dim = 2, 8, 16
    h_dims, out_dim = [32], 8

    x = jax.random.normal(k_x, (batch, seq, input_dim), jnp.float32)
    enc = EncoderPallas(input_dim, out_dim, h_dims, k_p)

    out = jax.block_until_ready(enc(x))
    assert out.shape == (batch, out_dim), out.shape

    ref = jax.block_until_ready(encoder_ref(enc, x))
    assert jnp.allclose(out, ref, atol=1e-3, rtol=1e-3), (out, ref)

    print("KERNEL_OK")
</pallas_src>

<mosaic_0001>
module attributes {stable_mosaic.version = 11 : i64} {
  func.func @_encoder_kernel(%arg0: i32, %arg1: memref<64x128xbf16, #tpu.memory_space<vmem>>, %arg2: memref<128x512xbf16, #tpu.memory_space<vmem>>, %arg3: memref<128x512xbf16, #tpu.memory_space<vmem>>, %arg4: memref<1x512xf32, #tpu.memory_space<vmem>>, %arg5: memref<128x512xbf16, #tpu.memory_space<vmem>>, %arg6: memref<128x512xbf16, #tpu.memory_space<vmem>>, %arg7: memref<1x512xf32, #tpu.memory_space<vmem>>, %arg8: memref<8x128xf32, #tpu.memory_space<vmem>>, %arg9: memref<64x512xf32, #tpu.memory_space<vmem>>, %arg10: memref<64x128xbf16, #tpu.memory_space<vmem>>) attributes {dimension_semantics = [#tpu.dimension_semantics<parallel>], iteration_bounds = array<i64: 1>, scalar_prefetch = 0 : i64, scratch_operands = 2 : i64, tpu.core_type = #tpu.core_type<tc>, window_params = [{transform_indices = @transform_0, window_bounds = array<i64: 64, 128>}, {pipeline_mode = #tpu.pipeline_mode<synchronous>, transform_indices = @transform_1, window_bounds = array<i64: 128, 512>}, {pipeline_mode = #tpu.pipeline_mode<synchronous>, transform_indices = @transform_2, window_bounds = array<i64: 128, 512>}, {pipeline_mode = #tpu.pipeline_mode<synchronous>, transform_indices = @transform_3, window_bounds = array<i64: 1, 512>}, {pipeline_mode = #tpu.pipeline_mode<synchronous>, transform_indices = @transform_4, window_bounds = array<i64: 128, 512>}, {pipeline_mode = #tpu.pipeline_mode<synchronous>, transform_indices = @transform_5, window_bounds = array<i64: 128, 512>}, {pipeline_mode = #tpu.pipeline_mode<synchronous>, transform_indices = @transform_6, window_bounds = array<i64: 1, 512>}, {transform_indices = @transform_7, window_bounds = array<i64: 8, 128>}]} {
    %c0 = arith.constant 0 : index
    %c0_0 = arith.constant 0 : index
    %0 = vector.load %arg1[%c0, %c0_0] : memref<64x128xbf16, #tpu.memory_space<vmem>>, vector<64x128xbf16>
    %c0_1 = arith.constant 0 : index
    %c0_2 = arith.constant 0 : index
    %1 = vector.load %arg2[%c0_1, %c0_2] : memref<128x512xbf16, #tpu.memory_space<vmem>>, vector<128x512xbf16>
    %cst = arith.constant dense<0.000000e+00> : vector<64x512xf32>
    %2 = tpu.matmul %0, %1, %cst {dimension_numbers = #tpu.dot_dimension_numbers<[1], [0], [0], [1], [0, 0, 1, 1], [], []>} : vector<64x128xbf16>, vector<128x512xbf16>, vector<64x512xf32> -> vector<64x512xf32>
    %c0_3 = arith.constant 0 : index
    %c0_4 = arith.constant 0 : index
    %3 = vector.load %arg4[%c0_3, %c0_4] : memref<1x512xf32, #tpu.memory_space<vmem>>, vector<1x512xf32>
    %4 = vector.broadcast %3 : vector<1x512xf32> to vector<64x512xf32>
    %5 = arith.addf %2, %4 : vector<64x512xf32>
    %c0_5 = arith.constant 0 : index
    %c0_6 = arith.constant 0 : index
    %6 = vector.load %arg9[%c0_5, %c0_6] : memref<64x512xf32, #tpu.memory_space<vmem>>, vector<64x512xf32>
    tpu.vector_store %arg9[%c0_5, %c0_6], %5 {strides = array<i32>} : memref<64x512xf32, #tpu.memory_space<vmem>>, vector<64x512xf32>,
    %cst_7 = arith.constant 0.000000e+00 : f32
    %7 = vector.broadcast %cst_7 : f32 to vector<8x128xf32>
    %cst_8 = arith.constant 0.000000e+00 : f32
    %8 = vector.broadcast %cst_8 : f32 to vector<8x128xf32>
    %c0_9 = arith.constant 0 : index
    %c0_10 = arith.constant 0 : index
    %9 = vector.load %arg9[%c0_9, %c0_10] : memref<64x512xf32, #tpu.memory_space<vmem>>, vector<8x512xf32>
    %10 = arith.truncf %7 : vector<8x128xf32> to vector<8x128xbf16>
    %c0_11 = arith.constant 0 : index
    %c0_12 = arith.constant 0 : index
    %11 = vector.load %arg3[%c0_11, %c0_12] : memref<128x512xbf16, #tpu.memory_space<vmem>>, vector<128x512xbf16>
    %cst_13 = arith.constant dense<0.000000e+00> : vector<8x512xf32>
    %12 = tpu.matmul %10, %11, %cst_13 {dimension_numbers = #tpu.dot_dimension_numbers<[1], [0], [0], [1], [0, 0, 1, 1], [], []>} : vector<8x128xbf16>, vector<128x512xbf16>, vector<8x512xf32> -> vector<8x512xf32>
    %13 = arith.addf %9, %12 : vector<8x512xf32>
    %14 = vector.extract_strided_slice %13 {offsets = [0, 0], sizes = [8, 384], strides = [1, 1]} : vector<8x512xf32> to vector<8x384xf32>
    %15 = arith.negf %14 : vector<8x384xf32>
    %16 = math.exp %15 : vector<8x384xf32>
    %cst_14 = arith.constant 1.000000e+00 : f32
    %17 = vector.broadcast %cst_14 : f32 to vector<8x384xf32>
    %18 = arith.addf %17, %16 : vector<8x384xf32>
    %19 = arith.divf %17, %18 : vector<8x384xf32>
    %20 = vector.extract_strided_slice %19 {offsets = [0, 0], sizes = [8, 128], strides = [1, 1]} : vector<8x384xf32> to vector<8x128xf32>
    %21 = vector.extract_strided_slice %19 {offsets = [0, 128], sizes = [8, 128], strides = [1, 1]} : vector<8x384xf32> to vector<8x128xf32>
    %22 = vector.extract_strided_slice %19 {offsets = [0, 256], sizes = [8, 128], strides = [1, 1]} : vector<8x384xf32> to vector<8x128xf32>
    %23 = vector.extract_strided_slice %13 {offsets = [0, 384], sizes = [8, 128], strides = [1, 1]} : vector<8x512xf32> to vector<8x128xf32>
    %24 = math.tanh %23 : vector<8x128xf32>
    %25 = arith.mulf %21, %8 : vector<8x128xf32>
    %26 = arith.mulf %20, %24 : vector<8x128xf32>
    %27 = arith.addf %25, %26 : vector<8x128xf32>
    %28 = math.tanh %27 : vector<8x128xf32>
    %29 = arith.mulf %22, %28 : vector<8x128xf32>
    %30 = arith.negf %29 : vector<8x128xf32>
    %31 = math.exp %30 : vector<8x128xf32>
    %cst_15 = arith.constant 1.000000e+00 : f32
    %32 = vector.broadcast %cst_15 : f32 to vector<8x128xf32>
    %33 = arith.addf %32, %31 : vector<8x128xf32>
    %34 = arith.divf %32, %33 : vector<8x128xf32>
    %35 = arith.truncf %34 : vector<8x128xf32> to vector<8x128xbf16>
    %c0_16 = arith.constant 0 : index
    %c0_17 = arith.constant 0 : index
    %36 = vector.load %arg10[%c0_16, %c0_17] : memref<64x128xbf16, #tpu.memory_space<vmem>>, vector<8x128xbf16>
    tpu.vector_store %arg10[%c0_16, %c0_17], %35 {strides = array<i32>} : memref<64x128xbf16, #tpu.memory_space<vmem>>, vector<8x128xbf16>,
    %c8 = arith.constant 8 : index
    %c0_18 = arith.constant 0 : index
    %37 = vector.load %arg9[%c8, %c0_18] : memref<64x512xf32, #tpu.memory_space<vmem>>, vector<8x512xf32>
    %38 = arith.truncf %29 : vector<8x128xf32> to vector<8x128xbf16>
    %c0_19 = arith.constant 0 : index
    %c0_20 = arith.constant 0 : index
    %39 = vector.load %arg3[%c0_19, %c0_20] : memref<128x512xbf16, #tpu.memory_space<vmem>>, vector<128x512xbf16>
    %cst_21 = arith.constant dense<0.000000e+00> : vector<8x512xf32>
    %40 = tpu.matmul %38, %39, %cst_21 {dimension_numbers = #tpu.dot_dimension_numbers<[1], [0], [0], [1], [0, 0, 1, 1], [], []>} : vector<8x128xbf16>, vector<128x512xbf16>, vector<8x512xf32> -> vector<8x512xf32>
    %41 = arith.addf %37, %40 : vector<8x512xf32>
    %42 = vector.extract_strided_slice %41 {offsets = [0, 0], sizes = [8, 384], strides = [1, 1]} : vector<8x512xf32> to vector<8x384xf32>
    %43 = arith.negf %42 : vector<8x384xf32>
    %44 = math.exp %43 : vector<8x384xf32>
    %cst_22 = arith.constant 1.000000e+00 : f32
    %45 = vector.broadcast %cst_22 : f32 to vector<8x384xf32>
    %46 = arith.addf %45, %44 : vector<8x384xf32>
    %47 = arith.divf %45, %46 : vector<8x384xf32>
    %48 = vector.extract_strided_slice %47 {offsets = [0, 0], sizes = [8, 128], strides = [1, 1]} : vector<8x384xf32> to vector<8x128xf32>
    %49 = vector.extract_strided_slice %47 {offsets = [0, 128], sizes = [8, 128], strides = [1, 1]} : vector<8x384xf32> to vector<8x128xf32>
    %50 = vector.extract_strided_slice %47 {offsets = [0, 256], sizes = [8, 128], strides = [1, 1]} : vector<8x384xf32> to vector<8x128xf32>
    %51 = vector.extract_strided_slice %41 {offsets = [0, 384], sizes = [8, 128], strides = [1, 1]} : vector<8x512xf32> to vector<8x128xf32>
    %52 = math.tanh %51 : vector<8x128xf32>
    %53 = arith.mulf %49, %27 : vector<8x128xf32>
    %54 = arith.mulf %48, %52 : vector<8x128xf32>
    %55 = arith.addf %53, %54 : vector<8x128xf32>
    %56 = math.tanh %55 : vector<8x128xf32>
    %57 = arith.mulf %50, %56 : vector<8x128xf32>
    %58 = arith.negf %57 : vector<8x128xf32>
    %59 = math.exp %58 : vector<8x128xf32>
    %cst_23 = arith.constant 1.000000e+00 : f32
    %60 = vector.broadcast %cst_23 : f32 to vector<8x128xf32>
    %61 = arith.addf %60, %59 : vector<8x128xf32>
    %62 = arith.divf %60, %61 : vector<8x128xf32>
    %63 = arith.truncf %62 : vector<8x128xf32> to vector<8x128xbf16>
    %c8_24 = arith.constant 8 : index
    %c0_25 = arith.constant 0 : index
    %64 = vector.load %arg10[%c8_24, %c0_25] : memref<64x128xbf16, #tpu.memory_space<vmem>>, vector<8x128xbf16>
    tpu.vector_store %arg10[%c8_24, %c0_25], %63 {strides = array<i32>} : memref<64x128xbf16, #tpu.memory_space<vmem>>, vector<8x128xbf16>,
    %c16 = arith.constant 16 : index
    %c0_26 = arith.constant 0 : index
    %65 = vector.load %arg9[%c16, %c0_26] : memref<64x512xf32, #tpu.memory_space<vmem>>, vector<8x512xf32>
    %66 = arith.truncf %57 : vector<8x128xf32> to vector<8x128xbf16>
    %c0_27 = arith.constant 0 : index
    %c0_28 = arith.constant 0 : index
    %67 = vector.load %arg3[%c0_27, %c0_28] : memref<128x512xbf16, #tpu.memory_space<vmem>>, vector<128x512xbf16>
    %cst_29 = arith.constant dense<0.000000e+00> : vector<8x512xf32>
    %68 = tpu.matmul %66, %67, %cst_29 {dimension_numbers = #tpu.dot_dimension_numbers<[1], [0], [0], [1], [0, 0, 1, 1], [], []>} : vector<8x128xbf16>, vector<128x512xbf16>, vector<8x512xf32> -> vector<8x512xf32>
    %69 = arith.addf %65, %68 : vector<8x512xf32>
    %70 = vector.extract_strided_slice %69 {offsets = [0, 0], sizes = [8, 384], strides = [1, 1]} : vector<8x512xf32> to vector<8x384xf32>
    %71 = arith.negf %70 : vector<8x384xf32>
    %72 = math.exp %71 : vector<8x384xf32>
    %cst_30 = arith.constant 1.000000e+00 : f32
    %73 = vector.broadcast %cst_30 : f32 to vector<8x384xf32>
    %74 = arith.addf %73, %72 : vector<8x384xf32>
    %75 = arith.divf %73, %74 : vector<8x384xf32>
    %76 = vector.extract_strided_slice %75 {offsets = [0, 0], sizes = [8, 128], strides = [1, 1]} : vector<8x384xf32> to vector<8x128xf32>
    %77 = vector.extract_strided_slice %75 {offsets = [0, 128], sizes = [8, 128], strides = [1, 1]} : vector<8x384xf32> to vector<8x128xf32>
    %78 = vector.extract_strided_slice %75 {offsets = [0, 256], sizes = [8, 128], strides = [1, 1]} : vector<8x384xf32> to vector<8x128xf32>
    %79 = vector.extract_strided_slice %69 {offsets = [0, 384], sizes = [8, 128], strides = [1, 1]} : vector<8x512xf32> to vector<8x128xf32>
    %80 = math.tanh %79 : vector<8x128xf32>
    %81 = arith.mulf %77, %55 : vector<8x128xf32>
    %82 = arith.mulf %76, %80 : vector<8x128xf32>
    %83 = arith.addf %81, %82 : vector<8x128xf32>
    %84 = math.tanh %83 : vector<8x128xf32>
    %85 = arith.mulf %78, %84 : vector<8x128xf32>
    %86 = arith.negf %85 : vector<8x128xf32>
    %87 = math.exp %86 : vector<8x128xf32>
    %cst_31 = arith.constant 1.000000e+00 : f32
    %88 = vector.broadcast %cst_31 : f32 to vector<8x128xf32>
    %89 = arith.addf %88, %87 : vector<8x128xf32>
    %90 = arith.divf %88, %89 : vector<8x128xf32>
    %91 = arith.truncf %90 : vector<8x128xf32> to vector<8x128xbf16>
    %c16_32 = arith.constant 16 : index
    %c0_33 = arith.constant 0 : index
    %92 = vector.load %arg10[%c16_32, %c0_33] : memref<64x128xbf16, #tpu.memory_space<vmem>>, vector<8x128xbf16>
    tpu.vector_store %arg10[%c16_32, %c0_33], %91 {strides = array<i32>} : memref<64x128xbf16, #tpu.memory_space<vmem>>, vector<8x128xbf16>,
    %c24 = arith.constant 24 : index
    %c0_34 = arith.constant 0 : index
    %93 = vector.load %arg9[%c24, %c0_34] : memref<64x512xf32, #tpu.memory_space<vmem>>, vector<8x512xf32>
    %94 = arith.truncf %85 : vector<8x128xf32> to vector<8x128xbf16>
    %c0_35 = arith.constant 0 : index
    %c0_36 = arith.constant 0 : index
    %95 = vector.load %arg3[%c0_35, %c0_36] : memref<128x512xbf16, #tpu.memory_space<vmem>>, vector<128x512xbf16>
    %cst_37 = arith.constant dense<0.000000e+00> : vector<8x512xf32>
    %96 = tpu.matmul %94, %95, %cst_37 {dimension_numbers = #tpu.dot_dimension_numbers<[1], [0], [0], [1], [0, 0, 1, 1], [], []>} : vector<8x128xbf16>, vector<128x512xbf16>, vector<8x512xf32> -> vector<8x512xf32>
    %97 = arith.addf %93, %96 : vector<8x512xf32>
    %98 = vector.extract_strided_slice %97 {offsets = [0, 0], sizes = [8, 384], strides = [1, 1]} : vector<8x512xf32> to vector<8x384xf32>
    %99 = arith.negf %98 : vector<8x384xf32>
    %100 = math.exp %99 : vector<8x384xf32>
    %cst_38 = arith.constant 1.000000e+00 : f32
    %101 = vector.broadcast %cst_38 : f32 to vector<8x384xf32>
    %102 = arith.addf %101, %100 : vector<8x384xf32>
    %103 = arith.divf %101, %102 : vector<8x384xf32>
    %104 = vector.extract_strided_slice %103 {offsets = [0, 0], sizes = [8, 128], strides = [1, 1]} : vector<8x384xf32> to vector<8x128xf32>
    %105 = vector.extract_strided_slice %103 {offsets = [0, 128], sizes = [8, 128], strides = [1, 1]} : vector<8x384xf32> to vector<8x128xf32>
    %106 = vector.extract_strided_slice %103 {offsets = [0, 256], sizes = [8, 128], strides = [1, 1]} : vector<8x384xf32> to vector<8x128xf32>
    %107 = vector.extract_strided_slice %97 {offsets = [0, 384], sizes = [8, 128], strides = [1, 1]} : vector<8x512xf32> to vector<8x128xf32>
    %108 = math.tanh %107 : vector<8x128xf32>
    %109 = arith.mulf %105, %83 : vector<8x128xf32>
    %110 = arith.mulf %104, %108 : vector<8x128xf32>
    %111 = arith.addf %109, %110 : vector<8x128xf32>
    %112 = math.tanh %111 : vector<8x128xf32>
    %113 = arith.mulf %106, %112 : vector<8x128xf32>
    %114 = arith.negf %113 : vector<8x128xf32>
    %115 = math.exp %114 : vector<8x128xf32>
    %cst_39 = arith.constant 1.000000e+00 : f32
    %116 = vector.broadcast %cst_39 : f32 to vector<8x128xf32>
    %117 = arith.addf %116, %115 : vector<8x128xf32>
    %118 = arith.divf %116, %117 : vector<8x128xf32>
    %119 = arith.truncf %118 : vector<8x128xf32> to vector<8x128xbf16>
    %c24_40 = arith.constant 24 : index
    %c0_41 = arith.constant 0 : index
    %120 = vector.load %arg10[%c24_40, %c0_41] : memref<64x128xbf16, #tpu.memory_space<vmem>>, vector<8x128xbf16>
    tpu.vector_store %arg10[%c24_40, %c0_41], %119 {strides = array<i32>} : memref<64x128xbf16, #tpu.memory_space<vmem>>, vector<8x128xbf16>,
    %c32 = arith.constant 32 : index
    %c0_42 = arith.constant 0 : index
    %121 = vector.load %arg9[%c32, %c0_42] : memref<64x512xf32, #tpu.memory_space<vmem>>, vector<8x512xf32>
    %122 = arith.truncf %113 : vector<8x128xf32> to vector<8x128xbf16>
    %c0_43 = arith.constant 0 : index
    %c0_44 = arith.constant 0 : index
    %123 = vector.load %arg3[%c0_43, %c0_44] : memref<128x512xbf16, #tpu.memory_space<vmem>>, vector<128x512xbf16>
    %cst_45 = arith.constant dense<0.000000e+00> : vector<8x512xf32>
    %124 = tpu.matmul %122, %123, %cst_45 {dimension_numbers = #tpu.dot_dimension_numbers<[1], [0], [0], [1], [0, 0, 1, 1], [], []>} : vector<8x128xbf16>, vector<128x512xbf16>, vector<8x512xf32> -> vector<8x512xf32>
    %125 = arith.addf %121, %124 : vector<8x512xf32>
    %126 = vector.extract_strided_slice %125 {offsets = [0, 0], sizes = [8, 384], strides = [1, 1]} : vector<8x512xf32> to vector<8x384xf32>
    %127 = arith.negf %126 : vector<8x384xf32>
    %128 = math.exp %127 : vector<8x384xf32>
    %cst_46 = arith.constant 1.000000e+00 : f32
    %129 = vector.broadcast %cst_46 : f32 to vector<8x384xf32>
    %130 = arith.addf %129, %128 : vector<8x384xf32>
    %131 = arith.divf %129, %130 : vector<8x384xf32>
    %132 = vector.extract_strided_slice %131 {offsets = [0, 0], sizes = [8, 128], strides = [1, 1]} : vector<8x384xf32> to vector<8x128xf32>
    %133 = vector.extract_strided_slice %131 {offsets = [0, 128], sizes = [8, 128], strides = [1, 1]} : vector<8x384xf32> to vector<8x128xf32>
    %134 = vector.extract_strided_slice %131 {offsets = [0, 256], sizes = [8, 128], strides = [1, 1]} : vector<8x384xf32> to vector<8x128xf32>
    %135 = vector.extract_strided_slice %125 {offsets = [0, 384], sizes = [8, 128], strides = [1, 1]} : vector<8x512xf32> to vector<8x128xf32>
    %136 = math.tanh %135 : vector<8x128xf32>
    %137 = arith.mulf %133, %111 : vector<8x128xf32>
    %138 = arith.mulf %132, %136 : vector<8x128xf32>
    %139 = arith.addf %137, %138 : vector<8x128xf32>
    %140 = math.tanh %139 : vector<8x128xf32>
    %141 = arith.mulf %134, %140 : vector<8x128xf32>
    %142 = arith.negf %141 : vector<8x128xf32>
    %143 = math.exp %142 : vector<8x128xf32>
    %cst_47 = arith.constant 1.000000e+00 : f32
    %144 = vector.broadcast %cst_47 : f32 to vector<8x128xf32>
    %145 = arith.addf %144, %143 : vector<8x128xf32>
    %146 = arith.divf %144, %145 : vector<8x128xf32>
    %147 = arith.truncf %146 : vector<8x128xf32> to vector<8x128xbf16>
    %c32_48 = arith.constant 32 : index
    %c0_49 = arith.constant 0 : index
    %148 = vector.load %arg10[%c32_48, %c0_49] : memref<64x128xbf16, #tpu.memory_space<vmem>>, vector<8x128xbf16>
    tpu.vector_store %arg10[%c32_48, %c0_49], %147 {strides = array<i32>} : memref<64x128xbf16, #tpu.memory_space<vmem>>, vector<8x128xbf16>,
    %c40 = arith.constant 40 : index
    %c0_50 = arith.constant 0 : index
    %149 = vector.load %arg9[%c40, %c0_50] : memref<64x512xf32, #tpu.memory_space<vmem>>, vector<8x512xf32>
    %150 = arith.truncf %141 : vector<8x128xf32> to vector<8x128xbf16>
    %c0_51 = arith.constant 0 : index
    %c0_52 = arith.constant 0 : index
    %151 = vector.load %arg3[%c0_51, %c0_52] : memref<128x512xbf16, #tpu.memory_space<vmem>>, vector<128x512xbf16>
    %cst_53 = arith.constant dense<0.000000e+00> : vector<8x512xf32>
    %152 = tpu.matmul %150, %151, %cst_53 {dimension_numbers = #tpu.dot_dimension_numbers<[1], [0], [0], [1], [0, 0, 1, 1], [], []>} : vector<8x128xbf16>, vector<128x512xbf16>, vector<8x512xf32> -> vector<8x512xf32>
    %153 = arith.addf %149, %152 : vector<8x512xf32>
    %154 = vector.extract_strided_slice %153 {offsets = [0, 0], sizes = [8, 384], strides = [1, 1]} : vector<8x512xf32> to vector<8x384xf32>
    %155 = arith.negf %154 : vector<8x384xf32>
    %156 = math.exp %155 : vector<8x384xf32>
    %cst_54 = arith.constant 1.000000e+00 : f32
    %157 = vector.broadcast %cst_54 : f32 to vector<8x384xf32>
    %158 = arith.addf %157, %156 : vector<8x384xf32>
    %159 = arith.divf %157, %158 : vector<8x384xf32>
    %160 = vector.extract_strided_slice %159 {offsets = [0, 0], sizes = [8, 128], strides = [1, 1]} : vector<8x384xf32> to vector<8x128xf32>
    %161 = vector.extract_strided_slice %159 {offsets = [0, 128], sizes = [8, 128], strides = [1, 1]} : vector<8x384xf32> to vector<8x128xf32>
    %162 = vector.extract_strided_slice %159 {offsets = [0, 256], sizes = [8, 128], strides = [1, 1]} : vector<8x384xf32> to vector<8x128xf32>
    %163 = vector.extract_strided_slice %153 {offsets = [0, 384], sizes = [8, 128], strides = [1, 1]} : vector<8x512xf32> to vector<8x128xf32>
    %164 = math.tanh %163 : vector<8x128xf32>
    %165 = arith.mulf %161, %139 : vector<8x128xf32>
    %166 = arith.mulf %160, %164 : vector<8x128xf32>
    %167 = arith.addf %165, %166 : vector<8x128xf32>
    %168 = math.tanh %167 : vector<8x128xf32>
    %169 = arith.mulf %162, %168 : vector<8x128xf32>
    %170 = arith.negf %169 : vector<8x128xf32>
    %171 = math.exp %170 : vector<8x128xf32>
    %cst_55 = arith.constant 1.000000e+00 : f32
    %172 = vector.broadcast %cst_55 : f32 to vector<8x128xf32>
    %173 = arith.addf %172, %171 : vector<8x128xf32>
    %174 = arith.divf %172, %173 : vector<8x128xf32>
    %175 = arith.truncf %174 : vector<8x128xf32> to vector<8x128xbf16>
    %c40_56 = arith.constant 40 : index
    %c0_57 = arith.constant 0 : index
    %176 = vector.load %arg10[%c40_56, %c0_57] : memref<64x128xbf16, #tpu.memory_space<vmem>>, vector<8x128xbf16>
    tpu.vector_store %arg10[%c40_56, %c0_57], %175 {strides = array<i32>} : memref<64x128xbf16, #tpu.memory_space<vmem>>, vector<8x128xbf16>,
    %c48 = arith.constant 48 : index
    %c0_58 = arith.constant 0 : index
    %177 = vector.load %arg9[%c48, %c0_58] : memref<64x512xf32, #tpu.memory_space<vmem>>, vector<8x512xf32>
    %178 = arith.truncf %169 : vector<8x128xf32> to vector<8x128xbf16>
    %c0_59 = arith.constant 0 : index
    %c0_60 = arith.constant 0 : index
    %179 = vector.load %arg3[%c0_59, %c0_60] : memref<128x512xbf16, #tpu.memory_space<vmem>>, vector<128x512xbf16>
    %cst_61 = arith.constant dense<0.000000e+00> : vector<8x512xf32>
    %180 = tpu.matmul %178, %179, %cst_61 {dimension_numbers = #tpu.dot_dimension_numbers<[1], [0], [0], [1], [0, 0, 1, 1], [], []>} : vector<8x128xbf16>, vector<128x512xbf16>, vector<8x512xf32> -> vector<8x512xf32>
    %181 = arith.addf %177, %180 : vector<8x512xf32>
    %182 = vector.extract_strided_slice %181 {offsets = [0, 0], sizes = [8, 384], strides = [1, 1]} : vector<8x512xf32> to vector<8x384xf32>
    %183 = arith.negf %182 : vector<8x384xf32>
    %184 = math.exp %183 : vector<8x384xf32>
    %cst_62 = arith.constant 1.000000e+00 : f32
    %185 = vector.broadcast %cst_62 : f32 to vector<8x384xf32>
    %186 = arith.addf %185, %184 : vector<8x384xf32>
    %187 = arith.divf %185, %186 : vector<8x384xf32>
    %188 = vector.extract_strided_slice %187 {offsets = [0, 0], sizes = [8, 128], strides = [1, 1]} : vector<8x384xf32> to vector<8x128xf32>
    %189 = vector.extract_strided_slice %187 {offsets = [0, 128], sizes = [8, 128], strides = [1, 1]} : vector<8x384xf32> to vector<8x128xf32>
    %190 = vector.extract_strided_slice %187 {offsets = [0, 256], sizes = [8, 128], strides = [1, 1]} : vector<8x384xf32> to vector<8x128xf32>
    %191 = vector.extract_strided_slice %181 {offsets = [0, 384], sizes = [8, 128], strides = [1, 1]} : vector<8x512xf32> to vector<8x128xf32>
    %192 = math.tanh %191 : vector<8x128xf32>
    %193 = arith.mulf %189, %167 : vector<8x128xf32>
    %194 = arith.mulf %188, %192 : vector<8x128xf32>
    %195 = arith.addf %193, %194 : vector<8x128xf32>
    %196 = math.tanh %195 : vector<8x128xf32>
    %197 = arith.mulf %190, %196 : vector<8x128xf32>
    %198 = arith.negf %197 : vector<8x128xf32>
    %199 = math.exp %198 : vector<8x128xf32>
    %cst_63 = arith.constant 1.000000e+00 : f32
    %200 = vector.broadcast %cst_63 : f32 to vector<8x128xf32>
    %201 = arith.addf %200, %199 : vector<8x128xf32>
    %202 = arith.divf %200, %201 : vector<8x128xf32>
    %203 = arith.truncf %202 : vector<8x128xf32> to vector<8x128xbf16>
    %c48_64 = arith.constant 48 : index
    %c0_65 = arith.constant 0 : index
    %204 = vector.load %arg10[%c48_64, %c0_65] : memref<64x128xbf16, #tpu.memory_space<vmem>>, vector<8x128xbf16>
    tpu.vector_store %arg10[%c48_64, %c0_65], %203 {strides = array<i32>} : memref<64x128xbf16, #tpu.memory_space<vmem>>, vector<8x128xbf16>,
    %c56 = arith.constant 56 : index
    %c0_66 = arith.constant 0 : index
    %205 = vector.load %arg9[%c56, %c0_66] : memref<64x512xf32, #tpu.memory_space<vmem>>, vector<8x512xf32>
    %206 = arith.truncf %197 : vector<8x128xf32> to vector<8x128xbf16>
    %c0_67 = arith.constant 0 : index
    %c0_68 = arith.constant 0 : index
    %207 = vector.load %arg3[%c0_67, %c0_68] : memref<128x512xbf16, #tpu.memory_space<vmem>>, vector<128x512xbf16>
    %cst_69 = arith.constant dense<0.000000e+00> : vector<8x512xf32>
    %208 = tpu.matmul %206, %207, %cst_69 {dimension_numbers = #tpu.dot_dimension_numbers<[1], [0], [0], [1], [0, 0, 1, 1], [], []>} : vector<8x128xbf16>, vector<128x512xbf16>, vector<8x512xf32> -> vector<8x512xf32>
    %209 = arith.addf %205, %208 : vector<8x512xf32>
    %210 = vector.extract_strided_slice %209 {offsets = [0, 0], sizes = [8, 384], strides = [1, 1]} : vector<8x512xf32> to vector<8x384xf32>
    %211 = arith.negf %210 : vector<8x384xf32>
    %212 = math.exp %211 : vector<8x384xf32>
    %cst_70 = arith.constant 1.000000e+00 : f32
    %213 = vector.broadcast %cst_70 : f32 to vector<8x384xf32>
    %214 = arith.addf %213, %212 : vector<8x384xf32>
    %215 = arith.divf %213, %214 : vector<8x384xf32>
    %216 = vector.extract_strided_slice %215 {offsets = [0, 0], sizes = [8, 128], strides = [1, 1]} : vector<8x384xf32> to vector<8x128xf32>
    %217 = vector.extract_strided_slice %215 {offsets = [0, 128], sizes = [8, 128], strides = [1, 1]} : vector<8x384xf32> to vector<8x128xf32>
    %218 = vector.extract_strided_slice %215 {offsets = [0, 256], sizes = [8, 128], strides = [1, 1]} : vector<8x384xf32> to vector<8x128xf32>
    %219 = vector.extract_strided_slice %209 {offsets = [0, 384], sizes = [8, 128], strides = [1, 1]} : vector<8x512xf32> to vector<8x128xf32>
    %220 = math.tanh %219 : vector<8x128xf32>
    %221 = arith.mulf %217, %195 : vector<8x128xf32>
    %222 = arith.mulf %216, %220 : vector<8x128xf32>
    %223 = arith.addf %221, %222 : vector<8x128xf32>
    %224 = math.tanh %223 : vector<8x128xf32>
    %225 = arith.mulf %218, %224 : vector<8x128xf32>
    %226 = arith.negf %225 : vector<8x128xf32>
    %227 = math.exp %226 : vector<8x128xf32>
    %cst_71 = arith.constant 1.000000e+00 : f32
    %228 = vector.broadcast %cst_71 : f32 to vector<8x128xf32>
    %229 = arith.addf %228, %227 : vector<8x128xf32>
    %230 = arith.divf %228, %229 : vector<8x128xf32>
    %231 = arith.truncf %230 : vector<8x128xf32> to vector<8x128xbf16>
    %c56_72 = arith.constant 56 : index
    %c0_73 = arith.constant 0 : index
    %232 = vector.load %arg10[%c56_72, %c0_73] : memref<64x128xbf16, #tpu.memory_space<vmem>>, vector<8x128xbf16>
    tpu.vector_store %arg10[%c56_72, %c0_73], %231 {strides = array<i32>} : memref<64x128xbf16, #tpu.memory_space<vmem>>, vector<8x128xbf16>,
    %c0_74 = arith.constant 0 : index
    %c0_75 = arith.constant 0 : index
    %233 = vector.load %arg10[%c0_74, %c0_75] : memref<64x128xbf16, #tpu.memory_space<vmem>>, vector<64x128xbf16>
    %c0_76 = arith.constant 0 : index
    %c0_77 = arith.constant 0 : index
    %234 = vector.load %arg5[%c0_76, %c0_77] : memref<128x512xbf16, #tpu.memory_space<vmem>>, vector<128x512xbf16>
    %cst_78 = arith.constant dense<0.000000e+00> : vector<64x512xf32>
    %235 = tpu.matmul %233, %234, %cst_78 {dimension_numbers = #tpu.dot_dimension_numbers<[1], [0], [0], [1], [0, 0, 1, 1], [], []>} : vector<64x128xbf16>, vector<128x512xbf16>, vector<64x512xf32> -> vector<64x512xf32>
    %c0_79 = arith.constant 0 : index
    %c0_80 = arith.constant 0 : index
    %236 = vector.load %arg7[%c0_79, %c0_80] : memref<1x512xf32, #tpu.memory_space<vmem>>, vector<1x512xf32>
    %237 = vector.broadcast %236 : vector<1x512xf32> to vector<64x512xf32>
    %238 = arith.addf %235, %237 : vector<64x512xf32>
    %c0_81 = arith.constant 0 : index
    %c0_82 = arith.constant 0 : index
    %239 = vector.load %arg9[%c0_81, %c0_82] : memref<64x512xf32, #tpu.memory_space<vmem>>, vector<64x512xf32>
    tpu.vector_store %arg9[%c0_81, %c0_82], %238 {strides = array<i32>} : memref<64x512xf32, #tpu.memory_space<vmem>>, vector<64x512xf32>,
    %cst_83 = arith.constant 0.000000e+00 : f32
    %240 = vector.broadcast %cst_83 : f32 to vector<8x128xf32>
    %cst_84 = arith.constant 0.000000e+00 : f32
    %241 = vector.broadcast %cst_84 : f32 to vector<8x128xf32>
    %c0_85 = arith.constant 0 : index
    %c0_86 = arith.constant 0 : index
    %242 = vector.load %arg9[%c0_85, %c0_86] : memref<64x512xf32, #tpu.memory_space<vmem>>, vector<8x512xf32>
    %243 = arith.truncf %240 : vector<8x128xf32> to vector<8x128xbf16>
    %c0_87 = arith.constant 0 : index
    %c0_88 = arith.constant 0 : index
    %244 = vector.load %arg6[%c0_87, %c0_88] : memref<128x512xbf16, #tpu.memory_space<vmem>>, vector<128x512xbf16>
    %cst_89 = arith.constant dense<0.000000e+00> : vector<8x512xf32>
    %245 = tpu.matmul %243, %244, %cst_89 {dimension_numbers = #tpu.dot_dimension_numbers<[1], [0], [0], [1], [0, 0, 1, 1], [], []>} : vector<8x128xbf16>, vector<128x512xbf16>, vector<8x512xf32> -> vector<8x512xf32>
    %246 = arith.addf %242, %245 : vector<8x512xf32>
    %247 = vector.extract_strided_slice %246 {offsets = [0, 0], sizes = [8, 384], strides = [1, 1]} : vector<8x512xf32> to vector<8x384xf32>
    %248 = arith.negf %247 : vector<8x384xf32>
    %249 = math.exp %248 : vector<8x384xf32>
    %cst_90 = arith.constant 1.000000e+00 : f32
    %250 = vector.broadcast %cst_90 : f32 to vector<8x384xf32>
    %251 = arith.addf %250, %249 : vector<8x384xf32>
    %252 = arith.divf %250, %251 : vector<8x384xf32>
    %253 = vector.extract_strided_slice %252 {offsets = [0, 0], sizes = [8, 128], strides = [1, 1]} : vector<8x384xf32> to vector<8x128xf32>
    %254 = vector.extract_strided_slice %252 {offsets = [0, 128], sizes = [8, 128], strides = [1, 1]} : vector<8x384xf32> to vector<8x128xf32>
    %255 = vector.extract_strided_slice %252 {offsets = [0, 256], sizes = [8, 128], strides = [1, 1]} : vector<8x384xf32> to vector<8x128xf32>
    %256 = vector.extract_strided_slice %246 {offsets = [0, 384], sizes = [8, 128], strides = [1, 1]} : vector<8x512xf32> to vector<8x128xf32>
    %257 = math.tanh %256 : vector<8x128xf32>
    %258 = arith.mulf %254, %241 : vector<8x128xf32>
    %259 = arith.mulf %253, %257 : vector<8x128xf32>
    %260 = arith.addf %258, %259 : vector<8x128xf32>
    %261 = math.tanh %260 : vector<8x128xf32>
    %262 = arith.mulf %255, %261 : vector<8x128xf32>
    %c8_91 = arith.constant 8 : index
    %c0_92 = arith.constant 0 : index
    %263 = vector.load %arg9[%c8_91, %c0_92] : memref<64x512xf32, #tpu.memory_space<vmem>>, vector<8x512xf32>
    %264 = arith.truncf %262 : vector<8x128xf32> to vector<8x128xbf16>
    %c0_93 = arith.constant 0 : index
    %c0_94 = arith.constant 0 : index
    %265 = vector.load %arg6[%c0_93, %c0_94] : memref<128x512xbf16, #tpu.memory_space<vmem>>, vector<128x512xbf16>
    %cst_95 = arith.constant dense<0.000000e+00> : vector<8x512xf32>
    %266 = tpu.matmul %264, %265, %cst_95 {dimension_numbers = #tpu.dot_dimension_numbers<[1], [0], [0], [1], [0, 0, 1, 1], [], []>} : vector<8x128xbf16>, vector<128x512xbf16>, vector<8x512xf32> -> vector<8x512xf32>
    %267 = arith.addf %263, %266 : vector<8x512xf32>
    %268 = vector.extract_strided_slice %267 {offsets = [0, 0], sizes = [8, 384], strides = [1, 1]} : vector<8x512xf32> to vector<8x384xf32>
    %269 = arith.negf %268 : vector<8x384xf32>
    %270 = math.exp %269 : vector<8x384xf32>
    %cst_96 = arith.constant 1.000000e+00 : f32
    %271 = vector.broadcast %cst_96 : f32 to vector<8x384xf32>
    %272 = arith.addf %271, %270 : vector<8x384xf32>
    %273 = arith.divf %271, %272 : vector<8x384xf32>
    %274 = vector.extract_strided_slice %273 {offsets = [0, 0], sizes = [8, 128], strides = [1, 1]} : vector<8x384xf32> to vector<8x128xf32>
    %275 = vector.extract_strided_slice %273 {offsets = [0, 128], sizes = [8, 128], strides = [1, 1]} : vector<8x384xf32> to vector<8x128xf32>
    %276 = vector.extract_strided_slice %273 {offsets = [0, 256], sizes = [8, 128], strides = [1, 1]} : vector<8x384xf32> to vector<8x128xf32>
    %277 = vector.extract_strided_slice %267 {offsets = [0, 384], sizes = [8, 128], strides = [1, 1]} : vector<8x512xf32> to vector<8x128xf32>
    %278 = math.tanh %277 : vector<8x128xf32>
    %279 = arith.mulf %275, %260 : vector<8x128xf32>
    %280 = arith.mulf %274, %278 : vector<8x128xf32>
    %281 = arith.addf %279, %280 : vector<8x128xf32>
    %282 = math.tanh %281 : vector<8x128xf32>
    %283 = arith.mulf %276, %282 : vector<8x128xf32>
    %c16_97 = arith.constant 16 : index
    %c0_98 = arith.constant 0 : index
    %284 = vector.load %arg9[%c16_97, %c0_98] : memref<64x512xf32, #tpu.memory_space<vmem>>, vector<8x512xf32>
    %285 = arith.truncf %283 : vector<8x128xf32> to vector<8x128xbf16>
    %c0_99 = arith.constant 0 : index
    %c0_100 = arith.constant 0 : index
    %286 = vector.load %arg6[%c0_99, %c0_100] : memref<128x512xbf16, #tpu.memory_space<vmem>>, vector<128x512xbf16>
    %cst_101 = arith.constant dense<0.000000e+00> : vector<8x512xf32>
    %287 = tpu.matmul %285, %286, %cst_101 {dimension_numbers = #tpu.dot_dimension_numbers<[1], [0], [0], [1], [0, 0, 1, 1], [], []>} : vector<8x128xbf16>, vector<128x512xbf16>, vector<8x512xf32> -> vector<8x512xf32>
    %288 = arith.addf %284, %287 : vector<8x512xf32>
    %289 = vector.extract_strided_slice %288 {offsets = [0, 0], sizes = [8, 384], strides = [1, 1]} : vector<8x512xf32> to vector<8x384xf32>
    %290 = arith.negf %289 : vector<8x384xf32>
    %291 = math.exp %290 : vector<8x384xf32>
    %cst_102 = arith.constant 1.000000e+00 : f32
    %292 = vector.broadcast %cst_102 : f32 to vector<8x384xf32>
    %293 = arith.addf %292, %291 : vector<8x384xf32>
    %294 = arith.divf %292, %293 : vector<8x384xf32>
    %295 = vector.extract_strided_slice %294 {offsets = [0, 0], sizes = [8, 128], strides = [1, 1]} : vector<8x384xf32> to vector<8x128xf32>
    %296 = vector.extract_strided_slice %294 {offsets = [0, 128], sizes = [8, 128], strides = [1, 1]} : vector<8x384xf32> to vector<8x128xf32>
    %297 = vector.extract_strided_slice %294 {offsets = [0, 256], sizes = [8, 128], strides = [1, 1]} : vector<8x384xf32> to vector<8x128xf32>
    %298 = vector.extract_strided_slice %288 {offsets = [0, 384], sizes = [8, 128], strides = [1, 1]} : vector<8x512xf32> to vector<8x128xf32>
    %299 = math.tanh %298 : vector<8x128xf32>
    %300 = arith.mulf %296, %281 : vector<8x128xf32>
    %301 = arith.mulf %295, %299 : vector<8x128xf32>
    %302 = arith.addf %300, %301 : vector<8x128xf32>
    %303 = math.tanh %302 : vector<8x128xf32>
    %304 = arith.mulf %297, %303 : vector<8x128xf32>
    %c24_103 = arith.constant 24 : index
    %c0_104 = arith.constant 0 : index
    %305 = vector.load %arg9[%c24_103, %c0_104] : memref<64x512xf32, #tpu.memory_space<vmem>>, vector<8x512xf32>
    %306 = arith.truncf %304 : vector<8x128xf32> to vector<8x128xbf16>
    %c0_105 = arith.constant 0 : index
    %c0_106 = arith.constant 0 : index
    %307 = vector.load %arg6[%c0_105, %c0_106] : memref<128x512xbf16, #tpu.memory_space<vmem>>, vector<128x512xbf16>
    %cst_107 = arith.constant dense<0.000000e+00> : vector<8x512xf32>
    %308 = tpu.matmul %306, %307, %cst_107 {dimension_numbers = #tpu.dot_dimension_numbers<[1], [0], [0], [1], [0, 0, 1, 1], [], []>} : vector<8x128xbf16>, vector<128x512xbf16>, vector<8x512xf32> -> vector<8x512xf32>
    %309 = arith.addf %305, %308 : vector<8x512xf32>
    %310 = vector.extract_strided_slice %309 {offsets = [0, 0], sizes = [8, 384], strides = [1, 1]} : vector<8x512xf32> to vector<8x384xf32>
    %311 = arith.negf %310 : vector<8x384xf32>
    %312 = math.exp %311 : vector<8x384xf32>
    %cst_108 = arith.constant 1.000000e+00 : f32
    %313 = vector.broadcast %cst_108 : f32 to vector<8x384xf32>
    %314 = arith.addf %313, %312 : vector<8x384xf32>
    %315 = arith.divf %313, %314 : vector<8x384xf32>
    %316 = vector.extract_strided_slice %315 {offsets = [0, 0], sizes = [8, 128], strides = [1, 1]} : vector<8x384xf32> to vector<8x128xf32>
    %317 = vector.extract_strided_slice %315 {offsets = [0, 128], sizes = [8, 128], strides = [1, 1]} : vector<8x384xf32> to vector<8x128xf32>
    %318 = vector.extract_strided_slice %315 {offsets = [0, 256], sizes = [8, 128], strides = [1, 1]} : vector<8x384xf32> to vector<8x128xf32>
    %319 = vector.extract_strided_slice %309 {offsets = [0, 384], sizes = [8, 128], strides = [1, 1]} : vector<8x512xf32> to vector<8x128xf32>
    %320 = math.tanh %319 : vector<8x128xf32>
    %321 = arith.mulf %317, %302 : vector<8x128xf32>
    %322 = arith.mulf %316, %320 : vector<8x128xf32>
    %323 = arith.addf %321, %322 : vector<8x128xf32>
    %324 = math.tanh %323 : vector<8x128xf32>
    %325 = arith.mulf %318, %324 : vector<8x128xf32>
    %c32_109 = arith.constant 32 : index
    %c0_110 = arith.constant 0 : index
    %326 = vector.load %arg9[%c32_109, %c0_110] : memref<64x512xf32, #tpu.memory_space<vmem>>, vector<8x512xf32>
    %327 = arith.truncf %325 : vector<8x128xf32> to vector<8x128xbf16>
    %c0_111 = arith.constant 0 : index
    %c0_112 = arith.constant 0 : index
    %328 = vector.load %arg6[%c0_111, %c0_112] : memref<128x512xbf16, #tpu.memory_space<vmem>>, vector<128x512xbf16>
    %cst_113 = arith.constant dense<0.000000e+00> : vector<8x512xf32>
    %329 = tpu.matmul %327, %328, %cst_113 {dimension_numbers = #tpu.dot_dimension_numbers<[1], [0], [0], [1], [0, 0, 1, 1], [], []>} : vector<8x128xbf16>, vector<128x512xbf16>, vector<8x512xf32> -> vector<8x512xf32>
    %330 = arith.addf %326, %329 : vector<8x512xf32>
    %331 = vector.extract_strided_slice %330 {offsets = [0, 0], sizes = [8, 384], strides = [1, 1]} : vector<8x512xf32> to vector<8x384xf32>
    %332 = arith.negf %331 : vector<8x384xf32>
    %333 = math.exp %332 : vector<8x384xf32>
    %cst_114 = arith.constant 1.000000e+00 : f32
    %334 = vector.broadcast %cst_114 : f32 to vector<8x384xf32>
    %335 = arith.addf %334, %333 : vector<8x384xf32>
    %336 = arith.divf %334, %335 : vector<8x384xf32>
    %337 = vector.extract_strided_slice %336 {offsets = [0, 0], sizes = [8, 128], strides = [1, 1]} : vector<8x384xf32> to vector<8x128xf32>
    %338 = vector.extract_strided_slice %336 {offsets = [0, 128], sizes = [8, 128], strides = [1, 1]} : vector<8x384xf32> to vector<8x128xf32>
    %339 = vector.extract_strided_slice %336 {offsets = [0, 256], sizes = [8, 128], strides = [1, 1]} : vector<8x384xf32> to vector<8x128xf32>
    %340 = vector.extract_strided_slice %330 {offsets = [0, 384], sizes = [8, 128], strides = [1, 1]} : vector<8x512xf32> to vector<8x128xf32>
    %341 = math.tanh %340 : vector<8x128xf32>
    %342 = arith.mulf %338, %323 : vector<8x128xf32>
    %343 = arith.mulf %337, %341 : vector<8x128xf32>
    %344 = arith.addf %342, %343 : vector<8x128xf32>
    %345 = math.tanh %344 : vector<8x128xf32>
    %346 = arith.mulf %339, %345 : vector<8x128xf32>
    %c40_115 = arith.constant 40 : index
    %c0_116 = arith.constant 0 : index
    %347 = vector.load %arg9[%c40_115, %c0_116] : memref<64x512xf32, #tpu.memory_space<vmem>>, vector<8x512xf32>
    %348 = arith.truncf %346 : vector<8x128xf32> to vector<8x128xbf16>
    %c0_117 = arith.constant 0 : index
    %c0_118 = arith.constant 0 : index
    %349 = vector.load %arg6[%c0_117, %c0_118] : memref<128x512xbf16, #tpu.memory_space<vmem>>, vector<128x512xbf16>
    %cst_119 = arith.constant dense<0.000000e+00> : vector<8x512xf32>
    %350 = tpu.matmul %348, %349, %cst_119 {dimension_numbers = #tpu.dot_dimension_numbers<[1], [0], [0], [1], [0, 0, 1, 1], [], []>} : vector<8x128xbf16>, vector<128x512xbf16>, vector<8x512xf32> -> vector<8x512xf32>
    %351 = arith.addf %347, %350 : vector<8x512xf32>
    %352 = vector.extract_strided_slice %351 {offsets = [0, 0], sizes = [8, 384], strides = [1, 1]} : vector<8x512xf32> to vector<8x384xf32>
    %353 = arith.negf %352 : vector<8x384xf32>
    %354 = math.exp %353 : vector<8x384xf32>
    %cst_120 = arith.constant 1.000000e+00 : f32
    %355 = vector.broadcast %cst_120 : f32 to vector<8x384xf32>
    %356 = arith.addf %355, %354 : vector<8x384xf32>
    %357 = arith.divf %355, %356 : vector<8x384xf32>
    %358 = vector.extract_strided_slice %357 {offsets = [0, 0], sizes = [8, 128], strides = [1, 1]} : vector<8x384xf32> to vector<8x128xf32>
    %359 = vector.extract_strided_slice %357 {offsets = [0, 128], sizes = [8, 128], strides = [1, 1]} : vector<8x384xf32> to vector<8x128xf32>
    %360 = vector.extract_strided_slice %357 {offsets = [0, 256], sizes = [8, 128], strides = [1, 1]} : vector<8x384xf32> to vector<8x128xf32>
    %361 = vector.extract_strided_slice %351 {offsets = [0, 384], sizes = [8, 128], strides = [1, 1]} : vector<8x512xf32> to vector<8x128xf32>
    %362 = math.tanh %361 : vector<8x128xf32>
    %363 = arith.mulf %359, %344 : vector<8x128xf32>
    %364 = arith.mulf %358, %362 : vector<8x128xf32>
    %365 = arith.addf %363, %364 : vector<8x128xf32>
    %366 = math.tanh %365 : vector<8x128xf32>
    %367 = arith.mulf %360, %366 : vector<8x128xf32>
    %c48_121 = arith.constant 48 : index
    %c0_122 = arith.constant 0 : index
    %368 = vector.load %arg9[%c48_121, %c0_122] : memref<64x512xf32, #tpu.memory_space<vmem>>, vector<8x512xf32>
    %369 = arith.truncf %367 : vector<8x128xf32> to vector<8x128xbf16>
    %c0_123 = arith.constant 0 : index
    %c0_124 = arith.constant 0 : index
    %370 = vector.load %arg6[%c0_123, %c0_124] : memref<128x512xbf16, #tpu.memory_space<vmem>>, vector<128x512xbf16>
    %cst_125 = arith.constant dense<0.000000e+00> : vector<8x512xf32>
    %371 = tpu.matmul %369, %370, %cst_125 {dimension_numbers = #tpu.dot_dimension_numbers<[1], [0], [0], [1], [0, 0, 1, 1], [], []>} : vector<8x128xbf16>, vector<128x512xbf16>, vector<8x512xf32> -> vector<8x512xf32>
    %372 = arith.addf %368, %371 : vector<8x512xf32>
    %373 = vector.extract_strided_slice %372 {offsets = [0, 0], sizes = [8, 384], strides = [1, 1]} : vector<8x512xf32> to vector<8x384xf32>
    %374 = arith.negf %373 : vector<8x384xf32>
    %375 = math.exp %374 : vector<8x384xf32>
    %cst_126 = arith.constant 1.000000e+00 : f32
    %376 = vector.broadcast %cst_126 : f32 to vector<8x384xf32>
    %377 = arith.addf %376, %375 : vector<8x384xf32>
    %378 = arith.divf %376, %377 : vector<8x384xf32>
    %379 = vector.extract_strided_slice %378 {offsets = [0, 0], sizes = [8, 128], strides = [1, 1]} : vector<8x384xf32> to vector<8x128xf32>
    %380 = vector.extract_strided_slice %378 {offsets = [0, 128], sizes = [8, 128], strides = [1, 1]} : vector<8x384xf32> to vector<8x128xf32>
    %381 = vector.extract_strided_slice %378 {offsets = [0, 256], sizes = [8, 128], strides = [1, 1]} : vector<8x384xf32> to vector<8x128xf32>
    %382 = vector.extract_strided_slice %372 {offsets = [0, 384], sizes = [8, 128], strides = [1, 1]} : vector<8x512xf32> to vector<8x128xf32>
    %383 = math.tanh %382 : vector<8x128xf32>
    %384 = arith.mulf %380, %365 : vector<8x128xf32>
    %385 = arith.mulf %379, %383 : vector<8x128xf32>
    %386 = arith.addf %384, %385 : vector<8x128xf32>
    %387 = math.tanh %386 : vector<8x128xf32>
    %388 = arith.mulf %381, %387 : vector<8x128xf32>
    %c56_127 = arith.constant 56 : index
    %c0_128 = arith.constant 0 : index
    %389 = vector.load %arg9[%c56_127, %c0_128] : memref<64x512xf32, #tpu.memory_space<vmem>>, vector<8x512xf32>
    %390 = arith.truncf %388 : vector<8x128xf32> to vector<8x128xbf16>
    %c0_129 = arith.constant 0 : index
    %c0_130 = arith.constant 0 : index
    %391 = vector.load %arg6[%c0_129, %c0_130] : memref<128x512xbf16, #tpu.memory_space<vmem>>, vector<128x512xbf16>
    %cst_131 = arith.constant dense<0.000000e+00> : vector<8x512xf32>
    %392 = tpu.matmul %390, %391, %cst_131 {dimension_numbers = #tpu.dot_dimension_numbers<[1], [0], [0], [1], [0, 0, 1, 1], [], []>} : vector<8x128xbf16>, vector<128x512xbf16>, vector<8x512xf32> -> vector<8x512xf32>
    %393 = arith.addf %389, %392 : vector<8x512xf32>
    %394 = vector.extract_strided_slice %393 {offsets = [0, 0], sizes = [8, 384], strides = [1, 1]} : vector<8x512xf32> to vector<8x384xf32>
    %395 = arith.negf %394 : vector<8x384xf32>
    %396 = math.exp %395 : vector<8x384xf32>
    %cst_132 = arith.constant 1.000000e+00 : f32
    %397 = vector.broadcast %cst_132 : f32 to vector<8x384xf32>
    %398 = arith.addf %397, %396 : vector<8x384xf32>
    %399 = arith.divf %397, %398 : vector<8x384xf32>
    %400 = vector.extract_strided_slice %399 {offsets = [0, 0], sizes = [8, 128], strides = [1, 1]} : vector<8x384xf32> to vector<8x128xf32>
    %401 = vector.extract_strided_slice %399 {offsets = [0, 128], sizes = [8, 128], strides = [1, 1]} : vector<8x384xf32> to vector<8x128xf32>
    %402 = vector.extract_strided_slice %399 {offsets = [0, 256], sizes = [8, 128], strides = [1, 1]} : vector<8x384xf32> to vector<8x128xf32>
    %403 = vector.extract_strided_slice %393 {offsets = [0, 384], sizes = [8, 128], strides = [1, 1]} : vector<8x512xf32> to vector<8x128xf32>
    %404 = math.tanh %403 : vector<8x128xf32>
    %405 = arith.mulf %401, %386 : vector<8x128xf32>
    %406 = arith.mulf %400, %404 : vector<8x128xf32>
    %407 = arith.addf %405, %406 : vector<8x128xf32>
    %408 = math.tanh %407 : vector<8x128xf32>
    %409 = arith.mulf %402, %408 : vector<8x128xf32>
    %410 = math.tanh %409 : vector<8x128xf32>
    %c0_133 = arith.constant 0 : index
    %c0_134 = arith.constant 0 : index
    %411 = vector.load %arg8[%c0_133, %c0_134] : memref<8x128xf32, #tpu.memory_space<vmem>>, vector<8x128xf32>
    tpu.vector_store %arg8[%c0_133, %c0_134], %410 {strides = array<i32>} : memref<8x128xf32, #tpu.memory_space<vmem>>, vector<8x128xf32>,
    return
  }
  func.func @transform_0(%arg0: i32) -> (i32, i32) {
    %c0_i32 = arith.constant 0 : i32
    %c0_i32_0 = arith.constant 0 : i32
    return %arg0, %c0_i32 : i32, i32
  }
  func.func @transform_1(%arg0: i32) -> (i32, i32) {
    %c0_i32 = arith.constant 0 : i32
    %c0_i32_0 = arith.constant 0 : i32
    %c0_i32_1 = arith.constant 0 : i32
    return %c0_i32, %c0_i32_0 : i32, i32
  }
  func.func @transform_2(%arg0: i32) -> (i32, i32) {
    %c0_i32 = arith.constant 0 : i32
    %c0_i32_0 = arith.constant 0 : i32
    %c0_i32_1 = arith.constant 0 : i32
    return %c0_i32, %c0_i32_0 : i32, i32
  }
  func.func @transform_3(%arg0: i32) -> (i32, i32) {
    %c0_i32 = arith.constant 0 : i32
    %c0_i32_0 = arith.constant 0 : i32
    %c0_i32_1 = arith.constant 0 : i32
    return %c0_i32, %c0_i32_0 : i32, i32
  }
  func.func @transform_4(%arg0: i32) -> (i32, i32) {
    %c0_i32 = arith.constant 0 : i32
    %c0_i32_0 = arith.constant 0 : i32
    %c0_i32_1 = arith.constant 0 : i32
    return %c0_i32, %c0_i32_0 : i32, i32
  }
  func.func @transform_5(%arg0: i32) -> (i32, i32) {
    %c0_i32 = arith.constant 0 : i32
    %c0_i32_0 = arith.constant 0 : i32
    %c0_i32_1 = arith.constant 0 : i32
    return %c0_i32, %c0_i32_0 : i32, i32
  }
  func.func @transform_6(%arg0: i32) -> (i32, i32) {
    %c0_i32 = arith.constant 0 : i32
    %c0_i32_0 = arith.constant 0 : i32
    %c0_i32_1 = arith.constant 0 : i32
    return %c0_i32, %c0_i32_0 : i32, i32
  }
  func.func @transform_7(%arg0: i32) -> (i32, i32) {
    %c0_i32 = arith.constant 0 : i32
    %c0_i32_0 = arith.constant 0 : i32
    return %arg0, %c0_i32 : i32, i32
  }
}

</mosaic_0001>

<llo_original>
// kernel: _forward_impl.1
$region0: #{_forward_impl.1}
  #allocation0 [shape = 'u32[]', space=smem, size = 0x4, offset = 0x4, fixed_abs, tag = 'smem constant byte address 0x4 - core index']
  #allocation1 [shape = 'u32[144,128]{1,0:T(1,128)}', space=vmem, size = 0x12000, scoped, tag = 'internal scratch']
  #allocation2 [shape = 'f32[64,512]{1,0:T(8,128)}', space=vmem, size = 0x20000, scoped, tag = 'scratch operand']
  #allocation3 [shape = 'bf16[64,128]{1,0:T(8,128)(2,1)}', space=vmem, size = 0x4000, scoped, tag = 'scratch operand']
  %s0 = inlined_call_operand.vmem [shape: bf16[64,128], index: 0, kind: input, shape index: {}]
  %s1 = inlined_call_operand.hbm [shape: bf16[128,512], index: 1, kind: input, shape index: {}]
  %s2 = inlined_call_operand.hbm [shape: bf16[128,512], index: 2, kind: input, shape index: {}]
  %s3 = inlined_call_operand.vmem [shape: f32[1,512], index: 3, kind: input, shape index: {}]
  %s4 = inlined_call_operand.hbm [shape: bf16[128,512], index: 4, kind: input, shape index: {}]
  %s5 = inlined_call_operand.hbm [shape: bf16[128,512], index: 5, kind: input, shape index: {}]
  %s6 = inlined_call_operand.vmem [shape: f32[1,512], index: 6, kind: input, shape index: {}]
  %s7 = inlined_call_operand.vmem [shape: f32[8,128], index: 7, kind: output, shape index: {}]
  %s8 = sld [smem:[#allocation0]]
  $region54: #{_forward_impl.1} parent=0
    _
  %s10 = ssub.s32 1, %s8
  %s11 = scalar_select 0, %s10, %s8
  $region1: #{_forward_impl.1} parent=0
    #allocation4 [shape = 'u8[131072]{0}', space=vmem, size = 0x20000, scoped, tag = 'input window, operand 1, single buffered']
    #allocation5 [shape = 's32[1]{0}', space=sflag, size = 0x4, scoped, tag = 'scoped memory for _forward_impl.1']
    #allocation6 [shape = 'u8[131072]{0}', space=vmem, size = 0x20000, scoped, tag = 'input window, operand 2, single buffered']
    #allocation7 [shape = 's32[1]{0}', space=sflag, size = 0x4, scoped, tag = 'scoped memory for _forward_impl.1']
    #allocation8 [shape = 'u8[131072]{0}', space=vmem, size = 0x20000, scoped, tag = 'input window, operand 4, single buffered']
    #allocation9 [shape = 'u8[131072]{0}', space=vmem, size = 0x20000, scoped, tag = 'input window, operand 5, single buffered']
    #allocation10 [shape = 's32[1]{0}', space=sflag, size = 0x4, scoped, tag = 'scoped memory for _forward_impl.1']
    %12 = vsyncpa [#allocation5], 0
    %13 = vsyncpa [#allocation7], 0
    %14 = vsyncpa [#allocation10], 0
    // Predicated region
    $region2: #{_forward_impl.1} parent=1 // pred_check
      _
    $region3: #{_forward_impl.1} parent=1 // pred_check_branch
      %16 = sbr.rel (0) target = $region5
    $region4: #{_forward_impl.1} parent=1 // pred_region
      _
    $region5: #{_forward_impl.1} parent=1 // pred_fallthru
      _
    // Predicated region
    $region6: #{_forward_impl.1} parent=1 // pred_check
      _
    $region7: #{_forward_impl.1} parent=1 // pred_check_branch
      %18 = sbr.rel (0) target = $region9
    $region8: #{_forward_impl.1} parent=1 // pred_region
      %s20 = ssub.s32 4096, 4096
      %21 = vsyncadd [#allocation5], %s20
      %s22 = sshll.u32 [#allocation4], 4
      %s23 = int_to_ptr.vmem [resolvable:$true] %s22
      %28 = dma.hbm_to_vmem [thread:$0]  %s1, 4096, %s23, [#allocation5], 256, 256, 16
    $region9: #{_forward_impl.1} parent=1 // pred_fallthru
      _
    // Predicated region
    $region10: #{_forward_impl.1} parent=1 // pred_check
      _
    $region11: #{_forward_impl.1} parent=1 // pred_check_branch
      %30 = sbr.rel (0) target = $region13
    $region12: #{_forward_impl.1} parent=1 // pred_region
      %s32 = ssub.s32 4096, 4096
      %33 = vsyncadd [#allocation7], %s32
      %s34 = sshll.u32 [#allocation6], 4
      %s35 = int_to_ptr.vmem [resolvable:$true] %s34
      %40 = dma.hbm_to_vmem [thread:$0]  %s2, 4096, %s35, [#allocation7], 256, 256, 16
    $region13: #{_forward_impl.1} parent=1 // pred_fallthru
      _
    // Predicated region
    $region14: #{_forward_impl.1} parent=1 // pred_check
      _
    $region15: #{_forward_impl.1} parent=1 // pred_check_branch
      %42 = sbr.rel (0) target = $region17
    $region16: #{_forward_impl.1} parent=1 // pred_region
      _
    $region17: #{_forward_impl.1} parent=1 // pred_fallthru
      _
    // Predicated region
    $region18: #{_forward_impl.1} parent=1 // pred_check
      _
    $region19: #{_forward_impl.1} parent=1 // pred_check_branch
      %44 = sbr.rel (0) target = $region21
    $region20: #{_forward_impl.1} parent=1 // pred_region
      %s46 = ssub.s32 4096, 4096
      %47 = vsyncadd [#allocation7], %s46
      %s48 = sshll.u32 [#allocation8], 4
      %s49 = int_to_ptr.vmem [resolvable:$true] %s48
      %54 = dma.hbm_to_vmem [thread:$0]  %s4, 4096, %s49, [#allocation7], 256, 256, 16
    $region21: #{_forward_impl.1} parent=1 // pred_fallthru
      _
    // Predicated region
    $region22: #{_forward_impl.1} parent=1 // pred_check
      _
    $region23: #{_forward_impl.1} parent=1 // pred_check_branch
      %56 = sbr.rel (0) target = $region25
    $region24: #{_forward_impl.1} parent=1 // pred_region
      %s58 = ssub.s32 4096, 4096
      %59 = vsyncadd [#allocation10], %s58
      %s60 = sshll.u32 [#allocation9], 4
      %s61 = int_to_ptr.vmem [resolvable:$true] %s60
      %66 = dma.hbm_to_vmem [thread:$0]  %s5, 4096, %s61, [#allocation10], 256, 256, 16
    $region25: #{_forward_impl.1} parent=1 // pred_fallthru
      _
    // Predicated region
    $region26: #{_forward_impl.1} parent=1 // pred_check
      _
    $region27: #{_forward_impl.1} parent=1 // pred_check_branch
      %68 = sbr.rel (0) target = $region29
    $region28: #{_forward_impl.1} parent=1 // pred_region
      _
    $region29: #{_forward_impl.1} parent=1 // pred_fallthru
      _
    // Predicated region
    $region30: #{_forward_impl.1} parent=1 // pred_check
      _
    $region31: #{_forward_impl.1} parent=1 // pred_check_branch
      %70 = sbr.rel (0) target = $region33
    $region32: #{_forward_impl.1} parent=1 // pred_region
      %71 = dma.done [#allocation5], 4096
    $region33: #{_forward_impl.1} parent=1 // pred_fallthru
      _
    // Predicated region
    $region34: #{_forward_impl.1} parent=1 // pred_check
      _
    $region35: #{_forward_impl.1} parent=1 // pred_check_branch
      %73 = sbr.rel (0) target = $region37
    $region36: #{_forward_impl.1} parent=1 // pred_region
      %74 = dma.done [#allocation7], 4096
    $region37: #{_forward_impl.1} parent=1 // pred_fallthru
      _
    // Predicated region
    $region38: #{_forward_impl.1} parent=1 // pred_check
      _
    $region39: #{_forward_impl.1} parent=1 // pred_check_branch
      %76 = sbr.rel (0) target = $region41
    $region40: #{_forward_impl.1} parent=1 // pred_region
      %77 = dma.done [#allocation7], 4096
    $region41: #{_forward_impl.1} parent=1 // pred_fallthru
      _
    // Predicated region
    $region42: #{_forward_impl.1} parent=1 // pred_check
      _
    $region43: #{_forward_impl.1} parent=1 // pred_check_branch
      %79 = sbr.rel (0) target = $region45
    $region44: #{_forward_impl.1} parent=1 // pred_region
      %80 = dma.done [#allocation10], 4096
    $region45: #{_forward_impl.1} parent=1 // pred_fallthru
      _
    %v82 = vld [vmem:[%s0] sm:$0xf]
    %v83 = vld [vmem:[%s0 + $0x4] sm:$0xf]
    %v84 = vld [vmem:[%s0 + $0x8] sm:$0xf]
    %v85 = vld [vmem:[%s0 + $0xc] sm:$0xf]
    %v86 = vld [vmem:[%s0 + $0x10] sm:$0xf]
    %v87 = vld [vmem:[%s0 + $0x14] sm:$0xf]
    %v88 = vld [vmem:[%s0 + $0x18] sm:$0xf]
    %v89 = vld [vmem:[%s0 + $0x1c] sm:$0xf]
    %v90 = vld [vmem:[#allocation4] sm:$0xff]
    %v91 = vld [vmem:[#allocation4 + $0x8] sm:$0xff]
    %v92 = vld [vmem:[#allocation4 + $0x10] sm:$0xff]
    %v93 = vld [vmem:[#allocation4 + $0x18] sm:$0xff]
    %v94 = vld [vmem:[#allocation4 + $0x20] sm:$0xff]
    %v95 = vld [vmem:[#allocation4 + $0x28] sm:$0xff]
    %v96 = vld [vmem:[#allocation4 + $0x30] sm:$0xff]
    %v97 = vld [vmem:[#allocation4 + $0x38] sm:$0xff]
    %v98 = vld [vmem:[#allocation4 + $0x40] sm:$0xff]
    %v99 = vld [vmem:[#allocation4 + $0x48] sm:$0xff]
    %v100 = vld [vmem:[#allocation4 + $0x50] sm:$0xff]
    %v101 = vld [vmem:[#allocation4 + $0x58] sm:$0xff]
    %v102 = vld [vmem:[#allocation4 + $0x60] sm:$0xff]
    %v103 = vld [vmem:[#allocation4 + $0x68] sm:$0xff]
    %v104 = vld [vmem:[#allocation4 + $0x70] sm:$0xff]
    %v105 = vld [vmem:[#allocation4 + $0x78] sm:$0xff]
    %v106 = vld [vmem:[#allocation4 + $0x80] sm:$0xff]
    %v107 = vld [vmem:[#allocation4 + $0x88] sm:$0xff]
    %v108 = vld [vmem:[#allocation4 + $0x90] sm:$0xff]
    %v109 = vld [vmem:[#allocation4 + $0x98] sm:$0xff]
    %v110 = vld [vmem:[#allocation4 + $0xa0] sm:$0xff]
    %v111 = vld [vmem:[#allocation4 + $0xa8] sm:$0xff]
    %v112 = vld [vmem:[#allocation4 + $0xb0] sm:$0xff]
    %v113 = vld [vmem:[#allocation4 + $0xb8] sm:$0xff]
    %v114 = vld [vmem:[#allocation4 + $0xc0] sm:$0xff]
    %v115 = vld [vmem:[#allocation4 + $0xc8] sm:$0xff]
    %v116 = vld [vmem:[#allocation4 + $0xd0] sm:$0xff]
    %v117 = vld [vmem:[#allocation4 + $0xd8] sm:$0xff]
    %v118 = vld [vmem:[#allocation4 + $0xe0] sm:$0xff]
    %v119 = vld [vmem:[#allocation4 + $0xe8] sm:$0xff]
    %v120 = vld [vmem:[#allocation4 + $0xf0] sm:$0xff]
    %v121 = vld [vmem:[#allocation4 + $0xf8] sm:$0xff]
    %v122 = vld [vmem:[%s3] sm:$0xf]
    %v124 = vlaneseq
    %v125 = vshrl.u32 %v124, 7
    %v126 = vsub.s32 0, %v125
    %v127 = vrot.slane %v122, %v126
    %v128 = vlaneseq
    %v129 = vshrl.u32 %v128, 7
    %v130 = vsub.s32 1, %v129
    %v131 = vrot.slane %v122, %v130
    %v132 = vlaneseq
    %v133 = vshrl.u32 %v132, 7
    %v134 = vsub.s32 2, %v133
    %v135 = vrot.slane %v122, %v134
    %v136 = vlaneseq
    %v137 = vshrl.u32 %v136, 7
    %v138 = vsub.s32 3, %v137
    %v139 = vrot.slane %v122, %v138
    %v152 = vunpack.c.l.b16 %v82
    %v153 = vunpack.c.l.b16 %v83
    %v154 = vunpack.c.l.b16 %v84
    %v155 = vunpack.c.l.b16 %v85
    %v156 = vunpack.c.l.b16 %v86
    %v157 = vunpack.c.l.b16 %v87
    %v158 = vunpack.c.l.b16 %v88
    %v159 = vunpack.c.l.b16 %v89
    %v160 = vpack.c.b16 %v153, %v152
    %v161 = vpack.c.b16 %v155, %v154
    %v162 = vpack.c.b16 %v157, %v156
    %v163 = vpack.c.b16 %v159, %v158
    %v200 = vunpack.c.l.b16 %v90
    %v201 = vunpack.c.h.b16 %v90
    %v202 = vunpack.c.l.b16 %v91
    %v203 = vunpack.c.h.b16 %v91
    %v204 = vunpack.c.l.b16 %v92
    %v205 = vunpack.c.h.b16 %v92
    %v206 = vunpack.c.l.b16 %v93
    %v207 = vunpack.c.h.b16 %v93
    %v208 = vunpack.c.l.b16 %v94
    %v209 = vunpack.c.h.b16 %v94
    %v210 = vunpack.c.l.b16 %v95
    %v211 = vunpack.c.h.b16 %v95
    %v212 = vunpack.c.l.b16 %v96
    %v213 = vunpack.c.h.b16 %v96
    %v214 = vunpack.c.l.b16 %v97
    %v215 = vunpack.c.h.b16 %v97
    %v216 = vunpack.c.l.b16 %v98
    %v217 = vunpack.c.h.b16 %v98
    %v218 = vunpack.c.l.b16 %v99
    %v219 = vunpack.c.h.b16 %v99
    %v220 = vunpack.c.l.b16 %v100
    %v221 = vunpack.c.h.b16 %v100
    %v222 = vunpack.c.l.b16 %v101
    %v223 = vunpack.c.h.b16 %v101
    %v224 = vunpack.c.l.b16 %v102
    %v225 = vunpack.c.h.b16 %v102
    %v226 = vunpack.c.l.b16 %v103
    %v227 = vunpack.c.h.b16 %v103
    %v228 = vunpack.c.l.b16 %v104
    %v229 = vunpack.c.h.b16 %v104
    %v230 = vunpack.c.l.b16 %v105
    %v231 = vunpack.c.h.b16 %v105
    %v232 = vunpack.c.l.b16 %v106
    %v233 = vunpack.c.h.b16 %v106
    %v234 = vunpack.c.l.b16 %v107
    %v235 = vunpack.c.h.b16 %v107
    %v236 = vunpack.c.l.b16 %v108
    %v237 = vunpack.c.h.b16 %v108
    %v238 = vunpack.c.l.b16 %v109
    %v239 = vunpack.c.h.b16 %v109
    %v240 = vunpack.c.l.b16 %v110
    %v241 = vunpack.c.h.b16 %v110
    %v242 = vunpack.c.l.b16 %v111
    %v243 = vunpack.c.h.b16 %v111
    %v244 = vunpack.c.l.b16 %v112
    %v245 = vunpack.c.h.b16 %v112
    %v246 = vunpack.c.l.b16 %v113
    %v247 = vunpack.c.h.b16 %v113
    %v248 = vunpack.c.l.b16 %v114
    %v249 = vunpack.c.h.b16 %v114
    %v250 = vunpack.c.l.b16 %v115
    %v251 = vunpack.c.h.b16 %v115
    %v252 = vunpack.c.l.b16 %v116
    %v253 = vunpack.c.h.b16 %v116
    %v254 = vunpack.c.l.b16 %v117
    %v255 = vunpack.c.h.b16 %v117
    %v256 = vunpack.c.l.b16 %v118
    %v257 = vunpack.c.h.b16 %v118
    %v258 = vunpack.c.l.b16 %v119
    %v259 = vunpack.c.h.b16 %v119
    %v260 = vunpack.c.l.b16 %v120
    %v261 = vunpack.c.h.b16 %v120
    %v262 = vunpack.c.l.b16 %v121
    %v263 = vunpack.c.h.b16 %v121
    %v264 = vpack.c.b16 %v204, %v200
    %v265 = vpack.c.b16 %v205, %v201
    %v266 = vpack.c.b16 %v206, %v202
    %v267 = vpack.c.b16 %v207, %v203
    %v268 = vpack.c.b16 %v212, %v208
    %v269 = vpack.c.b16 %v213, %v209
    %v270 = vpack.c.b16 %v214, %v210
    %v271 = vpack.c.b16 %v215, %v211
    %v272 = vpack.c.b16 %v220, %v216
    %v273 = vpack.c.b16 %v221, %v217
    %v274 = vpack.c.b16 %v222, %v218
    %v275 = vpack.c.b16 %v223, %v219
    %v276 = vpack.c.b16 %v228, %v224
    %v277 = vpack.c.b16 %v229, %v225
    %v278 = vpack.c.b16 %v230, %v226
    %v279 = vpack.c.b16 %v231, %v227
    %v280 = vpack.c.b16 %v236, %v232
    %v281 = vpack.c.b16 %v237, %v233
    %v282 = vpack.c.b16 %v238, %v234
    %v283 = vpack.c.b16 %v239, %v235
    %v284 = vpack.c.b16 %v244, %v240
    %v285 = vpack.c.b16 %v245, %v241
    %v286 = vpack.c.b16 %v246, %v242
    %v287 = vpack.c.b16 %v247, %v243
    %v288 = vpack.c.b16 %v252, %v248
    %v289 = vpack.c.b16 %v253, %v249
    %v290 = vpack.c.b16 %v254, %v250
    %v291 = vpack.c.b16 %v255, %v251
    %v292 = vpack.c.b16 %v260, %v256
    %v293 = vpack.c.b16 %v261, %v257
    %v294 = vpack.c.b16 %v262, %v258
    %v295 = vpack.c.b16 %v263, %v259
    %328 = vmatprep.subr.bf16.mxu0 %v293
    %329 = vmatpush1.bf16.msra.mxu0 %v292
    %330 = vmatprep.subr.bf16.mxu0 %v289
    %331 = vmatpush1.bf16.msra.mxu0 %v288
    %332 = vmatprep.subr.bf16.mxu0 %v285
    %333 = vmatpush1.bf16.msra.mxu0 %v284
    %334 = vmatprep.subr.bf16.mxu0 %v281
    %335 = vmatpush1.bf16.msra.mxu0 %v280
    %336 = vmatprep.subr.bf16.mxu0 %v277
    %337 = vmatpush1.bf16.msra.mxu0 %v276
    %338 = vmatprep.subr.bf16.mxu0 %v273
    %339 = vmatpush1.bf16.msra.mxu0 %v272
    %340 = vmatprep.subr.bf16.mxu0 %v269
    %341 = vmatpush1.bf16.msra.mxu0 %v268
    %342 = vmatprep.subr.bf16.mxu0 %v265
    %343 = vmatpush1.bf16.msra.mxu0 %v264
    %344 = vmatprep.subr.bf16.mxu0 0
    %345 = vmatpush2.bf16.msra.mxu0 0
    %346 = vmatprep.subr.bf16.mxu0 0
    %347 = vmatpush2.bf16.msra.mxu0 0
    %348 = vmatprep.subr.bf16.mxu0 0
    %349 = vmatpush2.bf16.msra.mxu0 0
    %350 = vmatprep.subr.bf16.mxu0 0
    %351 = vmatpush2.bf16.msra.mxu0 0
    %352 = vmatprep.subr.bf16.mxu0 0
    %353 = vmatpush2.bf16.msra.mxu0 0
    %354 = vmatprep.subr.bf16.mxu0 0
    %355 = vmatpush2.bf16.msra.mxu0 0
    %356 = vmatprep.subr.bf16.mxu0 0
    %357 = vmatpush2.bf16.msra.mxu0 0
    %358 = vmatprep.subr.bf16.mxu0 0
    %359 = vmatpush2.bf16.msra.mxu0 0
    %360 = vmatprep.mubr.bf16.mxu0 0
    %361 = vmatmul.mubr.bf16.gmra.mxu0 %v160
    %v362 = vpop.f32.mrf.mxu0
    %v363 = vadd.f32 %v127, %v362
    %v364 = vpop.f32.mrf.mxu0
    %v365 = vadd.f32 %v131, %v364
    %v366 = vpop.f32.mrf.mxu0
    %v367 = vadd.f32 %v127, %v366
    %v368 = vpop.f32.mrf.mxu0
    %v369 = vadd.f32 %v131, %v368
    %370 = vmatprep.mubr.bf16.mxu0 0
    %371 = vmatmul.mubr.bf16.gmra.mxu0 %v161
    %v372 = vpop.f32.mrf.mxu0
    %v373 = vadd.f32 %v127, %v372
    %v374 = vpop.f32.mrf.mxu0
    %v375 = vadd.f32 %v131, %v374
    %v376 = vpop.f32.mrf.mxu0
    %v377 = vadd.f32 %v127, %v376
    %v378 = vpop.f32.mrf.mxu0
    %v379 = vadd.f32 %v131, %v378
    %380 = vmatprep.mubr.bf16.mxu0 0
    %381 = vmatmul.mubr.bf16.gmra.mxu0 %v162
    %v382 = vpop.f32.mrf.mxu0
    %v383 = vadd.f32 %v127, %v382
    %v384 = vpop.f32.mrf.mxu0
    %v385 = vadd.f32 %v131, %v384
    %v386 = vpop.f32.mrf.mxu0
    %v387 = vadd.f32 %v127, %v386
    %v388 = vpop.f32.mrf.mxu0
    %v389 = vadd.f32 %v131, %v388
    %390 = vmatprep.mubr.bf16.mxu0 0
    %391 = vmatmul.mubr.bf16.gmra.mxu0 %v163
    %v392 = vpop.f32.mrf.mxu0
    %v393 = vadd.f32 %v127, %v392
    %v394 = vpop.f32.mrf.mxu0
    %v395 = vadd.f32 %v131, %v394
    %v396 = vpop.f32.mrf.mxu0
    %v397 = vadd.f32 %v127, %v396
    %v398 = vpop.f32.mrf.mxu0
    %v399 = vadd.f32 %v131, %v398
    %400 = vdwg.mxu0
    %401 = vmatprep.subr.bf16.mxu0 %v295
    %402 = vmatpush1.bf16.msra.mxu0 %v294
    %403 = vmatprep.subr.bf16.mxu0 %v291
    %404 = vmatpush1.bf16.msra.mxu0 %v290
    %405 = vmatprep.subr.bf16.mxu0 %v287
    %406 = vmatpush1.bf16.msra.mxu0 %v286
    %407 = vmatprep.subr.bf16.mxu0 %v283
    %408 = vmatpush1.bf16.msra.mxu0 %v282
    %409 = vmatprep.subr.bf16.mxu0 %v279
    %410 = vmatpush1.bf16.msra.mxu0 %v278
    %411 = vmatprep.subr.bf16.mxu0 %v275
    %412 = vmatpush1.bf16.msra.mxu0 %v274
    %413 = vmatprep.subr.bf16.mxu0 %v271
    %414 = vmatpush1.bf16.msra.mxu0 %v270
    %415 = vmatprep.subr.bf16.mxu0 %v267
    %416 = vmatpush1.bf16.msra.mxu0 %v266
    %417 = vmatprep.subr.bf16.mxu0 0
    %418 = vmatpush2.bf16.msra.mxu0 0
    %419 = vmatprep.subr.bf16.mxu0 0
    %420 = vmatpush2.bf16.msra.mxu0 0
    %421 = vmatprep.subr.bf16.mxu0 0
    %422 = vmatpush2.bf16.msra.mxu0 0
    %423 = vmatprep.subr.bf16.mxu0 0
    %424 = vmatpush2.bf16.msra.mxu0 0
    %425 = vmatprep.subr.bf16.mxu0 0
    %426 = vmatpush2.bf16.msra.mxu0 0
    %427 = vmatprep.subr.bf16.mxu0 0
    %428 = vmatpush2.bf16.msra.mxu0 0
    %429 = vmatprep.subr.bf16.mxu0 0
    %430 = vmatpush2.bf16.msra.mxu0 0
    %431 = vmatprep.subr.bf16.mxu0 0
    %432 = vmatpush2.bf16.msra.mxu0 0
    %433 = vmatprep.mubr.bf16.mxu0 0
    %434 = vmatmul.mubr.bf16.gmra.mxu0 %v160
    %v435 = vpop.f32.mrf.mxu0
    %v436 = vadd.f32 %v135, %v435
    %v437 = vpop.f32.mrf.mxu0
    %v438 = vadd.f32 %v139, %v437
    %v439 = vpop.f32.mrf.mxu0
    %v440 = vadd.f32 %v135, %v439
    %v441 = vpop.f32.mrf.mxu0
    %v442 = vadd.f32 %v139, %v441
    %443 = vmatprep.mubr.bf16.mxu0 0
    %444 = vmatmul.mubr.bf16.gmra.mxu0 %v161
    %v445 = vpop.f32.mrf.mxu0
    %v446 = vadd.f32 %v135, %v445
    %v447 = vpop.f32.mrf.mxu0
    %v448 = vadd.f32 %v139, %v447
    %v449 = vpop.f32.mrf.mxu0
    %v450 = vadd.f32 %v135, %v449
    %v451 = vpop.f32.mrf.mxu0
    %v452 = vadd.f32 %v139, %v451
    %453 = vmatprep.mubr.bf16.mxu0 0
    %454 = vmatmul.mubr.bf16.gmra.mxu0 %v162
    %v455 = vpop.f32.mrf.mxu0
    %v456 = vadd.f32 %v135, %v455
    %v457 = vpop.f32.mrf.mxu0
    %v458 = vadd.f32 %v139, %v457
    %v459 = vpop.f32.mrf.mxu0
    %v460 = vadd.f32 %v135, %v459
    %v461 = vpop.f32.mrf.mxu0
    %v462 = vadd.f32 %v139, %v461
    %463 = vmatprep.mubr.bf16.mxu0 0
    %464 = vmatmul.mubr.bf16.gmra.mxu0 %v163
    %v465 = vpop.f32.mrf.mxu0
    %v466 = vadd.f32 %v135, %v465
    %v467 = vpop.f32.mrf.mxu0
    %v468 = vadd.f32 %v139, %v467
    %v469 = vpop.f32.mrf.mxu0
    %v470 = vadd.f32 %v135, %v469
    %v471 = vpop.f32.mrf.mxu0
    %v472 = vadd.f32 %v139, %v471
    %473 = vdwg.mxu0
    %474 = vst [vmem:[#allocation2] sm:$0xff] %v363
    %475 = vst [vmem:[#allocation2 + $0x8] sm:$0xff] %v365
    %476 = vst [vmem:[#allocation2 + $0x10] sm:$0xff] %v436
    %477 = vst [vmem:[#allocation2 + $0x18] sm:$0xff] %v438
    %478 = vst [vmem:[#allocation2 + $0x20] sm:$0xff] %v367
    %479 = vst [vmem:[#allocation2 + $0x28] sm:$0xff] %v369
    %480 = vst [vmem:[#allocation2 + $0x30] sm:$0xff] %v440
    %481 = vst [vmem:[#allocation2 + $0x38] sm:$0xff] %v442
    %482 = vst [vmem:[#allocation2 + $0x40] sm:$0xff] %v373
    %483 = vst [vmem:[#allocation2 + $0x48] sm:$0xff] %v375
    %484 = vst [vmem:[#allocation2 + $0x50] sm:$0xff] %v446
    %485 = vst [vmem:[#allocation2 + $0x58] sm:$0xff] %v448
    %486 = vst [vmem:[#allocation2 + $0x60] sm:$0xff] %v377
    %487 = vst [vmem:[#allocation2 + $0x68] sm:$0xff] %v379
    %488 = vst [vmem:[#allocation2 + $0x70] sm:$0xff] %v450
    %489 = vst [vmem:[#allocation2 + $0x78] sm:$0xff] %v452
    %490 = vst [vmem:[#allocation2 + $0x80] sm:$0xff] %v383
    %491 = vst [vmem:[#allocation2 + $0x88] sm:$0xff] %v385
    %492 = vst [vmem:[#allocation2 + $0x90] sm:$0xff] %v456
    %493 = vst [vmem:[#allocation2 + $0x98] sm:$0xff] %v458
    %494 = vst [vmem:[#allocation2 + $0xa0] sm:$0xff] %v387
    %495 = vst [vmem:[#allocation2 + $0xa8] sm:$0xff] %v389
    %496 = vst [vmem:[#allocation2 + $0xb0] sm:$0xff] %v460
    %497 = vst [vmem:[#allocation2 + $0xb8] sm:$0xff] %v462
    %498 = vst [vmem:[#allocation2 + $0xc0] sm:$0xff] %v393
    %499 = vst [vmem:[#allocation2 + $0xc8] sm:$0xff] %v395
    %500 = vst [vmem:[#allocation2 + $0xd0] sm:$0xff] %v466
    %501 = vst [vmem:[#allocation2 + $0xd8] sm:$0xff] %v468
    %502 = vst [vmem:[#allocation2 + $0xe0] sm:$0xff] %v397
    %503 = vst [vmem:[#allocation2 + $0xe8] sm:$0xff] %v399
    %504 = vst [vmem:[#allocation2 + $0xf0] sm:$0xff] %v470
    %505 = vst [vmem:[#allocation2 + $0xf8] sm:$0xff] %v472
    %v506 = vld [vmem:[#allocation2] sm:$0xff]
    %v507 = vld [vmem:[#allocation2 + $0x8] sm:$0xff]
    %v508 = vld [vmem:[#allocation2 + $0x10] sm:$0xff]
    %v509 = vld [vmem:[#allocation2 + $0x18] sm:$0xff]
    %v510 = vld [vmem:[#allocation6] sm:$0xff]
    %v511 = vld [vmem:[#allocation6 + $0x8] sm:$0xff]
    %v512 = vld [vmem:[#allocation6 + $0x10] sm:$0xff]
    %v513 = vld [vmem:[#allocation6 + $0x18] sm:$0xff]
    %v514 = vld [vmem:[#allocation6 + $0x20] sm:$0xff]
    %v515 = vld [vmem:[#allocation6 + $0x28] sm:$0xff]
    %v516 = vld [vmem:[#allocation6 + $0x30] sm:$0xff]
    %v517 = vld [vmem:[#allocation6 + $0x38] sm:$0xff]
    %v518 = vld [vmem:[#allocation6 + $0x40] sm:$0xff]
    %v519 = vld [vmem:[#allocation6 + $0x48] sm:$0xff]
    %v520 = vld [vmem:[#allocation6 + $0x50] sm:$0xff]
    %v521 = vld [vmem:[#allocation6 + $0x58] sm:$0xff]
    %v522 = vld [vmem:[#allocation6 + $0x60] sm:$0xff]
    %v523 = vld [vmem:[#allocation6 + $0x68] sm:$0xff]
    %v524 = vld [vmem:[#allocation6 + $0x70] sm:$0xff]
    %v525 = vld [vmem:[#allocation6 + $0x78] sm:$0xff]
    %v526 = vld [vmem:[#allocation6 + $0x80] sm:$0xff]
    %v527 = vld [vmem:[#allocation6 + $0x88] sm:$0xff]
    %v528 = vld [vmem:[#allocation6 + $0x90] sm:$0xff]
    %v529 = vld [vmem:[#allocation6 + $0x98] sm:$0xff]
    %v530 = vld [vmem:[#allocation6 + $0xa0] sm:$0xff]
    %v531 = vld [vmem:[#allocation6 + $0xa8] sm:$0xff]
    %v532 = vld [vmem:[#allocation6 + $0xb0] sm:$0xff]
    %v533 = vld [vmem:[#allocation6 + $0xb8] sm:$0xff]
    %v534 = vld [vmem:[#allocation6 + $0xc0] sm:$0xff]
    %v535 = vld [vmem:[#allocation6 + $0xc8] sm:$0xff]
    %v536 = vld [vmem:[#allocation6 + $0xd0] sm:$0xff]
    %v537 = vld [vmem:[#allocation6 + $0xd8] sm:$0xff]
    %v538 = vld [vmem:[#allocation6 + $0xe0] sm:$0xff]
    %v539 = vld [vmem:[#allocation6 + $0xe8] sm:$0xff]
    %v540 = vld [vmem:[#allocation6 + $0xf0] sm:$0xff]
    %v541 = vld [vmem:[#allocation6 + $0xf8] sm:$0xff]
    %v574 = vunpack.c.l.b16 %v510
    %v575 = vunpack.c.h.b16 %v510
    %v576 = vunpack.c.l.b16 %v511
    %v577 = vunpack.c.h.b16 %v511
    %v578 = vunpack.c.l.b16 %v512
    %v579 = vunpack.c.h.b16 %v512
    %v580 = vunpack.c.l.b16 %v513
    %v581 = vunpack.c.h.b16 %v513
    %v582 = vunpack.c.l.b16 %v514
    %v583 = vunpack.c.h.b16 %v514
    %v584 = vunpack.c.l.b16 %v515
    %v585 = vunpack.c.h.b16 %v515
    %v586 = vunpack.c.l.b16 %v516
    %v587 = vunpack.c.h.b16 %v516
    %v588 = vunpack.c.l.b16 %v517
    %v589 = vunpack.c.h.b16 %v517
    %v590 = vunpack.c.l.b16 %v518
    %v591 = vunpack.c.h.b16 %v518
    %v592 = vunpack.c.l.b16 %v519
    %v593 = vunpack.c.h.b16 %v519
    %v594 = vunpack.c.l.b16 %v520
    %v595 = vunpack.c.h.b16 %v520
    %v596 = vunpack.c.l.b16 %v521
    %v597 = vunpack.c.h.b16 %v521
    %v598 = vunpack.c.l.b16 %v522
    %v599 = vunpack.c.h.b16 %v522
    %v600 = vunpack.c.l.b16 %v523
    %v601 = vunpack.c.h.b16 %v523
    %v602 = vunpack.c.l.b16 %v524
    %v603 = vunpack.c.h.b16 %v524
    %v604 = vunpack.c.l.b16 %v525
    %v605 = vunpack.c.h.b16 %v525
    %v606 = vunpack.c.l.b16 %v526
    %v607 = vunpack.c.h.b16 %v526
    %v608 = vunpack.c.l.b16 %v527
    %v609 = vunpack.c.h.b16 %v527
    %v610 = vunpack.c.l.b16 %v528
    %v611 = vunpack.c.h.b16 %v528
    %v612 = vunpack.c.l.b16 %v529
    %v613 = vunpack.c.h.b16 %v529
    %v614 = vunpack.c.l.b16 %v530
    %v615 = vunpack.c.h.b16 %v530
    %v616 = vunpack.c.l.b16 %v531
    %v617 = vunpack.c.h.b16 %v531
    %v618 = vunpack.c.l.b16 %v532
    %v619 = vunpack.c.h.b16 %v532
    %v620 = vunpack.c.l.b16 %v533
    %v621 = vunpack.c.h.b16 %v533
    %v622 = vunpack.c.l.b16 %v534
    %v623 = vunpack.c.h.b16 %v534
    %v624 = vunpack.c.l.b16 %v535
    %v625 = vunpack.c.h.b16 %v535
    %v626 = vunpack.c.l.b16 %v536
    %v627 = vunpack.c.h.b16 %v536
    %v628 = vunpack.c.l.b16 %v537
    %v629 = vunpack.c.h.b16 %v537
    %v630 = vunpack.c.l.b16 %v538
    %v631 = vunpack.c.h.b16 %v538
    %v632 = vunpack.c.l.b16 %v539
    %v633 = vunpack.c.h.b16 %v539
    %v634 = vunpack.c.l.b16 %v540
    %v635 = vunpack.c.h.b16 %v540
    %v636 = vunpack.c.l.b16 %v541
    %v637 = vunpack.c.h.b16 %v541
    %v638 = vpack.c.b16 %v578, %v574
    %v639 = vpack.c.b16 %v579, %v575
    %v640 = vpack.c.b16 %v580, %v576
    %v641 = vpack.c.b16 %v581, %v577
    %v642 = vpack.c.b16 %v586, %v582
    %v643 = vpack.c.b16 %v587, %v583
    %v644 = vpack.c.b16 %v588, %v584
    %v645 = vpack.c.b16 %v589, %v585
    %v646 = vpack.c.b16 %v594, %v590
    %v647 = vpack.c.b16 %v595, %v591
    %v648 = vpack.c.b16 %v596, %v592
    %v649 = vpack.c.b16 %v597, %v593
    %v650 = vpack.c.b16 %v602, %v598
    %v651 = vpack.c.b16 %v603, %v599
    %v652 = vpack.c.b16 %v604, %v600
    %v653 = vpack.c.b16 %v605, %v601
    %v654 = vpack.c.b16 %v610, %v606
    %v655 = vpack.c.b16 %v611, %v607
    %v656 = vpack.c.b16 %v612, %v608
    %v657 = vpack.c.b16 %v613, %v609
    %v658 = vpack.c.b16 %v618, %v614
    %v659 = vpack.c.b16 %v619, %v615
    %v660 = vpack.c.b16 %v620, %v616
    %v661 = vpack.c.b16 %v621, %v617
    %v662 = vpack.c.b16 %v626, %v622
    %v663 = vpack.c.b16 %v627, %v623
    %v664 = vpack.c.b16 %v628, %v624
    %v665 = vpack.c.b16 %v629, %v625
    %v666 = vpack.c.b16 %v634, %v630
    %v667 = vpack.c.b16 %v635, %v631
    %v668 = vpack.c.b16 %v636, %v632
    %v669 = vpack.c.b16 %v637, %v633
    %702 = vmatprep.subr.bf16.mxu0 %v667
    %703 = vmatpush1.bf16.msra.mxu0 %v666
    %704 = vmatprep.subr.bf16.mxu0 %v663
    %705 = vmatpush1.bf16.msra.mxu0 %v662
    %706 = vmatprep.subr.bf16.mxu0 %v659
    %707 = vmatpush1.bf16.msra.mxu0 %v658
    %708 = vmatprep.subr.bf16.mxu0 %v655
    %709 = vmatpush1.bf16.msra.mxu0 %v654
    %710 = vmatprep.subr.bf16.mxu0 %v651
    %711 = vmatpush1.bf16.msra.mxu0 %v650
    %712 = vmatprep.subr.bf16.mxu0 %v647
    %713 = vmatpush1.bf16.msra.mxu0 %v646
    %714 = vmatprep.subr.bf16.mxu0 %v643
    %715 = vmatpush1.bf16.msra.mxu0 %v642
    %716 = vmatprep.subr.bf16.mxu0 %v639
    %717 = vmatpush1.bf16.msra.mxu0 %v638
    %718 = vmatprep.subr.bf16.mxu0 0
    %719 = vmatpush2.bf16.msra.mxu0 0
    %720 = vmatprep.subr.bf16.mxu0 0
    %721 = vmatpush2.bf16.msra.mxu0 0
    %722 = vmatprep.subr.bf16.mxu0 0
    %723 = vmatpush2.bf16.msra.mxu0 0
    %724 = vmatprep.subr.bf16.mxu0 0
    %725 = vmatpush2.bf16.msra.mxu0 0
    %726 = vmatprep.subr.bf16.mxu0 0
    %727 = vmatpush2.bf16.msra.mxu0 0
    %728 = vmatprep.subr.bf16.mxu0 0
    %729 = vmatpush2.bf16.msra.mxu0 0
    %730 = vmatprep.subr.bf16.mxu0 0
    %731 = vmatpush2.bf16.msra.mxu0 0
    %732 = vmatprep.subr.bf16.mxu0 0
    %733 = vmatpush2.bf16.msra.mxu0 0
    %734 = vmatprep.mubr.bf16.mxu0 0
    %735 = vmatmul.mubr.bf16.gmra.mxu0 0
    %v736 = vpop.f32.mrf.mxu0
    %v737 = vadd.f32 0.0, %v736
    %v738 = vpop.f32.mrf.mxu0
    %v739 = vadd.f32 0.0, %v738
    %v740 = vpop.f32.mrf.mxu0
    %v741 = vpop.f32.mrf.mxu0
    %742 = vdwg.mxu0
    %743 = vmatprep.subr.bf16.mxu0 %v669
    %744 = vmatpush1.bf16.msra.mxu0 %v668
    %745 = vmatprep.subr.bf16.mxu0 %v665
    %746 = vmatpush1.bf16.msra.mxu0 %v664
    %747 = vmatprep.subr.bf16.mxu0 %v661
    %748 = vmatpush1.bf16.msra.mxu0 %v660
    %749 = vmatprep.subr.bf16.mxu0 %v657
    %750 = vmatpush1.bf16.msra.mxu0 %v656
    %751 = vmatprep.subr.bf16.mxu0 %v653
    %752 = vmatpush1.bf16.msra.mxu0 %v652
    %753 = vmatprep.subr.bf16.mxu0 %v649
    %754 = vmatpush1.bf16.msra.mxu0 %v648
    %755 = vmatprep.subr.bf16.mxu0 %v645
    %756 = vmatpush1.bf16.msra.mxu0 %v644
    %757 = vmatprep.subr.bf16.mxu0 %v641
    %758 = vmatpush1.bf16.msra.mxu0 %v640
    %759 = vmatprep.subr.bf16.mxu0 0
    %760 = vmatpush2.bf16.msra.mxu0 0
    %761 = vmatprep.subr.bf16.mxu0 0
    %762 = vmatpush2.bf16.msra.mxu0 0
    %763 = vmatprep.subr.bf16.mxu0 0
    %764 = vmatpush2.bf16.msra.mxu0 0
    %765 = vmatprep.subr.bf16.mxu0 0
    %766 = vmatpush2.bf16.msra.mxu0 0
    %767 = vmatprep.subr.bf16.mxu0 0
    %768 = vmatpush2.bf16.msra.mxu0 0
    %769 = vmatprep.subr.bf16.mxu0 0
    %770 = vmatpush2.bf16.msra.mxu0 0
    %771 = vmatprep.subr.bf16.mxu0 0
    %772 = vmatpush2.bf16.msra.mxu0 0
    %773 = vmatprep.subr.bf16.mxu0 0
    %774 = vmatpush2.bf16.msra.mxu0 0
    %775 = vmatprep.mubr.bf16.mxu0 0
    %776 = vmatmul.mubr.bf16.gmra.mxu0 0
    %v777 = vpop.f32.mrf.mxu0
    %v778 = vadd.f32 0.0, %v777
    %v779 = vpop.f32.mrf.mxu0
    %v780 = vadd.f32 0.0, %v779
    %v781 = vpop.f32.mrf.mxu0
    %v782 = vpop.f32.mrf.mxu0
    %783 = vdwg.mxu0
    %v784 = vadd.f32 %v506, %v737
    %v785 = vadd.f32 %v507, %v739
    %v786 = vadd.f32 %v508, %v778
    %v787 = vadd.f32 %v509, %v780
    %v788 = vxor.u32 %v784, 2147483648
    %v789 = vxor.u32 %v785, 2147483648
    %v790 = vxor.u32 %v786, 2147483648
    %v791 = vmul.f32 %v788, 1.442695
    %v792 = vpow.pop %v791
    %v793 = vmul.f32 %v789, 1.442695
    %v794 = vpow.pop %v793
    %v795 = vmul.f32 %v790, 1.442695
    %v796 = vpow.pop %v795
    %v797 = vadd.f32 %v792, 1.0
    %v798 = vadd.f32 %v794, 1.0
    %v799 = vadd.f32 %v796, 1.0
    %v800 = vrcp.pop %v797
    %v801 = vmul.f32 1.0, %v800
    %v802 = vrcp.pop %v798
    %v803 = vmul.f32 1.0, %v802
    %v804 = vrcp.pop %v799
    %v805 = vmul.f32 1.0, %v804
    %v806 = vtanh.pop %v787
    %v807 = vmul.f32 %v803, 0.0
    %v808 = vmul.f32 %v801, %v806
    %v809 = vadd.f32 %v807, %v808
    %v810 = vtanh.pop %v809
    %v811 = vmul.f32 %v805, %v810
    %v812 = vxor.u32 %v811, 2147483648
    %v813 = vmul.f32 %v812, 1.442695
    %v814 = vpow.pop %v813
    %v815 = vadd.f32 %v814, 1.0
    %v816 = vrcp.pop %v815
    %v817 = vmul.f32 1.0, %v816
    %v818 = vpack.c.bf16 %v817, %v817
    %819 = vst [vmem:[#allocation3] sm:$0xf] %v818
    %v820 = vld [vmem:[#allocation2 + $0x20] sm:$0xff]
    %v821 = vld [vmem:[#allocation2 + $0x28] sm:$0xff]
    %v822 = vld [vmem:[#allocation2 + $0x30] sm:$0xff]
    %v823 = vld [vmem:[#allocation2 + $0x38] sm:$0xff]
    %v824 = vpack.c.bf16 %v811, %v811
    %v825 = vld [vmem:[#allocation6] sm:$0xff]
    %v826 = vld [vmem:[#allocation6 + $0x8] sm:$0xff]
    %v827 = vld [vmem:[#allocation6 + $0x10] sm:$0xff]
    %v828 = vld [vmem:[#allocation6 + $0x18] sm:$0xff]
    %v829 = vld [vmem:[#allocation6 + $0x20] sm:$0xff]
    %v830 = vld [vmem:[#allocation6 + $0x28] sm:$0xff]
    %v831 = vld [vmem:[#allocation6 + $0x30] sm:$0xff]
    %v832 = vld [vmem:[#allocation6 + $0x38] sm:$0xff]
    %v833 = vld [vmem:[#allocation6 + $0x40] sm:$0xff]
    %v834 = vld [vmem:[#allocation6 + $0x48] sm:$0xff]
    %v835 = vld [vmem:[#allocation6 + $0x50] sm:$0xff]
    %v836 = vld [vmem:[#allocation6 + $0x58] sm:$0xff]
    %v837 = vld [vmem:[#allocation6 + $0x60] sm:$0xff]
    %v838 = vld [vmem:[#allocation6 + $0x68] sm:$0xff]
    %v839 = vld [vmem:[#allocation6 + $0x70] sm:$0xff]
    %v840 = vld [vmem:[#allocation6 + $0x78] sm:$0xff]
    %v841 = vld [vmem:[#allocation6 + $0x80] sm:$0xff]
    %v842 = vld [vmem:[#allocation6 + $0x88] sm:$0xff]
    %v843 = vld [vmem:[#allocation6 + $0x90] sm:$0xff]
    %v844 = vld [vmem:[#allocation6 + $0x98] sm:$0xff]
    %v845 = vld [vmem:[#allocation6 + $0xa0] sm:$0xff]
    %v846 = vld [vmem:[#allocation6 + $0xa8] sm:$0xff]
    %v847 = vld [vmem:[#allocation6 + $0xb0] sm:$0xff]
    %v848 = vld [vmem:[#allocation6 + $0xb8] sm:$0xff]
    %v849 = vld [vmem:[#allocation6 + $0xc0] sm:$0xff]
    %v850 = vld [vmem:[#allocation6 + $0xc8] sm:$0xff]
    %v851 = vld [vmem:[#allocation6 + $0xd0] sm:$0xff]
    %v852 = vld [vmem:[#allocation6 + $0xd8] sm:$0xff]
    %v853 = vld [vmem:[#allocation6 + $0xe0] sm:$0xff]
    %v854 = vld [vmem:[#allocation6 + $0xe8] sm:$0xff]
    %v855 = vld [vmem:[#allocation6 + $0xf0] sm:$0xff]
    %v856 = vld [vmem:[#allocation6 + $0xf8] sm:$0xff]
    %v889 = vunpack.c.l.b16 %v825
    %v890 = vunpack.c.h.b16 %v825
    %v891 = vunpack.c.l.b16 %v826
    %v892 = vunpack.c.h.b16 %v826
    %v893 = vunpack.c.l.b16 %v827
    %v894 = vunpack.c.h.b16 %v827
    %v895 = vunpack.c.l.b16 %v828
    %v896 = vunpack.c.h.b16 %v828
    %v897 = vunpack.c.l.b16 %v829
    %v898 = vunpack.c.h.b16 %v829
    %v899 = vunpack.c.l.b16 %v830
    %v900 = vunpack.c.h.b16 %v830
    %v901 = vunpack.c.l.b16 %v831
    %v902 = vunpack.c.h.b16 %v831
    %v903 = vunpack.c.l.b16 %v832
    %v904 = vunpack.c.h.b16 %v832
    %v905 = vunpack.c.l.b16 %v833
    %v906 = vunpack.c.h.b16 %v833
    %v907 = vunpack.c.l.b16 %v834
    %v908 = vunpack.c.h.b16 %v834
    %v909 = vunpack.c.l.b16 %v835
    %v910 = vunpack.c.h.b16 %v835
    %v911 = vunpack.c.l.b16 %v836
    %v912 = vunpack.c.h.b16 %v836
    %v913 = vunpack.c.l.b16 %v837
    %v914 = vunpack.c.h.b16 %v837
    %v915 = vunpack.c.l.b16 %v838
    %v916 = vunpack.c.h.b16 %v838
    %v917 = vunpack.c.l.b16 %v839
    %v918 = vunpack.c.h.b16 %v839
    %v919 = vunpack.c.l.b16 %v840
    %v920 = vunpack.c.h.b16 %v840
    %v921 = vunpack.c.l.b16 %v841
    %v922 = vunpack.c.h.b16 %v841
    %v923 = vunpack.c.l.b16 %v842
    %v924 = vunpack.c.h.b16 %v842
    %v925 = vunpack.c.l.b16 %v843
    %v926 = vunpack.c.h.b16 %v843
    %v927 = vunpack.c.l.b16 %v844
    %v928 = vunpack.c.h.b16 %v844
    %v929 = vunpack.c.l.b16 %v845
    %v930 = vunpack.c.h.b16 %v845
    %v931 = vunpack.c.l.b16 %v846
    %v932 = vunpack.c.h.b16 %v846
    %v933 = vunpack.c.l.b16 %v847
    %v934 = vunpack.c.h.b16 %v847
    %v935 = vunpack.c.l.b16 %v848
    %v936 = vunpack.c.h.b16 %v848
    %v937 = vunpack.c.l.b16 %v849
    %v938 = vunpack.c.h.b16 %v849
    %v939 = vunpack.c.l.b16 %v850
    %v940 = vunpack.c.h.b16 %v850
    %v941 = vunpack.c.l.b16 %v851
    %v942 = vunpack.c.h.b16 %v851
    %v943 = vunpack.c.l.b16 %v852
    %v944 = vunpack.c.h.b16 %v852
    %v945 = vunpack.c.l.b16 %v853
    %v946 = vunpack.c.h.b16 %v853
    %v947 = vunpack.c.l.b16 %v854
    %v948 = vunpack.c.h.b16 %v854
    %v949 = vunpack.c.l.b16 %v855
    %v950 = vunpack.c.h.b16 %v855
    %v951 = vunpack.c.l.b16 %v856
    %v952 = vunpack.c.h.b16 %v856
    %v953 = vpack.c.b16 %v893, %v889
    %v954 = vpack.c.b16 %v894, %v890
    %v955 = vpack.c.b16 %v895, %v891
    %v956 = vpack.c.b16 %v896, %v892
    %v957 = vpack.c.b16 %v901, %v897
    %v958 = vpack.c.b16 %v902, %v898
    %v959 = vpack.c.b16 %v903, %v899
    %v960 = vpack.c.b16 %v904, %v900
    %v961 = vpack.c.b16 %v909, %v905
    %v962 = vpack.c.b16 %v910, %v906
    %v963 = vpack.c.b16 %v911, %v907
    %v964 = vpack.c.b16 %v912, %v908
    %v965 = vpack.c.b16 %v917, %v913
    %v966 = vpack.c.b16 %v918, %v914
    %v967 = vpack.c.b16 %v919, %v915
    %v968 = vpack.c.b16 %v920, %v916
    %v969 = vpack.c.b16 %v925, %v921
    %v970 = vpack.c.b16 %v926, %v922
    %v971 = vpack.c.b16 %v927, %v923
    %v972 = vpack.c.b16 %v928, %v924
    %v973 = vpack.c.b16 %v933, %v929
    %v974 = vpack.c.b16 %v934, %v930
    %v975 = vpack.c.b16 %v935, %v931
    %v976 = vpack.c.b16 %v936, %v932
    %v977 = vpack.c.b16 %v941, %v937
    %v978 = vpack.c.b16 %v942, %v938
    %v979 = vpack.c.b16 %v943, %v939
    %v980 = vpack.c.b16 %v944, %v940
    %v981 = vpack.c.b16 %v949, %v945
    %v982 = vpack.c.b16 %v950, %v946
    %v983 = vpack.c.b16 %v951, %v947
    %v984 = vpack.c.b16 %v952, %v948
    %1017 = vmatprep.subr.bf16.mxu0 %v982
    %1018 = vmatpush1.bf16.msra.mxu0 %v981
    %1019 = vmatprep.subr.bf16.mxu0 %v978
    %1020 = vmatpush1.bf16.msra.mxu0 %v977
    %1021 = vmatprep.subr.bf16.mxu0 %v974
    %1022 = vmatpush1.bf16.msra.mxu0 %v973
    %1023 = vmatprep.subr.bf16.mxu0 %v970
    %1024 = vmatpush1.bf16.msra.mxu0 %v969
    %1025 = vmatprep.subr.bf16.mxu0 %v966
    %1026 = vmatpush1.bf16.msra.mxu0 %v965
    %1027 = vmatprep.subr.bf16.mxu0 %v962
    %1028 = vmatpush1.bf16.msra.mxu0 %v961
    %1029 = vmatprep.subr.bf16.mxu0 %v958
    %1030 = vmatpush1.bf16.msra.mxu0 %v957
    %1031 = vmatprep.subr.bf16.mxu0 %v954
    %1032 = vmatpush1.bf16.msra.mxu0 %v953
    %1033 = vmatprep.subr.bf16.mxu0 0
    %1034 = vmatpush2.bf16.msra.mxu0 0
    %1035 = vmatprep.subr.bf16.mxu0 0
    %1036 = vmatpush2.bf16.msra.mxu0 0
    %1037 = vmatprep.subr.bf16.mxu0 0
    %1038 = vmatpush2.bf16.msra.mxu0 0
    %1039 = vmatprep.subr.bf16.mxu0 0
    %1040 = vmatpush2.bf16.msra.mxu0 0
    %1041 = vmatprep.subr.bf16.mxu0 0
    %1042 = vmatpush2.bf16.msra.mxu0 0
    %1043 = vmatprep.subr.bf16.mxu0 0
    %1044 = vmatpush2.bf16.msra.mxu0 0
    %1045 = vmatprep.subr.bf16.mxu0 0
    %1046 = vmatpush2.bf16.msra.mxu0 0
    %1047 = vmatprep.subr.bf16.mxu0 0
    %1048 = vmatpush2.bf16.msra.mxu0 0
    %1049 = vmatprep.mubr.bf16.mxu0 0
    %1050 = vmatmul.mubr.bf16.gmra.mxu0 %v824
    %v1051 = vpop.f32.mrf.mxu0
    %v1052 = vadd.f32 0.0, %v1051
    %v1053 = vpop.f32.mrf.mxu0
    %v1054 = vadd.f32 0.0, %v1053
    %v1055 = vpop.f32.mrf.mxu0
    %v1056 = vpop.f32.mrf.mxu0
    %1057 = vdwg.mxu0
    %1058 = vmatprep.subr.bf16.mxu0 %v984
    %1059 = vmatpush1.bf16.msra.mxu0 %v983
    %1060 = vmatprep.subr.bf16.mxu0 %v980
    %1061 = vmatpush1.bf16.msra.mxu0 %v979
    %1062 = vmatprep.subr.bf16.mxu0 %v976
    %1063 = vmatpush1.bf16.msra.mxu0 %v975
    %1064 = vmatprep.subr.bf16.mxu0 %v972
    %1065 = vmatpush1.bf16.msra.mxu0 %v971
    %1066 = vmatprep.subr.bf16.mxu0 %v968
    %1067 = vmatpush1.bf16.msra.mxu0 %v967
    %1068 = vmatprep.subr.bf16.mxu0 %v964
    %1069 = vmatpush1.bf16.msra.mxu0 %v963
    %1070 = vmatprep.subr.bf16.mxu0 %v960
    %1071 = vmatpush1.bf16.msra.mxu0 %v959
    %1072 = vmatprep.subr.bf16.mxu0 %v956
    %1073 = vmatpush1.bf16.msra.mxu0 %v955
    %1074 = vmatprep.subr.bf16.mxu0 0
    %1075 = vmatpush2.bf16.msra.mxu0 0
    %1076 = vmatprep.subr.bf16.mxu0 0
    %1077 = vmatpush2.bf16.msra.mxu0 0
    %1078 = vmatprep.subr.bf16.mxu0 0
    %1079 = vmatpush2.bf16.msra.mxu0 0
    %1080 = vmatprep.subr.bf16.mxu0 0
    %1081 = vmatpush2.bf16.msra.mxu0 0
    %1082 = vmatprep.subr.bf16.mxu0 0
    %1083 = vmatpush2.bf16.msra.mxu0 0
    %1084 = vmatprep.subr.bf16.mxu0 0
    %1085 = vmatpush2.bf16.msra.mxu0 0
    %1086 = vmatprep.subr.bf16.mxu0 0
    %1087 = vmatpush2.bf16.msra.mxu0 0
    %1088 = vmatprep.subr.bf16.mxu0 0
    %1089 = vmatpush2.bf16.msra.mxu0 0
    %1090 = vmatprep.mubr.bf16.mxu0 0
    %1091 = vmatmul.mubr.bf16.gmra.mxu0 %v824
    %v1092 = vpop.f32.mrf.mxu0
    %v1093 = vadd.f32 0.0, %v1092
    %v1094 = vpop.f32.mrf.mxu0
    %v1095 = vadd.f32 0.0, %v1094
    %v1096 = vpop.f32.mrf.mxu0
    %v1097 = vpop.f32.mrf.mxu0
    %1098 = vdwg.mxu0
    %v1099 = vadd.f32 %v820, %v1052
    %v1100 = vadd.f32 %v821, %v1054
    %v1101 = vadd.f32 %v822, %v1093
    %v1102 = vadd.f32 %v823, %v1095
    %v1103 = vxor.u32 %v1099, 2147483648
    %v1104 = vxor.u32 %v1100, 2147483648
    %v1105 = vxor.u32 %v1101, 2147483648
    %v1106 = vmul.f32 %v1103, 1.442695
    %v1107 = vpow.pop %v1106
    %v1108 = vmul.f32 %v1104, 1.442695
    %v1109 = vpow.pop %v1108
    %v1110 = vmul.f32 %v1105, 1.442695
    %v1111 = vpow.pop %v1110
    %v1112 = vadd.f32 %v1107, 1.0
    %v1113 = vadd.f32 %v1109, 1.0
    %v1114 = vadd.f32 %v1111, 1.0
    %v1115 = vrcp.pop %v1112
    %v1116 = vmul.f32 1.0, %v1115
    %v1117 = vrcp.pop %v1113
    %v1118 = vmul.f32 1.0, %v1117
    %v1119 = vrcp.pop %v1114
    %v1120 = vmul.f32 1.0, %v1119
    %v1121 = vtanh.pop %v1102
    %v1122 = vmul.f32 %v1118, %v809
    %v1123 = vmul.f32 %v1116, %v1121
    %v1124 = vadd.f32 %v1122, %v1123
    %v1125 = vtanh.pop %v1124
    %v1126 = vmul.f32 %v1120, %v1125
    %v1127 = vxor.u32 %v1126, 2147483648
    %v1128 = vmul.f32 %v1127, 1.442695
    %v1129 = vpow.pop %v1128
    %v1130 = vadd.f32 %v1129, 1.0
    %v1131 = vrcp.pop %v1130
    %v1132 = vmul.f32 1.0, %v1131
    %v1133 = vpack.c.bf16 %v1132, %v1132
    %1134 = vst [vmem:[#allocation3 + $0x4] sm:$0xf] %v1133
    %v1135 = vld [vmem:[#allocation2 + $0x40] sm:$0xff]
    %v1136 = vld [vmem:[#allocation2 + $0x48] sm:$0xff]
    %v1137 = vld [vmem:[#allocation2 + $0x50] sm:$0xff]
    %v1138 = vld [vmem:[#allocation2 + $0x58] sm:$0xff]
    %v1139 = vpack.c.bf16 %v1126, %v1126
    %v1140 = vld [vmem:[#allocation6] sm:$0xff]
    %v1141 = vld [vmem:[#allocation6 + $0x8] sm:$0xff]
    %v1142 = vld [vmem:[#allocation6 + $0x10] sm:$0xff]
    %v1143 = vld [vmem:[#allocation6 + $0x18] sm:$0xff]
    %v1144 = vld [vmem:[#allocation6 + $0x20] sm:$0xff]
    %v1145 = vld [vmem:[#allocation6 + $0x28] sm:$0xff]
    %v1146 = vld [vmem:[#allocation6 + $0x30] sm:$0xff]
    %v1147 = vld [vmem:[#allocation6 + $0x38] sm:$0xff]
    %v1148 = vld [vmem:[#allocation6 + $0x40] sm:$0xff]
    %v1149 = vld [vmem:[#allocation6 + $0x48] sm:$0xff]
    %v1150 = vld [vmem:[#allocation6 + $0x50] sm:$0xff]
    %v1151 = vld [vmem:[#allocation6 + $0x58] sm:$0xff]
    %v1152 = vld [vmem:[#allocation6 + $0x60] sm:$0xff]
    %v1153 = vld [vmem:[#allocation6 + $0x68] sm:$0xff]
    %v1154 = vld [vmem:[#allocation6 + $0x70] sm:$0xff]
    %v1155 = vld [vmem:[#allocation6 + $0x78] sm:$0xff]
    %v1156 = vld [vmem:[#allocation6 + $0x80] sm:$0xff]
    %v1157 = vld [vmem:[#allocation6 + $0x88] sm:$0xff]
    %v1158 = vld [vmem:[#allocation6 + $0x90] sm:$0xff]
    %v1159 = vld [vmem:[#allocation6 + $0x98] sm:$0xff]
    %v1160 = vld [vmem:[#allocation6 + $0xa0] sm:$0xff]
    %v1161 = vld [vmem:[#allocation6 + $0xa8] sm:$0xff]
    %v1162 = vld [vmem:[#allocation6 + $0xb0] sm:$0xff]
    %v1163 = vld [vmem:[#allocation6 + $0xb8] sm:$0xff]
    %v1164 = vld [vmem:[#allocation6 + $0xc0] sm:$0xff]
    %v1165 = vld [vmem:[#allocation6 + $0xc8] sm:$0xff]
    %v1166 = vld [vmem:[#allocation6 + $0xd0] sm:$0xff]
    %v1167 = vld [vmem:[#allocation6 + $0xd8] sm:$0xff]
    %v1168 = vld [vmem:[#allocation6 + $0xe0] sm:$0xff]
    %v1169 = vld [vmem:[#allocation6 + $0xe8] sm:$0xff]
    %v1170 = vld [vmem:[#allocation6 + $0xf0] sm:$0xff]
    %v1171 = vld [vmem:[#allocation6 + $0xf8] sm:$0xff]
    %v1204 = vunpack.c.l.b16 %v1140
    %v1205 = vunpack.c.h.b16 %v1140
    %v1206 = vunpack.c.l.b16 %v1141
    %v1207 = vunpack.c.h.b16 %v1141
    %v1208 = vunpack.c.l.b16 %v1142
    %v1209 = vunpack.c.h.b16 %v1142
    %v1210 = vunpack.c.l.b16 %v1143
    %v1211 = vunpack.c.h.b16 %v1143
    %v1212 = vunpack.c.l.b16 %v1144
    %v1213 = vunpack.c.h.b16 %v1144
    %v1214 = vunpack.c.l.b16 %v1145
    %v1215 = vunpack.c.h.b16 %v1145
    %v1216 = vunpack.c.l.b16 %v1146
    %v1217 = vunpack.c.h.b16 %v1146
    %v1218 = vunpack.c.l.b16 %v1147
    %v1219 = vunpack.c.h.b16 %v1147
    %v1220 = vunpack.c.l.b16 %v1148
    %v1221 = vunpack.c.h.b16 %v1148
    %v1222 = vunpack.c.l.b16 %v1149
    %v1223 = vunpack.c.h.b16 %v1149
    %v1224 = vunpack.c.l.b16 %v1150
    %v1225 = vunpack.c.h.b16 %v1150
    %v1226 = vunpack.c.l.b16 %v1151
    %v1227 = vunpack.c.h.b16 %v1151
    %v1228 = vunpack.c.l.b16 %v1152
    %v1229 = vunpack.c.h.b16 %v1152
    %v1230 = vunpack.c.l.b16 %v1153
    %v1231 = vunpack.c.h.b16 %v1153
    %v1232 = vunpack.c.l.b16 %v1154
    %v1233 = vunpack.c.h.b16 %v1154
    %v1234 = vunpack.c.l.b16 %v1155
    %v1235 = vunpack.c.h.b16 %v1155
    %v1236 = vunpack.c.l.b16 %v1156
    %v1237 = vunpack.c.h.b16 %v1156
    %v1238 = vunpack.c.l.b16 %v1157
    %v1239 = vunpack.c.h.b16 %v1157
    %v1240 = vunpack.c.l.b16 %v1158
    %v1241 = vunpack.c.h.b16 %v1158
    %v1242 = vunpack.c.l.b16 %v1159
    %v1243 = vunpack.c.h.b16 %v1159
    %v1244 = vunpack.c.l.b16 %v1160
    %v1245 = vunpack.c.h.b16 %v1160
    %v1246 = vunpack.c.l.b16 %v1161
    %v1247 = vunpack.c.h.b16 %v1161
    %v1248 = vunpack.c.l.b16 %v1162
    %v1249 = vunpack.c.h.b16 %v1162
    %v1250 = vunpack.c.l.b16 %v1163
    %v1251 = vunpack.c.h.b16 %v1163
    %v1252 = vunpack.c.l.b16 %v1164
    %v1253 = vunpack.c.h.b16 %v1164
    %v1254 = vunpack.c.l.b16 %v1165
    %v1255 = vunpack.c.h.b16 %v1165
    %v1256 = vunpack.c.l.b16 %v1166
    %v1257 = vunpack.c.h.b16 %v1166
    %v1258 = vunpack.c.l.b16 %v1167
    %v1259 = vunpack.c.h.b16 %v1167
    %v1260 = vunpack.c.l.b16 %v1168
    %v1261 = vunpack.c.h.b16 %v1168
    %v1262 = vunpack.c.l.b16 %v1169
    %v1263 = vunpack.c.h.b16 %v1169
    %v1264 = vunpack.c.l.b16 %v1170
    %v1265 = vunpack.c.h.b16 %v1170
    %v1266 = vunpack.c.l.b16 %v1171
    %v1267 = vunpack.c.h.b16 %v1171
    %v1268 = vpack.c.b16 %v1208, %v1204
    %v1269 = vpack.c.b16 %v1209, %v1205
    %v1270 = vpack.c.b16 %v1210, %v1206
    %v1271 = vpack.c.b16 %v1211, %v1207
    %v1272 = vpack.c.b16 %v1216, %v1212
    %v1273 = vpack.c.b16 %v1217, %v1213
    %v1274 = vpack.c.b16 %v1218, %v1214
    %v1275 = vpack.c.b16 %v1219, %v1215
    %v1276 = vpack.c.b16 %v1224, %v1220
    %v1277 = vpack.c.b16 %v1225, %v1221
    %v1278 = vpack.c.b16 %v1226, %v1222
    %v1279 = vpack.c.b16 %v1227, %v1223
    %v1280 = vpack.c.b16 %v1232, %v1228
    %v1281 = vpack.c.b16 %v1233, %v1229
    %v1282 = vpack.c.b16 %v1234, %v1230
    %v1283 = vpack.c.b16 %v1235, %v1231
    %v1284 = vpack.c.b16 %v1240, %v1236
    %v1285 = vpack.c.b16 %v1241, %v1237
    %v1286 = vpack.c.b16 %v1242, %v1238
    %v1287 = vpack.c.b16 %v1243, %v1239
    %v1288 = vpack.c.b16 %v1248, %v1244
    %v1289 = vpack.c.b16 %v1249, %v1245
    %v1290 = vpack.c.b16 %v1250, %v1246
    %v1291 = vpack.c.b16 %v1251, %v1247
    %v1292 = vpack.c.b16 %v1256, %v1252
    %v1293 = vpack.c.b16 %v1257, %v1253
    %v1294 = vpack.c.b16 %v1258, %v1254
    %v1295 = vpack.c.b16 %v1259, %v1255
    %v1296 = vpack.c.b16 %v1264, %v1260
    %v1297 = vpack.c.b16 %v1265, %v1261
    %v1298 = vpack.c.b16 %v1266, %v1262
    %v1299 = vpack.c.b16 %v1267, %v1263
    %1332 = vmatprep.subr.bf16.mxu0 %v1297
    %1333 = vmatpush1.bf16.msra.mxu0 %v1296
    %1334 = vmatprep.subr.bf16.mxu0 %v1293
    %1335 = vmatpush1.bf16.msra.mxu0 %v1292
    %1336 = vmatprep.subr.bf16.mxu0 %v1289
    %1337 = vmatpush1.bf16.msra.mxu0 %v1288
    %1338 = vmatprep.subr.bf16.mxu0 %v1285
    %1339 = vmatpush1.bf16.msra.mxu0 %v1284
    %1340 = vmatprep.subr.bf16.mxu0 %v1281
    %1341 = vmatpush1.bf16.msra.mxu0 %v1280
    %1342 = vmatprep.subr.bf16.mxu0 %v1277
    %1343 = vmatpush1.bf16.msra.mxu0 %v1276
    %1344 = vmatprep.subr.bf16.mxu0 %v1273
    %1345 = vmatpush1.bf16.msra.mxu0 %v1272
    %1346 = vmatprep.subr.bf16.mxu0 %v1269
    %1347 = vmatpush1.bf16.msra.mxu0 %v1268
    %1348 = vmatprep.subr.bf16.mxu0 0
    %1349 = vmatpush2.bf16.msra.mxu0 0
    %1350 = vmatprep.subr.bf16.mxu0 0
    %1351 = vmatpush2.bf16.msra.mxu0 0
    %1352 = vmatprep.subr.bf16.mxu0 0
    %1353 = vmatpush2.bf16.msra.mxu0 0
    %1354 = vmatprep.subr.bf16.mxu0 0
    %1355 = vmatpush2.bf16.msra.mxu0 0
    %1356 = vmatprep.subr.bf16.mxu0 0
    %1357 = vmatpush2.bf16.msra.mxu0 0
    %1358 = vmatprep.subr.bf16.mxu0 0
    %1359 = vmatpush2.bf16.msra.mxu0 0
    %1360 = vmatprep.subr.bf16.mxu0 0
    %1361 = vmatpush2.bf16.msra.mxu0 0
    %1362 = vmatprep.subr.bf16.mxu0 0
    %1363 = vmatpush2.bf16.msra.mxu0 0
    %1364 = vmatprep.mubr.bf16.mxu0 0
    %1365 = vmatmul.mubr.bf16.gmra.mxu0 %v1139
    %v1366 = vpop.f32.mrf.mxu0
    %v1367 = vadd.f32 0.0, %v1366
    %v1368 = vpop.f32.mrf.mxu0
    %v1369 = vadd.f32 0.0, %v1368
    %v1370 = vpop.f32.mrf.mxu0
    %v1371 = vpop.f32.mrf.mxu0
    %1372 = vdwg.mxu0
    %1373 = vmatprep.subr.bf16.mxu0 %v1299
    %1374 = vmatpush1.bf16.msra.mxu0 %v1298
    %1375 = vmatprep.subr.bf16.mxu0 %v1295
    %1376 = vmatpush1.bf16.msra.mxu0 %v1294
    %1377 = vmatprep.subr.bf16.mxu0 %v1291
    %1378 = vmatpush1.bf16.msra.mxu0 %v1290
    %1379 = vmatprep.subr.bf16.mxu0 %v1287
    %1380 = vmatpush1.bf16.msra.mxu0 %v1286
    %1381 = vmatprep.subr.bf16.mxu0 %v1283
    %1382 = vmatpush1.bf16.msra.mxu0 %v1282
    %1383 = vmatprep.subr.bf16.mxu0 %v1279
    %1384 = vmatpush1.bf16.msra.mxu0 %v1278
    %1385 = vmatprep.subr.bf16.mxu0 %v1275
    %1386 = vmatpush1.bf16.msra.mxu0 %v1274
    %1387 = vmatprep.subr.bf16.mxu0 %v1271
    %1388 = vmatpush1.bf16.msra.mxu0 %v1270
    %1389 = vmatprep.subr.bf16.mxu0 0
    %1390 = vmatpush2.bf16.msra.mxu0 0
    %1391 = vmatprep.subr.bf16.mxu0 0
    %1392 = vmatpush2.bf16.msra.mxu0 0
    %1393 = vmatprep.subr.bf16.mxu0 0
    %1394 = vmatpush2.bf16.msra.mxu0 0
    %1395 = vmatprep.subr.bf16.mxu0 0
    %1396 = vmatpush2.bf16.msra.mxu0 0
    %1397 = vmatprep.subr.bf16.mxu0 0
    %1398 = vmatpush2.bf16.msra.mxu0 0
    %1399 = vmatprep.subr.bf16.mxu0 0
    %1400 = vmatpush2.bf16.msra.mxu0 0
    %1401 = vmatprep.subr.bf16.mxu0 0
    %1402 = vmatpush2.bf16.msra.mxu0 0
    %1403 = vmatprep.subr.bf16.mxu0 0
    %1404 = vmatpush2.bf16.msra.mxu0 0
    %1405 = vmatprep.mubr.bf16.mxu0 0
    %1406 = vmatmul.mubr.bf16.gmra.mxu0 %v1139
    %v1407 = vpop.f32.mrf.mxu0
    %v1408 = vadd.f32 0.0, %v1407
    %v1409 = vpop.f32.mrf.mxu0
    %v1410 = vadd.f32 0.0, %v1409
    %v1411 = vpop.f32.mrf.mxu0
    %v1412 = vpop.f32.mrf.mxu0
    %1413 = vdwg.mxu0
    %v1414 = vadd.f32 %v1135, %v1367
    %v1415 = vadd.f32 %v1136, %v1369
    %v1416 = vadd.f32 %v1137, %v1408
    %v1417 = vadd.f32 %v1138, %v1410
    %v1418 = vxor.u32 %v1414, 2147483648
    %v1419 = vxor.u32 %v1415, 2147483648
    %v1420 = vxor.u32 %v1416, 2147483648
    %v1421 = vmul.f32 %v1418, 1.442695
    %v1422 = vpow.pop %v1421
    %v1423 = vmul.f32 %v1419, 1.442695
    %v1424 = vpow.pop %v1423
    %v1425 = vmul.f32 %v1420, 1.442695
    %v1426 = vpow.pop %v1425
    %v1427 = vadd.f32 %v1422, 1.0
    %v1428 = vadd.f32 %v1424, 1.0
    %v1429 = vadd.f32 %v1426, 1.0
    %v1430 = vrcp.pop %v1427
    %v1431 = vmul.f32 1.0, %v1430
    %v1432 = vrcp.pop %v1428
    %v1433 = vmul.f32 1.0, %v1432
    %v1434 = vrcp.pop %v1429
    %v1435 = vmul.f32 1.0, %v1434
    %v1436 = vtanh.pop %v1417
    %v1437 = vmul.f32 %v1433, %v1124
    %v1438 = vmul.f32 %v1431, %v1436
    %v1439 = vadd.f32 %v1437, %v1438
    %v1440 = vtanh.pop %v1439
    %v1441 = vmul.f32 %v1435, %v1440
    %v1442 = vxor.u32 %v1441, 2147483648
    %v1443 = vmul.f32 %v1442, 1.442695
    %v1444 = vpow.pop %v1443
    %v1445 = vadd.f32 %v1444, 1.0
    %v1446 = vrcp.pop %v1445
    %v1447 = vmul.f32 1.0, %v1446
    %v1448 = vpack.c.bf16 %v1447, %v1447
    %1449 = vst [vmem:[#allocation3 + $0x8] sm:$0xf] %v1448
    %v1450 = vld [vmem:[#allocation2 + $0x60] sm:$0xff]
    %v1451 = vld [vmem:[#allocation2 + $0x68] sm:$0xff]
    %v1452 = vld [vmem:[#allocation2 + $0x70] sm:$0xff]
    %v1453 = vld [vmem:[#allocation2 + $0x78] sm:$0xff]
    %v1454 = vpack.c.bf16 %v1441, %v1441
    %v1455 = vld [vmem:[#allocation6] sm:$0xff]
    %v1456 = vld [vmem:[#allocation6 + $0x8] sm:$0xff]
    %v1457 = vld [vmem:[#allocation6 + $0x10] sm:$0xff]
    %v1458 = vld [vmem:[#allocation6 + $0x18] sm:$0xff]
    %v1459 = vld [vmem:[#allocation6 + $0x20] sm:$0xff]
    %v1460 = vld [vmem:[#allocation6 + $0x28] sm:$0xff]
    %v1461 = vld [vmem:[#allocation6 + $0x30] sm:$0xff]
    %v1462 = vld [vmem:[#allocation6 + $0x38] sm:$0xff]
    %v1463 = vld [vmem:[#allocation6 + $0x40] sm:$0xff]
    %v1464 = vld [vmem:[#allocation6 + $0x48] sm:$0xff]
    %v1465 = vld [vmem:[#allocation6 + $0x50] sm:$0xff]
    %v1466 = vld [vmem:[#allocation6 + $0x58] sm:$0xff]
    %v1467 = vld [vmem:[#allocation6 + $0x60] sm:$0xff]
    %v1468 = vld [vmem:[#allocation6 + $0x68] sm:$0xff]
    %v1469 = vld [vmem:[#allocation6 + $0x70] sm:$0xff]
    %v1470 = vld [vmem:[#allocation6 + $0x78] sm:$0xff]
    %v1471 = vld [vmem:[#allocation6 + $0x80] sm:$0xff]
    %v1472 = vld [vmem:[#allocation6 + $0x88] sm:$0xff]
    %v1473 = vld [vmem:[#allocation6 + $0x90] sm:$0xff]
    %v1474 = vld [vmem:[#allocation6 + $0x98] sm:$0xff]
    %v1475 = vld [vmem:[#allocation6 + $0xa0] sm:$0xff]
    %v1476 = vld [vmem:[#allocation6 + $0xa8] sm:$0xff]
    %v1477 = vld [vmem:[#allocation6 + $0xb0] sm:$0xff]
    %v1478 = vld [vmem:[#allocation6 + $0xb8] sm:$0xff]
    %v1479 = vld [vmem:[#allocation6 + $0xc0] sm:$0xff]
    %v1480 = vld [vmem:[#allocation6 + $0xc8] sm:$0xff]
    %v1481 = vld [vmem:[#allocation6 + $0xd0] sm:$0xff]
    %v1482 = vld [vmem:[#allocation6 + $0xd8] sm:$0xff]
    %v1483 = vld [vmem:[#allocation6 + $0xe0] sm:$0xff]
    %v1484 = vld [vmem:[#allocation6 + $0xe8] sm:$0xff]
    %v1485 = vld [vmem:[#allocation6 + $0xf0] sm:$0xff]
    %v1486 = vld [vmem:[#allocation6 + $0xf8] sm:$0xff]
    %v1519 = vunpack.c.l.b16 %v1455
    %v1520 = vunpack.c.h.b16 %v1455
    %v1521 = vunpack.c.l.b16 %v1456
    %v1522 = vunpack.c.h.b16 %v1456
    %v1523 = vunpack.c.l.b16 %v1457
    %v1524 = vunpack.c.h.b16 %v1457
    %v1525 = vunpack.c.l.b16 %v1458
    %v1526 = vunpack.c.h.b16 %v1458
    %v1527 = vunpack.c.l.b16 %v1459
    %v1528 = vunpack.c.h.b16 %v1459
    %v1529 = vunpack.c.l.b16 %v1460
    %v1530 = vunpack.c.h.b16 %v1460
    %v1531 = vunpack.c.l.b16 %v1461
    %v1532 = vunpack.c.h.b16 %v1461
    %v1533 = vunpack.c.l.b16 %v1462
    %v1534 = vunpack.c.h.b16 %v1462
    %v1535 = vunpack.c.l.b16 %v1463
    %v1536 = vunpack.c.h.b16 %v1463
    %v1537 = vunpack.c.l.b16 %v1464
    %v1538 = vunpack.c.h.b16 %v1464
    %v1539 = vunpack.c.l.b16 %v1465
    %v1540 = vunpack.c.h.b16 %v1465
    %v1541 = vunpack.c.l.b16 %v1466
    %v1542 = vunpack.c.h.b16 %v1466
    %v1543 = vunpack.c.l.b16 %v1467
    %v1544 = vunpack.c.h.b16 %v1467
    %v1545 = vunpack.c.l.b16 %v1468
    %v1546 = vunpack.c.h.b16 %v1468
    %v1547 = vunpack.c.l.b16 %v1469
    %v1548 = vunpack.c.h.b16 %v1469
    %v1549 = vunpack.c.l.b16 %v1470
    %v1550 = vunpack.c.h.b16 %v1470
    %v1551 = vunpack.c.l.b16 %v1471
    %v1552 = vunpack.c.h.b16 %v1471
    %v1553 = vunpack.c.l.b16 %v1472
    %v1554 = vunpack.c.h.b16 %v1472
    %v1555 = vunpack.c.l.b16 %v1473
    %v1556 = vunpack.c.h.b16 %v1473
    %v1557 = vunpack.c.l.b16 %v1474
    %v1558 = vunpack.c.h.b16 %v1474
    %v1559 = vunpack.c.l.b16 %v1475
    %v1560 = vunpack.c.h.b16 %v1475
    %v1561 = vunpack.c.l.b16 %v1476
    %v1562 = vunpack.c.h.b16 %v1476
    %v1563 = vunpack.c.l.b16 %v1477
    %v1564 = vunpack.c.h.b16 %v1477
    %v1565 = vunpack.c.l.b16 %v1478
    %v1566 = vunpack.c.h.b16 %v1478
    %v1567 = vunpack.c.l.b16 %v1479
    %v1568 = vunpack.c.h.b16 %v1479
    %v1569 = vunpack.c.l.b16 %v1480
    %v1570 = vunpack.c.h.b16 %v1480
    %v1571 = vunpack.c.l.b16 %v1481
    %v1572 = vunpack.c.h.b16 %v1481
    %v1573 = vunpack.c.l.b16 %v1482
    %v1574 = vunpack.c.h.b16 %v1482
    %v1575 = vunpack.c.l.b16 %v1483
    %v1576 = vunpack.c.h.b16 %v1483
    %v1577 = vunpack.c.l.b16 %v1484
    %v1578 = vunpack.c.h.b16 %v1484
    %v1579 = vunpack.c.l.b16 %v1485
    %v1580 = vunpack.c.h.b16 %v1485
    %v1581 = vunpack.c.l.b16 %v1486
    %v1582 = vunpack.c.h.b16 %v1486
    %v1583 = vpack.c.b16 %v1523, %v1519
    %v1584 = vpack.c.b16 %v1524, %v1520
    %v1585 = vpack.c.b16 %v1525, %v1521
    %v1586 = vpack.c.b16 %v1526, %v1522
    %v1587 = vpack.c.b16 %v1531, %v1527
    %v1588 = vpack.c.b16 %v1532, %v1528
    %v1589 = vpack.c.b16 %v1533, %v1529
    %v1590 = vpack.c.b16 %v1534, %v1530
    %v1591 = vpack.c.b16 %v1539, %v1535
    %v1592 = vpack.c.b16 %v1540, %v1536
    %v1593 = vpack.c.b16 %v1541, %v1537
    %v1594 = vpack.c.b16 %v1542, %v1538
    %v1595 = vpack.c.b16 %v1547, %v1543
    %v1596 = vpack.c.b16 %v1548, %v1544
    %v1597 = vpack.c.b16 %v1549, %v1545
    %v1598 = vpack.c.b16 %v1550, %v1546
    %v1599 = vpack.c.b16 %v1555, %v1551
    %v1600 = vpack.c.b16 %v1556, %v1552
    %v1601 = vpack.c.b16 %v1557, %v1553
    %v1602 = vpack.c.b16 %v1558, %v1554
    %v1603 = vpack.c.b16 %v1563, %v1559
    %v1604 = vpack.c.b16 %v1564, %v1560
    %v1605 = vpack.c.b16 %v1565, %v1561
    %v1606 = vpack.c.b16 %v1566, %v1562
    %v1607 = vpack.c.b16 %v1571, %v1567
    %v1608 = vpack.c.b16 %v1572, %v1568
    %v1609 = vpack.c.b16 %v1573, %v1569
    %v1610 = vpack.c.b16 %v1574, %v1570
    %v1611 = vpack.c.b16 %v1579, %v1575
    %v1612 = vpack.c.b16 %v1580, %v1576
    %v1613 = vpack.c.b16 %v1581, %v1577
    %v1614 = vpack.c.b16 %v1582, %v1578
    %1647 = vmatprep.subr.bf16.mxu0 %v1612
    %1648 = vmatpush1.bf16.msra.mxu0 %v1611
    %1649 = vmatprep.subr.bf16.mxu0 %v1608
    %1650 = vmatpush1.bf16.msra.mxu0 %v1607
    %1651 = vmatprep.subr.bf16.mxu0 %v1604
    %1652 = vmatpush1.bf16.msra.mxu0 %v1603
    %1653 = vmatprep.subr.bf16.mxu0 %v1600
    %1654 = vmatpush1.bf16.msra.mxu0 %v1599
    %1655 = vmatprep.subr.bf16.mxu0 %v1596
    %1656 = vmatpush1.bf16.msra.mxu0 %v1595
    %1657 = vmatprep.subr.bf16.mxu0 %v1592
    %1658 = vmatpush1.bf16.msra.mxu0 %v1591
    %1659 = vmatprep.subr.bf16.mxu0 %v1588
    %1660 = vmatpush1.bf16.msra.mxu0 %v1587
    %1661 = vmatprep.subr.bf16.mxu0 %v1584
    %1662 = vmatpush1.bf16.msra.mxu0 %v1583
    %1663 = vmatprep.subr.bf16.mxu0 0
    %1664 = vmatpush2.bf16.msra.mxu0 0
    %1665 = vmatprep.subr.bf16.mxu0 0
    %1666 = vmatpush2.bf16.msra.mxu0 0
    %1667 = vmatprep.subr.bf16.mxu0 0
    %1668 = vmatpush2.bf16.msra.mxu0 0
    %1669 = vmatprep.subr.bf16.mxu0 0
    %1670 = vmatpush2.bf16.msra.mxu0 0
    %1671 = vmatprep.subr.bf16.mxu0 0
    %1672 = vmatpush2.bf16.msra.mxu0 0
    %1673 = vmatprep.subr.bf16.mxu0 0
    %1674 = vmatpush2.bf16.msra.mxu0 0
    %1675 = vmatprep.subr.bf16.mxu0 0
    %1676 = vmatpush2.bf16.msra.mxu0 0
    %1677 = vmatprep.subr.bf16.mxu0 0
    %1678 = vmatpush2.bf16.msra.mxu0 0
    %1679 = vmatprep.mubr.bf16.mxu0 0
    %1680 = vmatmul.mubr.bf16.gmra.mxu0 %v1454
    %v1681 = vpop.f32.mrf.mxu0
    %v1682 = vadd.f32 0.0, %v1681
    %v1683 = vpop.f32.mrf.mxu0
    %v1684 = vadd.f32 0.0, %v1683
    %v1685 = vpop.f32.mrf.mxu0
    %v1686 = vpop.f32.mrf.mxu0
    %1687 = vdwg.mxu0
    %1688 = vmatprep.subr.bf16.mxu0 %v1614
    %1689 = vmatpush1.bf16.msra.mxu0 %v1613
    %1690 = vmatprep.subr.bf16.mxu0 %v1610
    %1691 = vmatpush1.bf16.msra.mxu0 %v1609
    %1692 = vmatprep.subr.bf16.mxu0 %v1606
    %1693 = vmatpush1.bf16.msra.mxu0 %v1605
    %1694 = vmatprep.subr.bf16.mxu0 %v1602
    %1695 = vmatpush1.bf16.msra.mxu0 %v1601
    %1696 = vmatprep.subr.bf16.mxu0 %v1598
    %1697 = vmatpush1.bf16.msra.mxu0 %v1597
    %1698 = vmatprep.subr.bf16.mxu0 %v1594
    %1699 = vmatpush1.bf16.msra.mxu0 %v1593
    %1700 = vmatprep.subr.bf16.mxu0 %v1590
    %1701 = vmatpush1.bf16.msra.mxu0 %v1589
    %1702 = vmatprep.subr.bf16.mxu0 %v1586
    %1703 = vmatpush1.bf16.msra.mxu0 %v1585
    %1704 = vmatprep.subr.bf16.mxu0 0
    %1705 = vmatpush2.bf16.msra.mxu0 0
    %1706 = vmatprep.subr.bf16.mxu0 0
    %1707 = vmatpush2.bf16.msra.mxu0 0
    %1708 = vmatprep.subr.bf16.mxu0 0
    %1709 = vmatpush2.bf16.msra.mxu0 0
    %1710 = vmatprep.subr.bf16.mxu0 0
    %1711 = vmatpush2.bf16.msra.mxu0 0
    %1712 = vmatprep.subr.bf16.mxu0 0
    %1713 = vmatpush2.bf16.msra.mxu0 0
    %1714 = vmatprep.subr.bf16.mxu0 0
    %1715 = vmatpush2.bf16.msra.mxu0 0
    %1716 = vmatprep.subr.bf16.mxu0 0
    %1717 = vmatpush2.bf16.msra.mxu0 0
    %1718 = vmatprep.subr.bf16.mxu0 0
    %1719 = vmatpush2.bf16.msra.mxu0 0
    %1720 = vmatprep.mubr.bf16.mxu0 0
    %1721 = vmatmul.mubr.bf16.gmra.mxu0 %v1454
    %v1722 = vpop.f32.mrf.mxu0
    %v1723 = vadd.f32 0.0, %v1722
    %v1724 = vpop.f32.mrf.mxu0
    %v1725 = vadd.f32 0.0, %v1724
    %v1726 = vpop.f32.mrf.mxu0
    %v1727 = vpop.f32.mrf.mxu0
    %1728 = vdwg.mxu0
    %v1729 = vadd.f32 %v1450, %v1682
    %v1730 = vadd.f32 %v1451, %v1684
    %v1731 = vadd.f32 %v1452, %v1723
    %v1732 = vadd.f32 %v1453, %v1725
    %v1733 = vxor.u32 %v1729, 2147483648
    %v1734 = vxor.u32 %v1730, 2147483648
    %v1735 = vxor.u32 %v1731, 2147483648
    %v1736 = vmul.f32 %v1733, 1.442695
    %v1737 = vpow.pop %v1736
    %v1738 = vmul.f32 %v1734, 1.442695
    %v1739 = vpow.pop %v1738
    %v1740 = vmul.f32 %v1735, 1.442695
    %v1741 = vpow.pop %v1740
    %v1742 = vadd.f32 %v1737, 1.0
    %v1743 = vadd.f32 %v1739, 1.0
    %v1744 = vadd.f32 %v1741, 1.0
    %v1745 = vrcp.pop %v1742
    %v1746 = vmul.f32 1.0, %v1745
    %v1747 = vrcp.pop %v1743
    %v1748 = vmul.f32 1.0, %v1747
    %v1749 = vrcp.pop %v1744
    %v1750 = vmul.f32 1.0, %v1749
    %v1751 = vtanh.pop %v1732
    %v1752 = vmul.f32 %v1748, %v1439
    %v1753 = vmul.f32 %v1746, %v1751
    %v1754 = vadd.f32 %v1752, %v1753
    %v1755 = vtanh.pop %v1754
    %v1756 = vmul.f32 %v1750, %v1755
    %v1757 = vxor.u32 %v1756, 2147483648
    %v1758 = vmul.f32 %v1757, 1.442695
    %v1759 = vpow.pop %v1758
    %v1760 = vadd.f32 %v1759, 1.0
    %v1761 = vrcp.pop %v1760
    %v1762 = vmul.f32 1.0, %v1761
    %v1763 = vpack.c.bf16 %v1762, %v1762
    %1764 = vst [vmem:[#allocation3 + $0xc] sm:$0xf] %v1763
    %v1765 = vld [vmem:[#allocation2 + $0x80] sm:$0xff]
    %v1766 = vld [vmem:[#allocation2 + $0x88] sm:$0xff]
    %v1767 = vld [vmem:[#allocation2 + $0x90] sm:$0xff]
    %v1768 = vld [vmem:[#allocation2 + $0x98] sm:$0xff]
    %v1769 = vpack.c.bf16 %v1756, %v1756
    %v1770 = vld [vmem:[#allocation6] sm:$0xff]
    %v1771 = vld [vmem:[#allocation6 + $0x8] sm:$0xff]
    %v1772 = vld [vmem:[#allocation6 + $0x10] sm:$0xff]
    %v1773 = vld [vmem:[#allocation6 + $0x18] sm:$0xff]
    %v1774 = vld [vmem:[#allocation6 + $0x20] sm:$0xff]
    %v1775 = vld [vmem:[#allocation6 + $0x28] sm:$0xff]
    %v1776 = vld [vmem:[#allocation6 + $0x30] sm:$0xff]
    %v1777 = vld [vmem:[#allocation6 + $0x38] sm:$0xff]
    %v1778 = vld [vmem:[#allocation6 + $0x40] sm:$0xff]
    %v1779 = vld [vmem:[#allocation6 + $0x48] sm:$0xff]
    %v1780 = vld [vmem:[#allocation6 + $0x50] sm:$0xff]
    %v1781 = vld [vmem:[#allocation6 + $0x58] sm:$0xff]
    %v1782 = vld [vmem:[#allocation6 + $0x60] sm:$0xff]
    %v1783 = vld [vmem:[#allocation6 + $0x68] sm:$0xff]
    %v1784 = vld [vmem:[#allocation6 + $0x70] sm:$0xff]
    %v1785 = vld [vmem:[#allocation6 + $0x78] sm:$0xff]
    %v1786 = vld [vmem:[#allocation6 + $0x80] sm:$0xff]
    %v1787 = vld [vmem:[#allocation6 + $0x88] sm:$0xff]
    %v1788 = vld [vmem:[#allocation6 + $0x90] sm:$0xff]
    %v1789 = vld [vmem:[#allocation6 + $0x98] sm:$0xff]
    %v1790 = vld [vmem:[#allocation6 + $0xa0] sm:$0xff]
    %v1791 = vld [vmem:[#allocation6 + $0xa8] sm:$0xff]
    %v1792 = vld [vmem:[#allocation6 + $0xb0] sm:$0xff]
    %v1793 = vld [vmem:[#allocation6 + $0xb8] sm:$0xff]
    %v1794 = vld [vmem:[#allocation6 + $0xc0] sm:$0xff]
    %v1795 = vld [vmem:[#allocation6 + $0xc8] sm:$0xff]
    %v1796 = vld [vmem:[#allocation6 + $0xd0] sm:$0xff]
    %v1797 = vld [vmem:[#allocation6 + $0xd8] sm:$0xff]
    %v1798 = vld [vmem:[#allocation6 + $0xe0] sm:$0xff]
    %v1799 = vld [vmem:[#allocation6 + $0xe8] sm:$0xff]
    %v1800 = vld [vmem:[#allocation6 + $0xf0] sm:$0xff]
    %v1801 = vld [vmem:[#allocation6 + $0xf8] sm:$0xff]
    %v1834 = vunpack.c.l.b16 %v1770
    %v1835 = vunpack.c.h.b16 %v1770
    %v1836 = vunpack.c.l.b16 %v1771
    %v1837 = vunpack.c.h.b16 %v1771
    %v1838 = vunpack.c.l.b16 %v1772
    %v1839 = vunpack.c.h.b16 %v1772
    %v1840 = vunpack.c.l.b16 %v1773
    %v1841 = vunpack.c.h.b16 %v1773
    %v1842 = vunpack.c.l.b16 %v1774
    %v1843 = vunpack.c.h.b16 %v1774
    %v1844 = vunpack.c.l.b16 %v1775
    %v1845 = vunpack.c.h.b16 %v1775
    %v1846 = vunpack.c.l.b16 %v1776
    %v1847 = vunpack.c.h.b16 %v1776
    %v1848 = vunpack.c.l.b16 %v1777
    %v1849 = vunpack.c.h.b16 %v1777
    %v1850 = vunpack.c.l.b16 %v1778
    %v1851 = vunpack.c.h.b16 %v1778
    %v1852 = vunpack.c.l.b16 %v1779
    %v1853 = vunpack.c.h.b16 %v1779
    %v1854 = vunpack.c.l.b16 %v1780
    %v1855 = vunpack.c.h.b16 %v1780
    %v1856 = vunpack.c.l.b16 %v1781
    %v1857 = vunpack.c.h.b16 %v1781
    %v1858 = vunpack.c.l.b16 %v1782
    %v1859 = vunpack.c.h.b16 %v1782
    %v1860 = vunpack.c.l.b16 %v1783
    %v1861 = vunpack.c.h.b16 %v1783
    %v1862 = vunpack.c.l.b16 %v1784
    %v1863 = vunpack.c.h.b16 %v1784
    %v1864 = vunpack.c.l.b16 %v1785
    %v1865 = vunpack.c.h.b16 %v1785
    %v1866 = vunpack.c.l.b16 %v1786
    %v1867 = vunpack.c.h.b16 %v1786
    %v1868 = vunpack.c.l.b16 %v1787
    %v1869 = vunpack.c.h.b16 %v1787
    %v1870 = vunpack.c.l.b16 %v1788
    %v1871 = vunpack.c.h.b16 %v1788
    %v1872 = vunpack.c.l.b16 %v1789
    %v1873 = vunpack.c.h.b16 %v1789
    %v1874 = vunpack.c.l.b16 %v1790
    %v1875 = vunpack.c.h.b16 %v1790
    %v1876 = vunpack.c.l.b16 %v1791
    %v1877 = vunpack.c.h.b16 %v1791
    %v1878 = vunpack.c.l.b16 %v1792
    %v1879 = vunpack.c.h.b16 %v1792
    %v1880 = vunpack.c.l.b16 %v1793
    %v1881 = vunpack.c.h.b16 %v1793
    %v1882 = vunpack.c.l.b16 %v1794
    %v1883 = vunpack.c.h.b16 %v1794
    %v1884 = vunpack.c.l.b16 %v1795
    %v1885 = vunpack.c.h.b16 %v1795
    %v1886 = vunpack.c.l.b16 %v1796
    %v1887 = vunpack.c.h.b16 %v1796
    %v1888 = vunpack.c.l.b16 %v1797
    %v1889 = vunpack.c.h.b16 %v1797
    %v1890 = vunpack.c.l.b16 %v1798
    %v1891 = vunpack.c.h.b16 %v1798
    %v1892 = vunpack.c.l.b16 %v1799
    %v1893 = vunpack.c.h.b16 %v1799
    %v1894 = vunpack.c.l.b16 %v1800
    %v1895 = vunpack.c.h.b16 %v1800
    %v1896 = vunpack.c.l.b16 %v1801
    %v1897 = vunpack.c.h.b16 %v1801
    %v1898 = vpack.c.b16 %v1838, %v1834
    %v1899 = vpack.c.b16 %v1839, %v1835
    %v1900 = vpack.c.b16 %v1840, %v1836
    %v1901 = vpack.c.b16 %v1841, %v1837
    %v1902 = vpack.c.b16 %v1846, %v1842
    %v1903 = vpack.c.b16 %v1847, %v1843
    %v1904 = vpack.c.b16 %v1848, %v1844
    %v1905 = vpack.c.b16 %v1849, %v1845
    %v1906 = vpack.c.b16 %v1854, %v1850
    %v1907 = vpack.c.b16 %v1855, %v1851
    %v1908 = vpack.c.b16 %v1856, %v1852
    %v1909 = vpack.c.b16 %v1857, %v1853
    %v1910 = vpack.c.b16 %v1862, %v1858
    %v1911 = vpack.c.b16 %v1863, %v1859
    %v1912 = vpack.c.b16 %v1864, %v1860
    %v1913 = vpack.c.b16 %v1865, %v1861
    %v1914 = vpack.c.b16 %v1870, %v1866
    %v1915 = vpack.c.b16 %v1871, %v1867
    %v1916 = vpack.c.b16 %v1872, %v1868
    %v1917 = vpack.c.b16 %v1873, %v1869
    %v1918 = vpack.c.b16 %v1878, %v1874
    %v1919 = vpack.c.b16 %v1879, %v1875
    %v1920 = vpack.c.b16 %v1880, %v1876
    %v1921 = vpack.c.b16 %v1881, %v1877
    %v1922 = vpack.c.b16 %v1886, %v1882
    %v1923 = vpack.c.b16 %v1887, %v1883
    %v1924 = vpack.c.b16 %v1888, %v1884
    %v1925 = vpack.c.b16 %v1889, %v1885
    %v1926 = vpack.c.b16 %v1894, %v1890
    %v1927 = vpack.c.b16 %v1895, %v1891
    %v1928 = vpack.c.b16 %v1896, %v1892
    %v1929 = vpack.c.b16 %v1897, %v1893
    %1962 = vmatprep.subr.bf16.mxu0 %v1927
    %1963 = vmatpush1.bf16.msra.mxu0 %v1926
    %1964 = vmatprep.subr.bf16.mxu0 %v1923
    %1965 = vmatpush1.bf16.msra.mxu0 %v1922
    %1966 = vmatprep.subr.bf16.mxu0 %v1919
    %1967 = vmatpush1.bf16.msra.mxu0 %v1918
    %1968 = vmatprep.subr.bf16.mxu0 %v1915
    %1969 = vmatpush1.bf16.msra.mxu0 %v1914
    %1970 = vmatprep.subr.bf16.mxu0 %v1911
    %1971 = vmatpush1.bf16.msra.mxu0 %v1910
    %1972 = vmatprep.subr.bf16.mxu0 %v1907
    %1973 = vmatpush1.bf16.msra.mxu0 %v1906
    %1974 = vmatprep.subr.bf16.mxu0 %v1903
    %1975 = vmatpush1.bf16.msra.mxu0 %v1902
    %1976 = vmatprep.subr.bf16.mxu0 %v1899
    %1977 = vmatpush1.bf16.msra.mxu0 %v1898
    %1978 = vmatprep.subr.bf16.mxu0 0
    %1979 = vmatpush2.bf16.msra.mxu0 0
    %1980 = vmatprep.subr.bf16.mxu0 0
    %1981 = vmatpush2.bf16.msra.mxu0 0
    %1982 = vmatprep.subr.bf16.mxu0 0
    %1983 = vmatpush2.bf16.msra.mxu0 0
    %1984 = vmatprep.subr.bf16.mxu0 0
    %1985 = vmatpush2.bf16.msra.mxu0 0
    %1986 = vmatprep.subr.bf16.mxu0 0
    %1987 = vmatpush2.bf16.msra.mxu0 0
    %1988 = vmatprep.subr.bf16.mxu0 0
    %1989 = vmatpush2.bf16.msra.mxu0 0
    %1990 = vmatprep.subr.bf16.mxu0 0
    %1991 = vmatpush2.bf16.msra.mxu0 0
    %1992 = vmatprep.subr.bf16.mxu0 0
    %1993 = vmatpush2.bf16.msra.mxu0 0
    %1994 = vmatprep.mubr.bf16.mxu0 0
    %1995 = vmatmul.mubr.bf16.gmra.mxu0 %v1769
    %v1996 = vpop.f32.mrf.mxu0
    %v1997 = vadd.f32 0.0, %v1996
    %v1998 = vpop.f32.mrf.mxu0
    %v1999 = vadd.f32 0.0, %v1998
    %v2000 = vpop.f32.mrf.mxu0
    %v2001 = vpop.f32.mrf.mxu0
    %2002 = vdwg.mxu0
    %2003 = vmatprep.subr.bf16.mxu0 %v1929
    %2004 = vmatpush1.bf16.msra.mxu0 %v1928
    %2005 = vmatprep.subr.bf16.mxu0 %v1925
    %2006 = vmatpush1.bf16.msra.mxu0 %v1924
    %2007 = vmatprep.subr.bf16.mxu0 %v1921
    %2008 = vmatpush1.bf16.msra.mxu0 %v1920
    %2009 = vmatprep.subr.bf16.mxu0 %v1917
    %2010 = vmatpush1.bf16.msra.mxu0 %v1916
    %2011 = vmatprep.subr.bf16.mxu0 %v1913
    %2012 = vmatpush1.bf16.msra.mxu0 %v1912
    %2013 = vmatprep.subr.bf16.mxu0 %v1909
    %2014 = vmatpush1.bf16.msra.mxu0 %v1908
    %2015 = vmatprep.subr.bf16.mxu0 %v1905
    %2016 = vmatpush1.bf16.msra.mxu0 %v1904
    %2017 = vmatprep.subr.bf16.mxu0 %v1901
    %2018 = vmatpush1.bf16.msra.mxu0 %v1900
    %2019 = vmatprep.subr.bf16.mxu0 0
    %2020 = vmatpush2.bf16.msra.mxu0 0
    %2021 = vmatprep.subr.bf16.mxu0 0
    %2022 = vmatpush2.bf16.msra.mxu0 0
    %2023 = vmatprep.subr.bf16.mxu0 0
    %2024 = vmatpush2.bf16.msra.mxu0 0
    %2025 = vmatprep.subr.bf16.mxu0 0
    %2026 = vmatpush2.bf16.msra.mxu0 0
    %2027 = vmatprep.subr.bf16.mxu0 0
    %2028 = vmatpush2.bf16.msra.mxu0 0
    %2029 = vmatprep.subr.bf16.mxu0 0
    %2030 = vmatpush2.bf16.msra.mxu0 0
    %2031 = vmatprep.subr.bf16.mxu0 0
    %2032 = vmatpush2.bf16.msra.mxu0 0
    %2033 = vmatprep.subr.bf16.mxu0 0
    %2034 = vmatpush2.bf16.msra.mxu0 0
    %2035 = vmatprep.mubr.bf16.mxu0 0
    %2036 = vmatmul.mubr.bf16.gmra.mxu0 %v1769
    %v2037 = vpop.f32.mrf.mxu0
    %v2038 = vadd.f32 0.0, %v2037
    %v2039 = vpop.f32.mrf.mxu0
    %v2040 = vadd.f32 0.0, %v2039
    %v2041 = vpop.f32.mrf.mxu0
    %v2042 = vpop.f32.mrf.mxu0
    %2043 = vdwg.mxu0
    %v2044 = vadd.f32 %v1765, %v1997
    %v2045 = vadd.f32 %v1766, %v1999
    %v2046 = vadd.f32 %v1767, %v2038
    %v2047 = vadd.f32 %v1768, %v2040
    %v2048 = vxor.u32 %v2044, 2147483648
    %v2049 = vxor.u32 %v2045, 2147483648
    %v2050 = vxor.u32 %v2046, 2147483648
    %v2051 = vmul.f32 %v2048, 1.442695
    %v2052 = vpow.pop %v2051
    %v2053 = vmul.f32 %v2049, 1.442695
    %v2054 = vpow.pop %v2053
    %v2055 = vmul.f32 %v2050, 1.442695
    %v2056 = vpow.pop %v2055
    %v2057 = vadd.f32 %v2052, 1.0
    %v2058 = vadd.f32 %v2054, 1.0
    %v2059 = vadd.f32 %v2056, 1.0
    %v2060 = vrcp.pop %v2057
    %v2061 = vmul.f32 1.0, %v2060
    %v2062 = vrcp.pop %v2058
    %v2063 = vmul.f32 1.0, %v2062
    %v2064 = vrcp.pop %v2059
    %v2065 = vmul.f32 1.0, %v2064
    %v2066 = vtanh.pop %v2047
    %v2067 = vmul.f32 %v2063, %v1754
    %v2068 = vmul.f32 %v2061, %v2066
    %v2069 = vadd.f32 %v2067, %v2068
    %v2070 = vtanh.pop %v2069
    %v2071 = vmul.f32 %v2065, %v2070
    %v2072 = vxor.u32 %v2071, 2147483648
    %v2073 = vmul.f32 %v2072, 1.442695
    %v2074 = vpow.pop %v2073
    %v2075 = vadd.f32 %v2074, 1.0
    %v2076 = vrcp.pop %v2075
    %v2077 = vmul.f32 1.0, %v2076
    %v2078 = vpack.c.bf16 %v2077, %v2077
    %2079 = vst [vmem:[#allocation3 + $0x10] sm:$0xf] %v2078
    %v2080 = vld [vmem:[#allocation2 + $0xa0] sm:$0xff]
    %v2081 = vld [vmem:[#allocation2 + $0xa8] sm:$0xff]
    %v2082 = vld [vmem:[#allocation2 + $0xb0] sm:$0xff]
    %v2083 = vld [vmem:[#allocation2 + $0xb8] sm:$0xff]
    %v2084 = vpack.c.bf16 %v2071, %v2071
    %v2085 = vld [vmem:[#allocation6] sm:$0xff]
    %v2086 = vld [vmem:[#allocation6 + $0x8] sm:$0xff]
    %v2087 = vld [vmem:[#allocation6 + $0x10] sm:$0xff]
    %v2088 = vld [vmem:[#allocation6 + $0x18] sm:$0xff]
    %v2089 = vld [vmem:[#allocation6 + $0x20] sm:$0xff]
    %v2090 = vld [vmem:[#allocation6 + $0x28] sm:$0xff]
    %v2091 = vld [vmem:[#allocation6 + $0x30] sm:$0xff]
    %v2092 = vld [vmem:[#allocation6 + $0x38] sm:$0xff]
    %v2093 = vld [vmem:[#allocation6 + $0x40] sm:$0xff]
    %v2094 = vld [vmem:[#allocation6 + $0x48] sm:$0xff]
    %v2095 = vld [vmem:[#allocation6 + $0x50] sm:$0xff]
    %v2096 = vld [vmem:[#allocation6 + $0x58] sm:$0xff]
    %v2097 = vld [vmem:[#allocation6 + $0x60] sm:$0xff]
    %v2098 = vld [vmem:[#allocation6 + $0x68] sm:$0xff]
    %v2099 = vld [vmem:[#allocation6 + $0x70] sm:$0xff]
    %v2100 = vld [vmem:[#allocation6 + $0x78] sm:$0xff]
    %v2101 = vld [vmem:[#allocation6 + $0x80] sm:$0xff]
    %v2102 = vld [vmem:[#allocation6 + $0x88] sm:$0xff]
    %v2103 = vld [vmem:[#allocation6 + $0x90] sm:$0xff]
    %v2104 = vld [vmem:[#allocation6 + $0x98] sm:$0xff]
    %v2105 = vld [vmem:[#allocation6 + $0xa0] sm:$0xff]
    %v2106 = vld [vmem:[#allocation6 + $0xa8] sm:$0xff]
    %v2107 = vld [vmem:[#allocation6 + $0xb0] sm:$0xff]
    %v2108 = vld [vmem:[#allocation6 + $0xb8] sm:$0xff]
    %v2109 = vld [vmem:[#allocation6 + $0xc0] sm:$0xff]
    %v2110 = vld [vmem:[#allocation6 + $0xc8] sm:$0xff]
    %v2111 = vld [vmem:[#allocation6 + $0xd0] sm:$0xff]
    %v2112 = vld [vmem:[#allocation6 + $0xd8] sm:$0xff]
    %v2113 = vld [vmem:[#allocation6 + $0xe0] sm:$0xff]
    %v2114 = vld [vmem:[#allocation6 + $0xe8] sm:$0xff]
    %v2115 = vld [vmem:[#allocation6 + $0xf0] sm:$0xff]
    %v2116 = vld [vmem:[#allocation6 + $0xf8] sm:$0xff]
    %v2149 = vunpack.c.l.b16 %v2085
    %v2150 = vunpack.c.h.b16 %v2085
    %v2151 = vunpack.c.l.b16 %v2086
    %v2152 = vunpack.c.h.b16 %v2086
    %v2153 = vunpack.c.l.b16 %v2087
    %v2154 = vunpack.c.h.b16 %v2087
    %v2155 = vunpack.c.l.b16 %v2088
    %v2156 = vunpack.c.h.b16 %v2088
    %v2157 = vunpack.c.l.b16 %v2089
    %v2158 = vunpack.c.h.b16 %v2089
    %v2159 = vunpack.c.l.b16 %v2090
    %v2160 = vunpack.c.h.b16 %v2090
    %v2161 = vunpack.c.l.b16 %v2091
    %v2162 = vunpack.c.h.b16 %v2091
    %v2163 = vunpack.c.l.b16 %v2092
    %v2164 = vunpack.c.h.b16 %v2092
    %v2165 = vunpack.c.l.b16 %v2093
    %v2166 = vunpack.c.h.b16 %v2093
    %v2167 = vunpack.c.l.b16 %v2094
    %v2168 = vunpack.c.h.b16 %v2094
    %v2169 = vunpack.c.l.b16 %v2095
    %v2170 = vunpack.c.h.b16 %v2095
    %v2171 = vunpack.c.l.b16 %v2096
    %v2172 = vunpack.c.h.b16 %v2096
    %v2173 = vunpack.c.l.b16 %v2097
    %v2174 = vunpack.c.h.b16 %v2097
    %v2175 = vunpack.c.l.b16 %v2098
    %v2176 = vunpack.c.h.b16 %v2098
    %v2177 = vunpack.c.l.b16 %v2099
    %v2178 = vunpack.c.h.b16 %v2099
    %v2179 = vunpack.c.l.b16 %v2100
    %v2180 = vunpack.c.h.b16 %v2100
    %v2181 = vunpack.c.l.b16 %v2101
    %v2182 = vunpack.c.h.b16 %v2101
    %v2183 = vunpack.c.l.b16 %v2102
    %v2184 = vunpack.c.h.b16 %v2102
    %v2185 = vunpack.c.l.b16 %v2103
    %v2186 = vunpack.c.h.b16 %v2103
    %v2187 = vunpack.c.l.b16 %v2104
    %v2188 = vunpack.c.h.b16 %v2104
    %v2189 = vunpack.c.l.b16 %v2105
    %v2190 = vunpack.c.h.b16 %v2105
    %v2191 = vunpack.c.l.b16 %v2106
    %v2192 = vunpack.c.h.b16 %v2106
    %v2193 = vunpack.c.l.b16 %v2107
    %v2194 = vunpack.c.h.b16 %v2107
    %v2195 = vunpack.c.l.b16 %v2108
    %v2196 = vunpack.c.h.b16 %v2108
    %v2197 = vunpack.c.l.b16 %v2109
    %v2198 = vunpack.c.h.b16 %v2109
    %v2199 = vunpack.c.l.b16 %v2110
    %v2200 = vunpack.c.h.b16 %v2110
    %v2201 = vunpack.c.l.b16 %v2111
    %v2202 = vunpack.c.h.b16 %v2111
    %v2203 = vunpack.c.l.b16 %v2112
    %v2204 = vunpack.c.h.b16 %v2112
    %v2205 = vunpack.c.l.b16 %v2113
    %v2206 = vunpack.c.h.b16 %v2113
    %v2207 = vunpack.c.l.b16 %v2114
    %v2208 = vunpack.c.h.b16 %v2114
    %v2209 = vunpack.c.l.b16 %v2115
    %v2210 = vunpack.c.h.b16 %v2115
    %v2211 = vunpack.c.l.b16 %v2116
    %v2212 = vunpack.c.h.b16 %v2116
    %v2213 = vpack.c.b16 %v2153, %v2149
    %v2214 = vpack.c.b16 %v2154, %v2150
    %v2215 = vpack.c.b16 %v2155, %v2151
    %v2216 = vpack.c.b16 %v2156, %v2152
    %v2217 = vpack.c.b16 %v2161, %v2157
    %v2218 = vpack.c.b16 %v2162, %v2158
    %v2219 = vpack.c.b16 %v2163, %v2159
    %v2220 = vpack.c.b16 %v2164, %v2160
    %v2221 = vpack.c.b16 %v2169, %v2165
    %v2222 = vpack.c.b16 %v2170, %v2166
    %v2223 = vpack.c.b16 %v2171, %v2167
    %v2224 = vpack.c.b16 %v2172, %v2168
    %v2225 = vpack.c.b16 %v2177, %v2173
    %v2226 = vpack.c.b16 %v2178, %v2174
    %v2227 = vpack.c.b16 %v2179, %v2175
    %v2228 = vpack.c.b16 %v2180, %v2176
    %v2229 = vpack.c.b16 %v2185, %v2181
    %v2230 = vpack.c.b16 %v2186, %v2182
    %v2231 = vpack.c.b16 %v2187, %v2183
    %v2232 = vpack.c.b16 %v2188, %v2184
    %v2233 = vpack.c.b16 %v2193, %v2189
    %v2234 = vpack.c.b16 %v2194, %v2190
    %v2235 = vpack.c.b16 %v2195, %v2191
    %v2236 = vpack.c.b16 %v2196, %v2192
    %v2237 = vpack.c.b16 %v2201, %v2197
    %v2238 = vpack.c.b16 %v2202, %v2198
    %v2239 = vpack.c.b16 %v2203, %v2199
    %v2240 = vpack.c.b16 %v2204, %v2200
    %v2241 = vpack.c.b16 %v2209, %v2205
    %v2242 = vpack.c.b16 %v2210, %v2206
    %v2243 = vpack.c.b16 %v2211, %v2207
    %v2244 = vpack.c.b16 %v2212, %v2208
    %2277 = vmatprep.subr.bf16.mxu0 %v2242
    %2278 = vmatpush1.bf16.msra.mxu0 %v2241
    %2279 = vmatprep.subr.bf16.mxu0 %v2238
    %2280 = vmatpush1.bf16.msra.mxu0 %v2237
    %2281 = vmatprep.subr.bf16.mxu0 %v2234
    %2282 = vmatpush1.bf16.msra.mxu0 %v2233
    %2283 = vmatprep.subr.bf16.mxu0 %v2230
    %2284 = vmatpush1.bf16.msra.mxu0 %v2229
    %2285 = vmatprep.subr.bf16.mxu0 %v2226
    %2286 = vmatpush1.bf16.msra.mxu0 %v2225
    %2287 = vmatprep.subr.bf16.mxu0 %v2222
    %2288 = vmatpush1.bf16.msra.mxu0 %v2221
    %2289 = vmatprep.subr.bf16.mxu0 %v2218
    %2290 = vmatpush1.bf16.msra.mxu0 %v2217
    %2291 = vmatprep.subr.bf16.mxu0 %v2214
    %2292 = vmatpush1.bf16.msra.mxu0 %v2213
    %2293 = vmatprep.subr.bf16.mxu0 0
    %2294 = vmatpush2.bf16.msra.mxu0 0
    %2295 = vmatprep.subr.bf16.mxu0 0
    %2296 = vmatpush2.bf16.msra.mxu0 0
    %2297 = vmatprep.subr.bf16.mxu0 0
    %2298 = vmatpush2.bf16.msra.mxu0 0
    %2299 = vmatprep.subr.bf16.mxu0 0
    %2300 = vmatpush2.bf16.msra.mxu0 0
    %2301 = vmatprep.subr.bf16.mxu0 0
    %2302 = vmatpush2.bf16.msra.mxu0 0
    %2303 = vmatprep.subr.bf16.mxu0 0
    %2304 = vmatpush2.bf16.msra.mxu0 0
    %2305 = vmatprep.subr.bf16.mxu0 0
    %2306 = vmatpush2.bf16.msra.mxu0 0
    %2307 = vmatprep.subr.bf16.mxu0 0
    %2308 = vmatpush2.bf16.msra.mxu0 0
    %2309 = vmatprep.mubr.bf16.mxu0 0
    %2310 = vmatmul.mubr.bf16.gmra.mxu0 %v2084
    %v2311 = vpop.f32.mrf.mxu0
    %v2312 = vadd.f32 0.0, %v2311
    %v2313 = vpop.f32.mrf.mxu0
    %v2314 = vadd.f32 0.0, %v2313
    %v2315 = vpop.f32.mrf.mxu0
    %v2316 = vpop.f32.mrf.mxu0
    %2317 = vdwg.mxu0
    %2318 = vmatprep.subr.bf16.mxu0 %v2244
    %2319 = vmatpush1.bf16.msra.mxu0 %v2243
    %2320 = vmatprep.subr.bf16.mxu0 %v2240
    %2321 = vmatpush1.bf16.msra.mxu0 %v2239
    %2322 = vmatprep.subr.bf16.mxu0 %v2236
    %2323 = vmatpush1.bf16.msra.mxu0 %v2235
    %2324 = vmatprep.subr.bf16.mxu0 %v2232
    %2325 = vmatpush1.bf16.msra.mxu0 %v2231
    %2326 = vmatprep.subr.bf16.mxu0 %v2228
    %2327 = vmatpush1.bf16.msra.mxu0 %v2227
    %2328 = vmatprep.subr.bf16.mxu0 %v2224
    %2329 = vmatpush1.bf16.msra.mxu0 %v2223
    %2330 = vmatprep.subr.bf16.mxu0 %v2220
    %2331 = vmatpush1.bf16.msra.mxu0 %v2219
    %2332 = vmatprep.subr.bf16.mxu0 %v2216
    %2333 = vmatpush1.bf16.msra.mxu0 %v2215
    %2334 = vmatprep.subr.bf16.mxu0 0
    %2335 = vmatpush2.bf16.msra.mxu0 0
    %2336 = vmatprep.subr.bf16.mxu0 0
    %2337 = vmatpush2.bf16.msra.mxu0 0
    %2338 = vmatprep.subr.bf16.mxu0 0
    %2339 = vmatpush2.bf16.msra.mxu0 0
    %2340 = vmatprep.subr.bf16.mxu0 0
    %2341 = vmatpush2.bf16.msra.mxu0 0
    %2342 = vmatprep.subr.bf16.mxu0 0
    %2343 = vmatpush2.bf16.msra.mxu0 0
    %2344 = vmatprep.subr.bf16.mxu0 0
    %2345 = vmatpush2.bf16.msra.mxu0 0
    %2346 = vmatprep.subr.bf16.mxu0 0
    %2347 = vmatpush2.bf16.msra.mxu0 0
    %2348 = vmatprep.subr.bf16.mxu0 0
    %2349 = vmatpush2.bf16.msra.mxu0 0
    %2350 = vmatprep.mubr.bf16.mxu0 0
    %2351 = vmatmul.mubr.bf16.gmra.mxu0 %v2084
    %v2352 = vpop.f32.mrf.mxu0
    %v2353 = vadd.f32 0.0, %v2352
    %v2354 = vpop.f32.mrf.mxu0
    %v2355 = vadd.f32 0.0, %v2354
    %v2356 = vpop.f32.mrf.mxu0
    %v2357 = vpop.f32.mrf.mxu0
    %2358 = vdwg.mxu0
    %v2359 = vadd.f32 %v2080, %v2312
    %v2360 = vadd.f32 %v2081, %v2314
    %v2361 = vadd.f32 %v2082, %v2353
    %v2362 = vadd.f32 %v2083, %v2355
    %v2363 = vxor.u32 %v2359, 2147483648
    %v2364 = vxor.u32 %v2360, 2147483648
    %v2365 = vxor.u32 %v2361, 2147483648
    %v2366 = vmul.f32 %v2363, 1.442695
    %v2367 = vpow.pop %v2366
    %v2368 = vmul.f32 %v2364, 1.442695
    %v2369 = vpow.pop %v2368
    %v2370 = vmul.f32 %v2365, 1.442695
    %v2371 = vpow.pop %v2370
    %v2372 = vadd.f32 %v2367, 1.0
    %v2373 = vadd.f32 %v2369, 1.0
    %v2374 = vadd.f32 %v2371, 1.0
    %v2375 = vrcp.pop %v2372
    %v2376 = vmul.f32 1.0, %v2375
    %v2377 = vrcp.pop %v2373
    %v2378 = vmul.f32 1.0, %v2377
    %v2379 = vrcp.pop %v2374
    %v2380 = vmul.f32 1.0, %v2379
    %v2381 = vtanh.pop %v2362
    %v2382 = vmul.f32 %v2378, %v2069
    %v2383 = vmul.f32 %v2376, %v2381
    %v2384 = vadd.f32 %v2382, %v2383
    %v2385 = vtanh.pop %v2384
    %v2386 = vmul.f32 %v2380, %v2385
    %v2387 = vxor.u32 %v2386, 2147483648
    %v2388 = vmul.f32 %v2387, 1.442695
    %v2389 = vpow.pop %v2388
    %v2390 = vadd.f32 %v2389, 1.0
    %v2391 = vrcp.pop %v2390
    %v2392 = vmul.f32 1.0, %v2391
    %v2393 = vpack.c.bf16 %v2392, %v2392
    %2394 = vst [vmem:[#allocation3 + $0x14] sm:$0xf] %v2393
    %v2395 = vld [vmem:[#allocation2 + $0xc0] sm:$0xff]
    %v2396 = vld [vmem:[#allocation2 + $0xc8] sm:$0xff]
    %v2397 = vld [vmem:[#allocation2 + $0xd0] sm:$0xff]
    %v2398 = vld [vmem:[#allocation2 + $0xd8] sm:$0xff]
    %v2399 = vpack.c.bf16 %v2386, %v2386
    %v2400 = vld [vmem:[#allocation6] sm:$0xff]
    %v2401 = vld [vmem:[#allocation6 + $0x8] sm:$0xff]
    %v2402 = vld [vmem:[#allocation6 + $0x10] sm:$0xff]
    %v2403 = vld [vmem:[#allocation6 + $0x18] sm:$0xff]
    %v2404 = vld [vmem:[#allocation6 + $0x20] sm:$0xff]
    %v2405 = vld [vmem:[#allocation6 + $0x28] sm:$0xff]
    %v2406 = vld [vmem:[#allocation6 + $0x30] sm:$0xff]
    %v2407 = vld [vmem:[#allocation6 + $0x38] sm:$0xff]
    %v2408 = vld [vmem:[#allocation6 + $0x40] sm:$0xff]
    %v2409 = vld [vmem:[#allocation6 + $0x48] sm:$0xff]
    %v2410 = vld [vmem:[#allocation6 + $0x50] sm:$0xff]
    %v2411 = vld [vmem:[#allocation6 + $0x58] sm:$0xff]
    %v2412 = vld [vmem:[#allocation6 + $0x60] sm:$0xff]
    %v2413 = vld [vmem:[#allocation6 + $0x68] sm:$0xff]
    %v2414 = vld [vmem:[#allocation6 + $0x70] sm:$0xff]
    %v2415 = vld [vmem:[#allocation6 + $0x78] sm:$0xff]
    %v2416 = vld [vmem:[#allocation6 + $0x80] sm:$0xff]
    %v2417 = vld [vmem:[#allocation6 + $0x88] sm:$0xff]
    %v2418 = vld [vmem:[#allocation6 + $0x90] sm:$0xff]
    %v2419 = vld [vmem:[#allocation6 + $0x98] sm:$0xff]
    %v2420 = vld [vmem:[#allocation6 + $0xa0] sm:$0xff]
    %v2421 = vld [vmem:[#allocation6 + $0xa8] sm:$0xff]
    %v2422 = vld [vmem:[#allocation6 + $0xb0] sm:$0xff]
    %v2423 = vld [vmem:[#allocation6 + $0xb8] sm:$0xff]
    %v2424 = vld [vmem:[#allocation6 + $0xc0] sm:$0xff]
    %v2425 = vld [vmem:[#allocation6 + $0xc8] sm:$0xff]
    %v2426 = vld [vmem:[#allocation6 + $0xd0] sm:$0xff]
    %v2427 = vld [vmem:[#allocation6 + $0xd8] sm:$0xff]
    %v2428 = vld [vmem:[#allocation6 + $0xe0] sm:$0xff]
    %v2429 = vld [vmem:[#allocation6 + $0xe8] sm:$0xff]
    %v2430 = vld [vmem:[#allocation6 + $0xf0] sm:$0xff]
    %v2431 = vld [vmem:[#allocation6 + $0xf8] sm:$0xff]
    %v2464 = vunpack.c.l.b16 %v2400
    %v2465 = vunpack.c.h.b16 %v2400
    %v2466 = vunpack.c.l.b16 %v2401
    %v2467 = vunpack.c.h.b16 %v2401
    %v2468 = vunpack.c.l.b16 %v2402
    %v2469 = vunpack.c.h.b16 %v2402
    %v2470 = vunpack.c.l.b16 %v2403
    %v2471 = vunpack.c.h.b16 %v2403
    %v2472 = vunpack.c.l.b16 %v2404
    %v2473 = vunpack.c.h.b16 %v2404
    %v2474 = vunpack.c.l.b16 %v2405
    %v2475 = vunpack.c.h.b16 %v2405
    %v2476 = vunpack.c.l.b16 %v2406
    %v2477 = vunpack.c.h.b16 %v2406
    %v2478 = vunpack.c.l.b16 %v2407
    %v2479 = vunpack.c.h.b16 %v2407
    %v2480 = vunpack.c.l.b16 %v2408
    %v2481 = vunpack.c.h.b16 %v2408
    %v2482 = vunpack.c.l.b16 %v2409
    %v2483 = vunpack.c.h.b16 %v2409
    %v2484 = vunpack.c.l.b16 %v2410
    %v2485 = vunpack.c.h.b16 %v2410
    %v2486 = vunpack.c.l.b16 %v2411
    %v2487 = vunpack.c.h.b16 %v2411
    %v2488 = vunpack.c.l.b16 %v2412
    %v2489 = vunpack.c.h.b16 %v2412
    %v2490 = vunpack.c.l.b16 %v2413
    %v2491 = vunpack.c.h.b16 %v2413
    %v2492 = vunpack.c.l.b16 %v2414
    %v2493 = vunpack.c.h.b16 %v2414
    %v2494 = vunpack.c.l.b16 %v2415
    %v2495 = vunpack.c.h.b16 %v2415
    %v2496 = vunpack.c.l.b16 %v2416
    %v2497 = vunpack.c.h.b16 %v2416
    %v2498 = vunpack.c.l.b16 %v2417
    %v2499 = vunpack.c.h.b16 %v2417
    %v2500 = vunpack.c.l.b16 %v2418
    %v2501 = vunpack.c.h.b16 %v2418
    %v2502 = vunpack.c.l.b16 %v2419
    %v2503 = vunpack.c.h.b16 %v2419
    %v2504 = vunpack.c.l.b16 %v2420
    %v2505 = vunpack.c.h.b16 %v2420
    %v2506 = vunpack.c.l.b16 %v2421
    %v2507 = vunpack.c.h.b16 %v2421
    %v2508 = vunpack.c.l.b16 %v2422
    %v2509 = vunpack.c.h.b16 %v2422
    %v2510 = vunpack.c.l.b16 %v2423
    %v2511 = vunpack.c.h.b16 %v2423
    %v2512 = vunpack.c.l.b16 %v2424
    %v2513 = vunpack.c.h.b16 %v2424
    %v2514 = vunpack.c.l.b16 %v2425
    %v2515 = vunpack.c.h.b16 %v2425
    %v2516 = vunpack.c.l.b16 %v2426
    %v2517 = vunpack.c.h.b16 %v2426
    %v2518 = vunpack.c.l.b16 %v2427
    %v2519 = vunpack.c.h.b16 %v2427
    %v2520 = vunpack.c.l.b16 %v2428
    %v2521 = vunpack.c.h.b16 %v2428
    %v2522 = vunpack.c.l.b16 %v2429
    %v2523 = vunpack.c.h.b16 %v2429
    %v2524 = vunpack.c.l.b16 %v2430
    %v2525 = vunpack.c.h.b16 %v2430
    %v2526 = vunpack.c.l.b16 %v2431
    %v2527 = vunpack.c.h.b16 %v2431
    %v2528 = vpack.c.b16 %v2468, %v2464
    %v2529 = vpack.c.b16 %v2469, %v2465
    %v2530 = vpack.c.b16 %v2470, %v2466
    %v2531 = vpack.c.b16 %v2471, %v2467
    %v2532 = vpack.c.b16 %v2476, %v2472
    %v2533 = vpack.c.b16 %v2477, %v2473
    %v2534 = vpack.c.b16 %v2478, %v2474
    %v2535 = vpack.c.b16 %v2479, %v2475
    %v2536 = vpack.c.b16 %v2484, %v2480
    %v2537 = vpack.c.b16 %v2485, %v2481
    %v2538 = vpack.c.b16 %v2486, %v2482
    %v2539 = vpack.c.b16 %v2487, %v2483
    %v2540 = vpack.c.b16 %v2492, %v2488
    %v2541 = vpack.c.b16 %v2493, %v2489
    %v2542 = vpack.c.b16 %v2494, %v2490
    %v2543 = vpack.c.b16 %v2495, %v2491
    %v2544 = vpack.c.b16 %v2500, %v2496
    %v2545 = vpack.c.b16 %v2501, %v2497
    %v2546 = vpack.c.b16 %v2502, %v2498
    %v2547 = vpack.c.b16 %v2503, %v2499
    %v2548 = vpack.c.b16 %v2508, %v2504
    %v2549 = vpack.c.b16 %v2509, %v2505
    %v2550 = vpack.c.b16 %v2510, %v2506
    %v2551 = vpack.c.b16 %v2511, %v2507
    %v2552 = vpack.c.b16 %v2516, %v2512
    %v2553 = vpack.c.b16 %v2517, %v2513
    %v2554 = vpack.c.b16 %v2518, %v2514
    %v2555 = vpack.c.b16 %v2519, %v2515
    %v2556 = vpack.c.b16 %v2524, %v2520
    %v2557 = vpack.c.b16 %v2525, %v2521
    %v2558 = vpack.c.b16 %v2526, %v2522
    %v2559 = vpack.c.b16 %v2527, %v2523
    %2592 = vmatprep.subr.bf16.mxu0 %v2557
    %2593 = vmatpush1.bf16.msra.mxu0 %v2556
    %2594 = vmatprep.subr.bf16.mxu0 %v2553
    %2595 = vmatpush1.bf16.msra.mxu0 %v2552
    %2596 = vmatprep.subr.bf16.mxu0 %v2549
    %2597 = vmatpush1.bf16.msra.mxu0 %v2548
    %2598 = vmatprep.subr.bf16.mxu0 %v2545
    %2599 = vmatpush1.bf16.msra.mxu0 %v2544
    %2600 = vmatprep.subr.bf16.mxu0 %v2541
    %2601 = vmatpush1.bf16.msra.mxu0 %v2540
    %2602 = vmatprep.subr.bf16.mxu0 %v2537
    %2603 = vmatpush1.bf16.msra.mxu0 %v2536
    %2604 = vmatprep.subr.bf16.mxu0 %v2533
    %2605 = vmatpush1.bf16.msra.mxu0 %v2532
    %2606 = vmatprep.subr.bf16.mxu0 %v2529
    %2607 = vmatpush1.bf16.msra.mxu0 %v2528
    %2608 = vmatprep.subr.bf16.mxu0 0
    %2609 = vmatpush2.bf16.msra.mxu0 0
    %2610 = vmatprep.subr.bf16.mxu0 0
    %2611 = vmatpush2.bf16.msra.mxu0 0
    %2612 = vmatprep.subr.bf16.mxu0 0
    %2613 = vmatpush2.bf16.msra.mxu0 0
    %2614 = vmatprep.subr.bf16.mxu0 0
    %2615 = vmatpush2.bf16.msra.mxu0 0
    %2616 = vmatprep.subr.bf16.mxu0 0
    %2617 = vmatpush2.bf16.msra.mxu0 0
    %2618 = vmatprep.subr.bf16.mxu0 0
    %2619 = vmatpush2.bf16.msra.mxu0 0
    %2620 = vmatprep.subr.bf16.mxu0 0
    %2621 = vmatpush2.bf16.msra.mxu0 0
    %2622 = vmatprep.subr.bf16.mxu0 0
    %2623 = vmatpush2.bf16.msra.mxu0 0
    %2624 = vmatprep.mubr.bf16.mxu0 0
    %2625 = vmatmul.mubr.bf16.gmra.mxu0 %v2399
    %v2626 = vpop.f32.mrf.mxu0
    %v2627 = vadd.f32 0.0, %v2626
    %v2628 = vpop.f32.mrf.mxu0
    %v2629 = vadd.f32 0.0, %v2628
    %v2630 = vpop.f32.mrf.mxu0
    %v2631 = vpop.f32.mrf.mxu0
    %2632 = vdwg.mxu0
    %2633 = vmatprep.subr.bf16.mxu0 %v2559
    %2634 = vmatpush1.bf16.msra.mxu0 %v2558
    %2635 = vmatprep.subr.bf16.mxu0 %v2555
    %2636 = vmatpush1.bf16.msra.mxu0 %v2554
    %2637 = vmatprep.subr.bf16.mxu0 %v2551
    %2638 = vmatpush1.bf16.msra.mxu0 %v2550
    %2639 = vmatprep.subr.bf16.mxu0 %v2547
    %2640 = vmatpush1.bf16.msra.mxu0 %v2546
    %2641 = vmatprep.subr.bf16.mxu0 %v2543
    %2642 = vmatpush1.bf16.msra.mxu0 %v2542
    %2643 = vmatprep.subr.bf16.mxu0 %v2539
    %2644 = vmatpush1.bf16.msra.mxu0 %v2538
    %2645 = vmatprep.subr.bf16.mxu0 %v2535
    %2646 = vmatpush1.bf16.msra.mxu0 %v2534
    %2647 = vmatprep.subr.bf16.mxu0 %v2531
    %2648 = vmatpush1.bf16.msra.mxu0 %v2530
    %2649 = vmatprep.subr.bf16.mxu0 0
    %2650 = vmatpush2.bf16.msra.mxu0 0
    %2651 = vmatprep.subr.bf16.mxu0 0
    %2652 = vmatpush2.bf16.msra.mxu0 0
    %2653 = vmatprep.subr.bf16.mxu0 0
    %2654 = vmatpush2.bf16.msra.mxu0 0
    %2655 = vmatprep.subr.bf16.mxu0 0
    %2656 = vmatpush2.bf16.msra.mxu0 0
    %2657 = vmatprep.subr.bf16.mxu0 0
    %2658 = vmatpush2.bf16.msra.mxu0 0
    %2659 = vmatprep.subr.bf16.mxu0 0
    %2660 = vmatpush2.bf16.msra.mxu0 0
    %2661 = vmatprep.subr.bf16.mxu0 0
    %2662 = vmatpush2.bf16.msra.mxu0 0
    %2663 = vmatprep.subr.bf16.mxu0 0
    %2664 = vmatpush2.bf16.msra.mxu0 0
    %2665 = vmatprep.mubr.bf16.mxu0 0
    %2666 = vmatmul.mubr.bf16.gmra.mxu0 %v2399
    %v2667 = vpop.f32.mrf.mxu0
    %v2668 = vadd.f32 0.0, %v2667
    %v2669 = vpop.f32.mrf.mxu0
    %v2670 = vadd.f32 0.0, %v2669
    %v2671 = vpop.f32.mrf.mxu0
    %v2672 = vpop.f32.mrf.mxu0
    %2673 = vdwg.mxu0
    %v2674 = vadd.f32 %v2395, %v2627
    %v2675 = vadd.f32 %v2396, %v2629
    %v2676 = vadd.f32 %v2397, %v2668
    %v2677 = vadd.f32 %v2398, %v2670
    %v2678 = vxor.u32 %v2674, 2147483648
    %v2679 = vxor.u32 %v2675, 2147483648
    %v2680 = vxor.u32 %v2676, 2147483648
    %v2681 = vmul.f32 %v2678, 1.442695
    %v2682 = vpow.pop %v2681
    %v2683 = vmul.f32 %v2679, 1.442695
    %v2684 = vpow.pop %v2683
    %v2685 = vmul.f32 %v2680, 1.442695
    %v2686 = vpow.pop %v2685
    %v2687 = vadd.f32 %v2682, 1.0
    %v2688 = vadd.f32 %v2684, 1.0
    %v2689 = vadd.f32 %v2686, 1.0
    %v2690 = vrcp.pop %v2687
    %v2691 = vmul.f32 1.0, %v2690
    %v2692 = vrcp.pop %v2688
    %v2693 = vmul.f32 1.0, %v2692
    %v2694 = vrcp.pop %v2689
    %v2695 = vmul.f32 1.0, %v2694
    %v2696 = vtanh.pop %v2677
    %v2697 = vmul.f32 %v2693, %v2384
    %v2698 = vmul.f32 %v2691, %v2696
    %v2699 = vadd.f32 %v2697, %v2698
    %v2700 = vtanh.pop %v2699
    %v2701 = vmul.f32 %v2695, %v2700
    %v2702 = vxor.u32 %v2701, 2147483648
    %v2703 = vmul.f32 %v2702, 1.442695
    %v2704 = vpow.pop %v2703
    %v2705 = vadd.f32 %v2704, 1.0
    %v2706 = vrcp.pop %v2705
    %v2707 = vmul.f32 1.0, %v2706
    %v2708 = vpack.c.bf16 %v2707, %v2707
    %2709 = vst [vmem:[#allocation3 + $0x18] sm:$0xf] %v2708
    %v2710 = vld [vmem:[#allocation2 + $0xe0] sm:$0xff]
    %v2711 = vld [vmem:[#allocation2 + $0xe8] sm:$0xff]
    %v2712 = vld [vmem:[#allocation2 + $0xf0] sm:$0xff]
    %v2713 = vld [vmem:[#allocation2 + $0xf8] sm:$0xff]
    %v2714 = vpack.c.bf16 %v2701, %v2701
    %v2715 = vld [vmem:[#allocation6] sm:$0xff]
    %v2716 = vld [vmem:[#allocation6 + $0x8] sm:$0xff]
    %v2717 = vld [vmem:[#allocation6 + $0x10] sm:$0xff]
    %v2718 = vld [vmem:[#allocation6 + $0x18] sm:$0xff]
    %v2719 = vld [vmem:[#allocation6 + $0x20] sm:$0xff]
    %v2720 = vld [vmem:[#allocation6 + $0x28] sm:$0xff]
    %v2721 = vld [vmem:[#allocation6 + $0x30] sm:$0xff]
    %v2722 = vld [vmem:[#allocation6 + $0x38] sm:$0xff]
    %v2723 = vld [vmem:[#allocation6 + $0x40] sm:$0xff]
    %v2724 = vld [vmem:[#allocation6 + $0x48] sm:$0xff]
    %v2725 = vld [vmem:[#allocation6 + $0x50] sm:$0xff]
    %v2726 = vld [vmem:[#allocation6 + $0x58] sm:$0xff]
    %v2727 = vld [vmem:[#allocation6 + $0x60] sm:$0xff]
    %v2728 = vld [vmem:[#allocation6 + $0x68] sm:$0xff]
    %v2729 = vld [vmem:[#allocation6 + $0x70] sm:$0xff]
    %v2730 = vld [vmem:[#allocation6 + $0x78] sm:$0xff]
    %v2731 = vld [vmem:[#allocation6 + $0x80] sm:$0xff]
    %v2732 = vld [vmem:[#allocation6 + $0x88] sm:$0xff]
    %v2733 = vld [vmem:[#allocation6 + $0x90] sm:$0xff]
    %v2734 = vld [vmem:[#allocation6 + $0x98] sm:$0xff]
    %v2735 = vld [vmem:[#allocation6 + $0xa0] sm:$0xff]
    %v2736 = vld [vmem:[#allocation6 + $0xa8] sm:$0xff]
    %v2737 = vld [vmem:[#allocation6 + $0xb0] sm:$0xff]
    %v2738 = vld [vmem:[#allocation6 + $0xb8] sm:$0xff]
    %v2739 = vld [vmem:[#allocation6 + $0xc0] sm:$0xff]
    %v2740 = vld [vmem:[#allocation6 + $0xc8] sm:$0xff]
    %v2741 = vld [vmem:[#allocation6 + $0xd0] sm:$0xff]
    %v2742 = vld [vmem:[#allocation6 + $0xd8] sm:$0xff]
    %v2743 = vld [vmem:[#allocation6 + $0xe0] sm:$0xff]
    %v2744 = vld [vmem:[#allocation6 + $0xe8] sm:$0xff]
    %v2745 = vld [vmem:[#allocation6 + $0xf0] sm:$0xff]
    %v2746 = vld [vmem:[#allocation6 + $0xf8] sm:$0xff]
    %v2779 = vunpack.c.l.b16 %v2715
    %v2780 = vunpack.c.h.b16 %v2715
    %v2781 = vunpack.c.l.b16 %v2716
    %v2782 = vunpack.c.h.b16 %v2716
    %v2783 = vunpack.c.l.b16 %v2717
    %v2784 = vunpack.c.h.b16 %v2717
    %v2785 = vunpack.c.l.b16 %v2718
    %v2786 = vunpack.c.h.b16 %v2718
    %v2787 = vunpack.c.l.b16 %v2719
    %v2788 = vunpack.c.h.b16 %v2719
    %v2789 = vunpack.c.l.b16 %v2720
    %v2790 = vunpack.c.h.b16 %v2720
    %v2791 = vunpack.c.l.b16 %v2721
    %v2792 = vunpack.c.h.b16 %v2721
    %v2793 = vunpack.c.l.b16 %v2722
    %v2794 = vunpack.c.h.b16 %v2722
    %v2795 = vunpack.c.l.b16 %v2723
    %v2796 = vunpack.c.h.b16 %v2723
    %v2797 = vunpack.c.l.b16 %v2724
    %v2798 = vunpack.c.h.b16 %v2724
    %v2799 = vunpack.c.l.b16 %v2725
    %v2800 = vunpack.c.h.b16 %v2725
    %v2801 = vunpack.c.l.b16 %v2726
    %v2802 = vunpack.c.h.b16 %v2726
    %v2803 = vunpack.c.l.b16 %v2727
    %v2804 = vunpack.c.h.b16 %v2727
    %v2805 = vunpack.c.l.b16 %v2728
    %v2806 = vunpack.c.h.b16 %v2728
    %v2807 = vunpack.c.l.b16 %v2729
    %v2808 = vunpack.c.h.b16 %v2729
    %v2809 = vunpack.c.l.b16 %v2730
    %v2810 = vunpack.c.h.b16 %v2730
    %v2811 = vunpack.c.l.b16 %v2731
    %v2812 = vunpack.c.h.b16 %v2731
    %v2813 = vunpack.c.l.b16 %v2732
    %v2814 = vunpack.c.h.b16 %v2732
    %v2815 = vunpack.c.l.b16 %v2733
    %v2816 = vunpack.c.h.b16 %v2733
    %v2817 = vunpack.c.l.b16 %v2734
    %v2818 = vunpack.c.h.b16 %v2734
    %v2819 = vunpack.c.l.b16 %v2735
    %v2820 = vunpack.c.h.b16 %v2735
    %v2821 = vunpack.c.l.b16 %v2736
    %v2822 = vunpack.c.h.b16 %v2736
    %v2823 = vunpack.c.l.b16 %v2737
    %v2824 = vunpack.c.h.b16 %v2737
    %v2825 = vunpack.c.l.b16 %v2738
    %v2826 = vunpack.c.h.b16 %v2738
    %v2827 = vunpack.c.l.b16 %v2739
    %v2828 = vunpack.c.h.b16 %v2739
    %v2829 = vunpack.c.l.b16 %v2740
    %v2830 = vunpack.c.h.b16 %v2740
    %v2831 = vunpack.c.l.b16 %v2741
    %v2832 = vunpack.c.h.b16 %v2741
    %v2833 = vunpack.c.l.b16 %v2742
    %v2834 = vunpack.c.h.b16 %v2742
    %v2835 = vunpack.c.l.b16 %v2743
    %v2836 = vunpack.c.h.b16 %v2743
    %v2837 = vunpack.c.l.b16 %v2744
    %v2838 = vunpack.c.h.b16 %v2744
    %v2839 = vunpack.c.l.b16 %v2745
    %v2840 = vunpack.c.h.b16 %v2745
    %v2841 = vunpack.c.l.b16 %v2746
    %v2842 = vunpack.c.h.b16 %v2746
    %v2843 = vpack.c.b16 %v2783, %v2779
    %v2844 = vpack.c.b16 %v2784, %v2780
    %v2845 = vpack.c.b16 %v2785, %v2781
    %v2846 = vpack.c.b16 %v2786, %v2782
    %v2847 = vpack.c.b16 %v2791, %v2787
    %v2848 = vpack.c.b16 %v2792, %v2788
    %v2849 = vpack.c.b16 %v2793, %v2789
    %v2850 = vpack.c.b16 %v2794, %v2790
    %v2851 = vpack.c.b16 %v2799, %v2795
    %v2852 = vpack.c.b16 %v2800, %v2796
    %v2853 = vpack.c.b16 %v2801, %v2797
    %v2854 = vpack.c.b16 %v2802, %v2798
    %v2855 = vpack.c.b16 %v2807, %v2803
    %v2856 = vpack.c.b16 %v2808, %v2804
    %v2857 = vpack.c.b16 %v2809, %v2805
    %v2858 = vpack.c.b16 %v2810, %v2806
    %v2859 = vpack.c.b16 %v2815, %v2811
    %v2860 = vpack.c.b16 %v2816, %v2812
    %v2861 = vpack.c.b16 %v2817, %v2813
    %v2862 = vpack.c.b16 %v2818, %v2814
    %v2863 = vpack.c.b16 %v2823, %v2819
    %v2864 = vpack.c.b16 %v2824, %v2820
    %v2865 = vpack.c.b16 %v2825, %v2821
    %v2866 = vpack.c.b16 %v2826, %v2822
    %v2867 = vpack.c.b16 %v2831, %v2827
    %v2868 = vpack.c.b16 %v2832, %v2828
    %v2869 = vpack.c.b16 %v2833, %v2829
    %v2870 = vpack.c.b16 %v2834, %v2830
    %v2871 = vpack.c.b16 %v2839, %v2835
    %v2872 = vpack.c.b16 %v2840, %v2836
    %v2873 = vpack.c.b16 %v2841, %v2837
    %v2874 = vpack.c.b16 %v2842, %v2838
    %2907 = vmatprep.subr.bf16.mxu0 %v2872
    %2908 = vmatpush1.bf16.msra.mxu0 %v2871
    %2909 = vmatprep.subr.bf16.mxu0 %v2868
    %2910 = vmatpush1.bf16.msra.mxu0 %v2867
    %2911 = vmatprep.subr.bf16.mxu0 %v2864
    %2912 = vmatpush1.bf16.msra.mxu0 %v2863
    %2913 = vmatprep.subr.bf16.mxu0 %v2860
    %2914 = vmatpush1.bf16.msra.mxu0 %v2859
    %2915 = vmatprep.subr.bf16.mxu0 %v2856
    %2916 = vmatpush1.bf16.msra.mxu0 %v2855
    %2917 = vmatprep.subr.bf16.mxu0 %v2852
    %2918 = vmatpush1.bf16.msra.mxu0 %v2851
    %2919 = vmatprep.subr.bf16.mxu0 %v2848
    %2920 = vmatpush1.bf16.msra.mxu0 %v2847
    %2921 = vmatprep.subr.bf16.mxu0 %v2844
    %2922 = vmatpush1.bf16.msra.mxu0 %v2843
    %2923 = vmatprep.subr.bf16.mxu0 0
    %2924 = vmatpush2.bf16.msra.mxu0 0
    %2925 = vmatprep.subr.bf16.mxu0 0
    %2926 = vmatpush2.bf16.msra.mxu0 0
    %2927 = vmatprep.subr.bf16.mxu0 0
    %2928 = vmatpush2.bf16.msra.mxu0 0
    %2929 = vmatprep.subr.bf16.mxu0 0
    %2930 = vmatpush2.bf16.msra.mxu0 0
    %2931 = vmatprep.subr.bf16.mxu0 0
    %2932 = vmatpush2.bf16.msra.mxu0 0
    %2933 = vmatprep.subr.bf16.mxu0 0
    %2934 = vmatpush2.bf16.msra.mxu0 0
    %2935 = vmatprep.subr.bf16.mxu0 0
    %2936 = vmatpush2.bf16.msra.mxu0 0
    %2937 = vmatprep.subr.bf16.mxu0 0
    %2938 = vmatpush2.bf16.msra.mxu0 0
    %2939 = vmatprep.mubr.bf16.mxu0 0
    %2940 = vmatmul.mubr.bf16.gmra.mxu0 %v2714
    %v2941 = vpop.f32.mrf.mxu0
    %v2942 = vadd.f32 0.0, %v2941
    %v2943 = vpop.f32.mrf.mxu0
    %v2944 = vadd.f32 0.0, %v2943
    %v2945 = vpop.f32.mrf.mxu0
    %v2946 = vpop.f32.mrf.mxu0
    %2947 = vdwg.mxu0
    %2948 = vmatprep.subr.bf16.mxu0 %v2874
    %2949 = vmatpush1.bf16.msra.mxu0 %v2873
    %2950 = vmatprep.subr.bf16.mxu0 %v2870
    %2951 = vmatpush1.bf16.msra.mxu0 %v2869
    %2952 = vmatprep.subr.bf16.mxu0 %v2866
    %2953 = vmatpush1.bf16.msra.mxu0 %v2865
    %2954 = vmatprep.subr.bf16.mxu0 %v2862
    %2955 = vmatpush1.bf16.msra.mxu0 %v2861
    %2956 = vmatprep.subr.bf16.mxu0 %v2858
    %2957 = vmatpush1.bf16.msra.mxu0 %v2857
    %2958 = vmatprep.subr.bf16.mxu0 %v2854
    %2959 = vmatpush1.bf16.msra.mxu0 %v2853
    %2960 = vmatprep.subr.bf16.mxu0 %v2850
    %2961 = vmatpush1.bf16.msra.mxu0 %v2849
    %2962 = vmatprep.subr.bf16.mxu0 %v2846
    %2963 = vmatpush1.bf16.msra.mxu0 %v2845
    %2964 = vmatprep.subr.bf16.mxu0 0
    %2965 = vmatpush2.bf16.msra.mxu0 0
    %2966 = vmatprep.subr.bf16.mxu0 0
    %2967 = vmatpush2.bf16.msra.mxu0 0
    %2968 = vmatprep.subr.bf16.mxu0 0
    %2969 = vmatpush2.bf16.msra.mxu0 0
    %2970 = vmatprep.subr.bf16.mxu0 0
    %2971 = vmatpush2.bf16.msra.mxu0 0
    %2972 = vmatprep.subr.bf16.mxu0 0
    %2973 = vmatpush2.bf16.msra.mxu0 0
    %2974 = vmatprep.subr.bf16.mxu0 0
    %2975 = vmatpush2.bf16.msra.mxu0 0
    %2976 = vmatprep.subr.bf16.mxu0 0
    %2977 = vmatpush2.bf16.msra.mxu0 0
    %2978 = vmatprep.subr.bf16.mxu0 0
    %2979 = vmatpush2.bf16.msra.mxu0 0
    %2980 = vmatprep.mubr.bf16.mxu0 0
    %2981 = vmatmul.mubr.bf16.gmra.mxu0 %v2714
    %v2982 = vpop.f32.mrf.mxu0
    %v2983 = vadd.f32 0.0, %v2982
    %v2984 = vpop.f32.mrf.mxu0
    %v2985 = vadd.f32 0.0, %v2984
    %v2986 = vpop.f32.mrf.mxu0
    %v2987 = vpop.f32.mrf.mxu0
    %2988 = vdwg.mxu0
    %v2989 = vadd.f32 %v2710, %v2942
    %v2990 = vadd.f32 %v2711, %v2944
    %v2991 = vadd.f32 %v2712, %v2983
    %v2992 = vadd.f32 %v2713, %v2985
    %v2993 = vxor.u32 %v2989, 2147483648
    %v2994 = vxor.u32 %v2990, 2147483648
    %v2995 = vxor.u32 %v2991, 2147483648
    %v2996 = vmul.f32 %v2993, 1.442695
    %v2997 = vpow.pop %v2996
    %v2998 = vmul.f32 %v2994, 1.442695
    %v2999 = vpow.pop %v2998
    %v3000 = vmul.f32 %v2995, 1.442695
    %v3001 = vpow.pop %v3000
    %v3002 = vadd.f32 %v2997, 1.0
    %v3003 = vadd.f32 %v2999, 1.0
    %v3004 = vadd.f32 %v3001, 1.0
    %v3005 = vrcp.pop %v3002
    %v3006 = vmul.f32 1.0, %v3005
    %v3007 = vrcp.pop %v3003
    %v3008 = vmul.f32 1.0, %v3007
    %v3009 = vrcp.pop %v3004
    %v3010 = vmul.f32 1.0, %v3009
    %v3011 = vtanh.pop %v2992
    %v3012 = vmul.f32 %v3008, %v2699
    %v3013 = vmul.f32 %v3006, %v3011
    %v3014 = vadd.f32 %v3012, %v3013
    %v3015 = vtanh.pop %v3014
    %v3016 = vmul.f32 %v3010, %v3015
    %v3017 = vxor.u32 %v3016, 2147483648
    %v3018 = vmul.f32 %v3017, 1.442695
    %v3019 = vpow.pop %v3018
    %v3020 = vadd.f32 %v3019, 1.0
    %v3021 = vrcp.pop %v3020
    %v3022 = vmul.f32 1.0, %v3021
    %v3023 = vpack.c.bf16 %v3022, %v3022
    %3024 = vst [vmem:[#allocation3 + $0x1c] sm:$0xf] %v3023
    %v3025 = vld [vmem:[#allocation3] sm:$0xf]
    %v3026 = vld [vmem:[#allocation3 + $0x4] sm:$0xf]
    %v3027 = vld [vmem:[#allocation3 + $0x8] sm:$0xf]
    %v3028 = vld [vmem:[#allocation3 + $0xc] sm:$0xf]
    %v3029 = vld [vmem:[#allocation3 + $0x10] sm:$0xf]
    %v3030 = vld [vmem:[#allocation3 + $0x14] sm:$0xf]
    %v3031 = vld [vmem:[#allocation3 + $0x18] sm:$0xf]
    %v3032 = vld [vmem:[#allocation3 + $0x1c] sm:$0xf]
    %v3033 = vld [vmem:[#allocation8] sm:$0xff]
    %v3034 = vld [vmem:[#allocation8 + $0x8] sm:$0xff]
    %v3035 = vld [vmem:[#allocation8 + $0x10] sm:$0xff]
    %v3036 = vld [vmem:[#allocation8 + $0x18] sm:$0xff]
    %v3037 = vld [vmem:[#allocation8 + $0x20] sm:$0xff]
    %v3038 = vld [vmem:[#allocation8 + $0x28] sm:$0xff]
    %v3039 = vld [vmem:[#allocation8 + $0x30] sm:$0xff]
    %v3040 = vld [vmem:[#allocation8 + $0x38] sm:$0xff]
    %v3041 = vld [vmem:[#allocation8 + $0x40] sm:$0xff]
    %v3042 = vld [vmem:[#allocation8 + $0x48] sm:$0xff]
    %v3043 = vld [vmem:[#allocation8 + $0x50] sm:$0xff]
    %v3044 = vld [vmem:[#allocation8 + $0x58] sm:$0xff]
    %v3045 = vld [vmem:[#allocation8 + $0x60] sm:$0xff]
    %v3046 = vld [vmem:[#allocation8 + $0x68] sm:$0xff]
    %v3047 = vld [vmem:[#allocation8 + $0x70] sm:$0xff]
    %v3048 = vld [vmem:[#allocation8 + $0x78] sm:$0xff]
    %v3049 = vld [vmem:[#allocation8 + $0x80] sm:$0xff]
    %v3050 = vld [vmem:[#allocation8 + $0x88] sm:$0xff]
    %v3051 = vld [vmem:[#allocation8 + $0x90] sm:$0xff]
    %v3052 = vld [vmem:[#allocation8 + $0x98] sm:$0xff]
    %v3053 = vld [vmem:[#allocation8 + $0xa0] sm:$0xff]
    %v3054 = vld [vmem:[#allocation8 + $0xa8] sm:$0xff]
    %v3055 = vld [vmem:[#allocation8 + $0xb0] sm:$0xff]
    %v3056 = vld [vmem:[#allocation8 + $0xb8] sm:$0xff]
    %v3057 = vld [vmem:[#allocation8 + $0xc0] sm:$0xff]
    %v3058 = vld [vmem:[#allocation8 + $0xc8] sm:$0xff]
    %v3059 = vld [vmem:[#allocation8 + $0xd0] sm:$0xff]
    %v3060 = vld [vmem:[#allocation8 + $0xd8] sm:$0xff]
    %v3061 = vld [vmem:[#allocation8 + $0xe0] sm:$0xff]
    %v3062 = vld [vmem:[#allocation8 + $0xe8] sm:$0xff]
    %v3063 = vld [vmem:[#allocation8 + $0xf0] sm:$0xff]
    %v3064 = vld [vmem:[#allocation8 + $0xf8] sm:$0xff]
    %v3065 = vld [vmem:[%s6] sm:$0xf]
    %v3067 = vlaneseq
    %v3068 = vshrl.u32 %v3067, 7
    %v3069 = vsub.s32 0, %v3068
    %v3070 = vrot.slane %v3065, %v3069
    %v3071 = vlaneseq
    %v3072 = vshrl.u32 %v3071, 7
    %v3073 = vsub.s32 1, %v3072
    %v3074 = vrot.slane %v3065, %v3073
    %v3075 = vlaneseq
    %v3076 = vshrl.u32 %v3075, 7
    %v3077 = vsub.s32 2, %v3076
    %v3078 = vrot.slane %v3065, %v3077
    %v3079 = vlaneseq
    %v3080 = vshrl.u32 %v3079, 7
    %v3081 = vsub.s32 3, %v3080
    %v3082 = vrot.slane %v3065, %v3081
    %v3095 = vunpack.c.l.b16 %v3025
    %v3096 = vunpack.c.l.b16 %v3026
    %v3097 = vunpack.c.l.b16 %v3027
    %v3098 = vunpack.c.l.b16 %v3028
    %v3099 = vunpack.c.l.b16 %v3029
    %v3100 = vunpack.c.l.b16 %v3030
    %v3101 = vunpack.c.l.b16 %v3031
    %v3102 = vunpack.c.l.b16 %v3032
    %v3103 = vpack.c.b16 %v3096, %v3095
    %v3104 = vpack.c.b16 %v3098, %v3097
    %v3105 = vpack.c.b16 %v3100, %v3099
    %v3106 = vpack.c.b16 %v3102, %v3101
    %v3143 = vunpack.c.l.b16 %v3033
    %v3144 = vunpack.c.h.b16 %v3033
    %v3145 = vunpack.c.l.b16 %v3034
    %v3146 = vunpack.c.h.b16 %v3034
    %v3147 = vunpack.c.l.b16 %v3035
    %v3148 = vunpack.c.h.b16 %v3035
    %v3149 = vunpack.c.l.b16 %v3036
    %v3150 = vunpack.c.h.b16 %v3036
    %v3151 = vunpack.c.l.b16 %v3037
    %v3152 = vunpack.c.h.b16 %v3037
    %v3153 = vunpack.c.l.b16 %v3038
    %v3154 = vunpack.c.h.b16 %v3038
    %v3155 = vunpack.c.l.b16 %v3039
    %v3156 = vunpack.c.h.b16 %v3039
    %v3157 = vunpack.c.l.b16 %v3040
    %v3158 = vunpack.c.h.b16 %v3040
    %v3159 = vunpack.c.l.b16 %v3041
    %v3160 = vunpack.c.h.b16 %v3041
    %v3161 = vunpack.c.l.b16 %v3042
    %v3162 = vunpack.c.h.b16 %v3042
    %v3163 = vunpack.c.l.b16 %v3043
    %v3164 = vunpack.c.h.b16 %v3043
    %v3165 = vunpack.c.l.b16 %v3044
    %v3166 = vunpack.c.h.b16 %v3044
    %v3167 = vunpack.c.l.b16 %v3045
    %v3168 = vunpack.c.h.b16 %v3045
    %v3169 = vunpack.c.l.b16 %v3046
    %v3170 = vunpack.c.h.b16 %v3046
    %v3171 = vunpack.c.l.b16 %v3047
    %v3172 = vunpack.c.h.b16 %v3047
    %v3173 = vunpack.c.l.b16 %v3048
    %v3174 = vunpack.c.h.b16 %v3048
    %v3175 = vunpack.c.l.b16 %v3049
    %v3176 = vunpack.c.h.b16 %v3049
    %v3177 = vunpack.c.l.b16 %v3050
    %v3178 = vunpack.c.h.b16 %v3050
    %v3179 = vunpack.c.l.b16 %v3051
    %v3180 = vunpack.c.h.b16 %v3051
    %v3181 = vunpack.c.l.b16 %v3052
    %v3182 = vunpack.c.h.b16 %v3052
    %v3183 = vunpack.c.l.b16 %v3053
    %v3184 = vunpack.c.h.b16 %v3053
    %v3185 = vunpack.c.l.b16 %v3054
    %v3186 = vunpack.c.h.b16 %v3054
    %v3187 = vunpack.c.l.b16 %v3055
    %v3188 = vunpack.c.h.b16 %v3055
    %v3189 = vunpack.c.l.b16 %v3056
    %v3190 = vunpack.c.h.b16 %v3056
    %v3191 = vunpack.c.l.b16 %v3057
    %v3192 = vunpack.c.h.b16 %v3057
    %v3193 = vunpack.c.l.b16 %v3058
    %v3194 = vunpack.c.h.b16 %v3058
    %v3195 = vunpack.c.l.b16 %v3059
    %v3196 = vunpack.c.h.b16 %v3059
    %v3197 = vunpack.c.l.b16 %v3060
    %v3198 = vunpack.c.h.b16 %v3060
    %v3199 = vunpack.c.l.b16 %v3061
    %v3200 = vunpack.c.h.b16 %v3061
    %v3201 = vunpack.c.l.b16 %v3062
    %v3202 = vunpack.c.h.b16 %v3062
    %v3203 = vunpack.c.l.b16 %v3063
    %v3204 = vunpack.c.h.b16 %v3063
    %v3205 = vunpack.c.l.b16 %v3064
    %v3206 = vunpack.c.h.b16 %v3064
    %v3207 = vpack.c.b16 %v3147, %v3143
    %v3208 = vpack.c.b16 %v3148, %v3144
    %v3209 = vpack.c.b16 %v3149, %v3145
    %v3210 = vpack.c.b16 %v3150, %v3146
    %v3211 = vpack.c.b16 %v3155, %v3151
    %v3212 = vpack.c.b16 %v3156, %v3152
    %v3213 = vpack.c.b16 %v3157, %v3153
    %v3214 = vpack.c.b16 %v3158, %v3154
    %v3215 = vpack.c.b16 %v3163, %v3159
    %v3216 = vpack.c.b16 %v3164, %v3160
    %v3217 = vpack.c.b16 %v3165, %v3161
    %v3218 = vpack.c.b16 %v3166, %v3162
    %v3219 = vpack.c.b16 %v3171, %v3167
    %v3220 = vpack.c.b16 %v3172, %v3168
    %v3221 = vpack.c.b16 %v3173, %v3169
    %v3222 = vpack.c.b16 %v3174, %v3170
    %v3223 = vpack.c.b16 %v3179, %v3175
    %v3224 = vpack.c.b16 %v3180, %v3176
    %v3225 = vpack.c.b16 %v3181, %v3177
    %v3226 = vpack.c.b16 %v3182, %v3178
    %v3227 = vpack.c.b16 %v3187, %v3183
    %v3228 = vpack.c.b16 %v3188, %v3184
    %v3229 = vpack.c.b16 %v3189, %v3185
    %v3230 = vpack.c.b16 %v3190, %v3186
    %v3231 = vpack.c.b16 %v3195, %v3191
    %v3232 = vpack.c.b16 %v3196, %v3192
    %v3233 = vpack.c.b16 %v3197, %v3193
    %v3234 = vpack.c.b16 %v3198, %v3194
    %v3235 = vpack.c.b16 %v3203, %v3199
    %v3236 = vpack.c.b16 %v3204, %v3200
    %v3237 = vpack.c.b16 %v3205, %v3201
    %v3238 = vpack.c.b16 %v3206, %v3202
    %3271 = vmatprep.subr.bf16.mxu0 %v3236
    %3272 = vmatpush1.bf16.msra.mxu0 %v3235
    %3273 = vmatprep.subr.bf16.mxu0 %v3232
    %3274 = vmatpush1.bf16.msra.mxu0 %v3231
    %3275 = vmatprep.subr.bf16.mxu0 %v3228
    %3276 = vmatpush1.bf16.msra.mxu0 %v3227
    %3277 = vmatprep.subr.bf16.mxu0 %v3224
    %3278 = vmatpush1.bf16.msra.mxu0 %v3223
    %3279 = vmatprep.subr.bf16.mxu0 %v3220
    %3280 = vmatpush1.bf16.msra.mxu0 %v3219
    %3281 = vmatprep.subr.bf16.mxu0 %v3216
    %3282 = vmatpush1.bf16.msra.mxu0 %v3215
    %3283 = vmatprep.subr.bf16.mxu0 %v3212
    %3284 = vmatpush1.bf16.msra.mxu0 %v3211
    %3285 = vmatprep.subr.bf16.mxu0 %v3208
    %3286 = vmatpush1.bf16.msra.mxu0 %v3207
    %3287 = vmatprep.subr.bf16.mxu0 0
    %3288 = vmatpush2.bf16.msra.mxu0 0
    %3289 = vmatprep.subr.bf16.mxu0 0
    %3290 = vmatpush2.bf16.msra.mxu0 0
    %3291 = vmatprep.subr.bf16.mxu0 0
    %3292 = vmatpush2.bf16.msra.mxu0 0
    %3293 = vmatprep.subr.bf16.mxu0 0
    %3294 = vmatpush2.bf16.msra.mxu0 0
    %3295 = vmatprep.subr.bf16.mxu0 0
    %3296 = vmatpush2.bf16.msra.mxu0 0
    %3297 = vmatprep.subr.bf16.mxu0 0
    %3298 = vmatpush2.bf16.msra.mxu0 0
    %3299 = vmatprep.subr.bf16.mxu0 0
    %3300 = vmatpush2.bf16.msra.mxu0 0
    %3301 = vmatprep.subr.bf16.mxu0 0
    %3302 = vmatpush2.bf16.msra.mxu0 0
    %3303 = vmatprep.mubr.bf16.mxu0 0
    %3304 = vmatmul.mubr.bf16.gmra.mxu0 %v3103
    %v3305 = vpop.f32.mrf.mxu0
    %v3306 = vadd.f32 %v3070, %v3305
    %v3307 = vpop.f32.mrf.mxu0
    %v3308 = vadd.f32 %v3074, %v3307
    %v3309 = vpop.f32.mrf.mxu0
    %v3310 = vadd.f32 %v3070, %v3309
    %v3311 = vpop.f32.mrf.mxu0
    %v3312 = vadd.f32 %v3074, %v3311
    %3313 = vmatprep.mubr.bf16.mxu0 0
    %3314 = vmatmul.mubr.bf16.gmra.mxu0 %v3104
    %v3315 = vpop.f32.mrf.mxu0
    %v3316 = vadd.f32 %v3070, %v3315
    %v3317 = vpop.f32.mrf.mxu0
    %v3318 = vadd.f32 %v3074, %v3317
    %v3319 = vpop.f32.mrf.mxu0
    %v3320 = vadd.f32 %v3070, %v3319
    %v3321 = vpop.f32.mrf.mxu0
    %v3322 = vadd.f32 %v3074, %v3321
    %3323 = vmatprep.mubr.bf16.mxu0 0
    %3324 = vmatmul.mubr.bf16.gmra.mxu0 %v3105
    %v3325 = vpop.f32.mrf.mxu0
    %v3326 = vadd.f32 %v3070, %v3325
    %v3327 = vpop.f32.mrf.mxu0
    %v3328 = vadd.f32 %v3074, %v3327
    %v3329 = vpop.f32.mrf.mxu0
    %v3330 = vadd.f32 %v3070, %v3329
    %v3331 = vpop.f32.mrf.mxu0
    %v3332 = vadd.f32 %v3074, %v3331
    %3333 = vmatprep.mubr.bf16.mxu0 0
    %3334 = vmatmul.mubr.bf16.gmra.mxu0 %v3106
    %v3335 = vpop.f32.mrf.mxu0
    %v3336 = vadd.f32 %v3070, %v3335
    %v3337 = vpop.f32.mrf.mxu0
    %v3338 = vadd.f32 %v3074, %v3337
    %v3339 = vpop.f32.mrf.mxu0
    %v3340 = vadd.f32 %v3070, %v3339
    %v3341 = vpop.f32.mrf.mxu0
    %v3342 = vadd.f32 %v3074, %v3341
    %3343 = vdwg.mxu0
    %3344 = vmatprep.subr.bf16.mxu0 %v3238
    %3345 = vmatpush1.bf16.msra.mxu0 %v3237
    %3346 = vmatprep.subr.bf16.mxu0 %v3234
    %3347 = vmatpush1.bf16.msra.mxu0 %v3233
    %3348 = vmatprep.subr.bf16.mxu0 %v3230
    %3349 = vmatpush1.bf16.msra.mxu0 %v3229
    %3350 = vmatprep.subr.bf16.mxu0 %v3226
    %3351 = vmatpush1.bf16.msra.mxu0 %v3225
    %3352 = vmatprep.subr.bf16.mxu0 %v3222
    %3353 = vmatpush1.bf16.msra.mxu0 %v3221
    %3354 = vmatprep.subr.bf16.mxu0 %v3218
    %3355 = vmatpush1.bf16.msra.mxu0 %v3217
    %3356 = vmatprep.subr.bf16.mxu0 %v3214
    %3357 = vmatpush1.bf16.msra.mxu0 %v3213
    %3358 = vmatprep.subr.bf16.mxu0 %v3210
    %3359 = vmatpush1.bf16.msra.mxu0 %v3209
    %3360 = vmatprep.subr.bf16.mxu0 0
    %3361 = vmatpush2.bf16.msra.mxu0 0
    %3362 = vmatprep.subr.bf16.mxu0 0
    %3363 = vmatpush2.bf16.msra.mxu0 0
    %3364 = vmatprep.subr.bf16.mxu0 0
    %3365 = vmatpush2.bf16.msra.mxu0 0
    %3366 = vmatprep.subr.bf16.mxu0 0
    %3367 = vmatpush2.bf16.msra.mxu0 0
    %3368 = vmatprep.subr.bf16.mxu0 0
    %3369 = vmatpush2.bf16.msra.mxu0 0
    %3370 = vmatprep.subr.bf16.mxu0 0
    %3371 = vmatpush2.bf16.msra.mxu0 0
    %3372 = vmatprep.subr.bf16.mxu0 0
    %3373 = vmatpush2.bf16.msra.mxu0 0
    %3374 = vmatprep.subr.bf16.mxu0 0
    %3375 = vmatpush2.bf16.msra.mxu0 0
    %3376 = vmatprep.mubr.bf16.mxu0 0
    %3377 = vmatmul.mubr.bf16.gmra.mxu0 %v3103
    %v3378 = vpop.f32.mrf.mxu0
    %v3379 = vadd.f32 %v3078, %v3378
    %v3380 = vpop.f32.mrf.mxu0
    %v3381 = vadd.f32 %v3082, %v3380
    %v3382 = vpop.f32.mrf.mxu0
    %v3383 = vadd.f32 %v3078, %v3382
    %v3384 = vpop.f32.mrf.mxu0
    %v3385 = vadd.f32 %v3082, %v3384
    %3386 = vmatprep.mubr.bf16.mxu0 0
    %3387 = vmatmul.mubr.bf16.gmra.mxu0 %v3104
    %v3388 = vpop.f32.mrf.mxu0
    %v3389 = vadd.f32 %v3078, %v3388
    %v3390 = vpop.f32.mrf.mxu0
    %v3391 = vadd.f32 %v3082, %v3390
    %v3392 = vpop.f32.mrf.mxu0
    %v3393 = vadd.f32 %v3078, %v3392
    %v3394 = vpop.f32.mrf.mxu0
    %v3395 = vadd.f32 %v3082, %v3394
    %3396 = vmatprep.mubr.bf16.mxu0 0
    %3397 = vmatmul.mubr.bf16.gmra.mxu0 %v3105
    %v3398 = vpop.f32.mrf.mxu0
    %v3399 = vadd.f32 %v3078, %v3398
    %v3400 = vpop.f32.mrf.mxu0
    %v3401 = vadd.f32 %v3082, %v3400
    %v3402 = vpop.f32.mrf.mxu0
    %v3403 = vadd.f32 %v3078, %v3402
    %v3404 = vpop.f32.mrf.mxu0
    %v3405 = vadd.f32 %v3082, %v3404
    %3406 = vmatprep.mubr.bf16.mxu0 0
    %3407 = vmatmul.mubr.bf16.gmra.mxu0 %v3106
    %v3408 = vpop.f32.mrf.mxu0
    %v3409 = vadd.f32 %v3078, %v3408
    %v3410 = vpop.f32.mrf.mxu0
    %v3411 = vadd.f32 %v3082, %v3410
    %v3412 = vpop.f32.mrf.mxu0
    %v3413 = vadd.f32 %v3078, %v3412
    %v3414 = vpop.f32.mrf.mxu0
    %v3415 = vadd.f32 %v3082, %v3414
    %3416 = vdwg.mxu0
    %3417 = vst [vmem:[#allocation2] sm:$0xff] %v3306
    %3418 = vst [vmem:[#allocation2 + $0x8] sm:$0xff] %v3308
    %3419 = vst [vmem:[#allocation2 + $0x10] sm:$0xff] %v3379
    %3420 = vst [vmem:[#allocation2 + $0x18] sm:$0xff] %v3381
    %3421 = vst [vmem:[#allocation2 + $0x20] sm:$0xff] %v3310
    %3422 = vst [vmem:[#allocation2 + $0x28] sm:$0xff] %v3312
    %3423 = vst [vmem:[#allocation2 + $0x30] sm:$0xff] %v3383
    %3424 = vst [vmem:[#allocation2 + $0x38] sm:$0xff] %v3385
    %3425 = vst [vmem:[#allocation2 + $0x40] sm:$0xff] %v3316
    %3426 = vst [vmem:[#allocation2 + $0x48] sm:$0xff] %v3318
    %3427 = vst [vmem:[#allocation2 + $0x50] sm:$0xff] %v3389
    %3428 = vst [vmem:[#allocation2 + $0x58] sm:$0xff] %v3391
    %3429 = vst [vmem:[#allocation2 + $0x60] sm:$0xff] %v3320
    %3430 = vst [vmem:[#allocation2 + $0x68] sm:$0xff] %v3322
    %3431 = vst [vmem:[#allocation2 + $0x70] sm:$0xff] %v3393
    %3432 = vst [vmem:[#allocation2 + $0x78] sm:$0xff] %v3395
    %3433 = vst [vmem:[#allocation2 + $0x80] sm:$0xff] %v3326
    %3434 = vst [vmem:[#allocation2 + $0x88] sm:$0xff] %v3328
    %3435 = vst [vmem:[#allocation2 + $0x90] sm:$0xff] %v3399
    %3436 = vst [vmem:[#allocation2 + $0x98] sm:$0xff] %v3401
    %3437 = vst [vmem:[#allocation2 + $0xa0] sm:$0xff] %v3330
    %3438 = vst [vmem:[#allocation2 + $0xa8] sm:$0xff] %v3332
    %3439 = vst [vmem:[#allocation2 + $0xb0] sm:$0xff] %v3403
    %3440 = vst [vmem:[#allocation2 + $0xb8] sm:$0xff] %v3405
    %3441 = vst [vmem:[#allocation2 + $0xc0] sm:$0xff] %v3336
    %3442 = vst [vmem:[#allocation2 + $0xc8] sm:$0xff] %v3338
    %3443 = vst [vmem:[#allocation2 + $0xd0] sm:$0xff] %v3409
    %3444 = vst [vmem:[#allocation2 + $0xd8] sm:$0xff] %v3411
    %3445 = vst [vmem:[#allocation2 + $0xe0] sm:$0xff] %v3340
    %3446 = vst [vmem:[#allocation2 + $0xe8] sm:$0xff] %v3342
    %3447 = vst [vmem:[#allocation2 + $0xf0] sm:$0xff] %v3413
    %3448 = vst [vmem:[#allocation2 + $0xf8] sm:$0xff] %v3415
    %v3449 = vld [vmem:[#allocation2] sm:$0xff]
    %v3450 = vld [vmem:[#allocation2 + $0x8] sm:$0xff]
    %v3451 = vld [vmem:[#allocation2 + $0x10] sm:$0xff]
    %v3452 = vld [vmem:[#allocation2 + $0x18] sm:$0xff]
    %v3453 = vld [vmem:[#allocation9] sm:$0xff]
    %v3454 = vld [vmem:[#allocation9 + $0x8] sm:$0xff]
    %v3455 = vld [vmem:[#allocation9 + $0x10] sm:$0xff]
    %v3456 = vld [vmem:[#allocation9 + $0x18] sm:$0xff]
    %v3457 = vld [vmem:[#allocation9 + $0x20] sm:$0xff]
    %v3458 = vld [vmem:[#allocation9 + $0x28] sm:$0xff]
    %v3459 = vld [vmem:[#allocation9 + $0x30] sm:$0xff]
    %v3460 = vld [vmem:[#allocation9 + $0x38] sm:$0xff]
    %v3461 = vld [vmem:[#allocation9 + $0x40] sm:$0xff]
    %v3462 = vld [vmem:[#allocation9 + $0x48] sm:$0xff]
    %v3463 = vld [vmem:[#allocation9 + $0x50] sm:$0xff]
    %v3464 = vld [vmem:[#allocation9 + $0x58] sm:$0xff]
    %v3465 = vld [vmem:[#allocation9 + $0x60] sm:$0xff]
    %v3466 = vld [vmem:[#allocation9 + $0x68] sm:$0xff]
    %v3467 = vld [vmem:[#allocation9 + $0x70] sm:$0xff]
    %v3468 = vld [vmem:[#allocation9 + $0x78] sm:$0xff]
    %v3469 = vld [vmem:[#allocation9 + $0x80] sm:$0xff]
    %v3470 = vld [vmem:[#allocation9 + $0x88] sm:$0xff]
    %v3471 = vld [vmem:[#allocation9 + $0x90] sm:$0xff]
    %v3472 = vld [vmem:[#allocation9 + $0x98] sm:$0xff]
    %v3473 = vld [vmem:[#allocation9 + $0xa0] sm:$0xff]
    %v3474 = vld [vmem:[#allocation9 + $0xa8] sm:$0xff]
    %v3475 = vld [vmem:[#allocation9 + $0xb0] sm:$0xff]
    %v3476 = vld [vmem:[#allocation9 + $0xb8] sm:$0xff]
    %v3477 = vld [vmem:[#allocation9 + $0xc0] sm:$0xff]
    %v3478 = vld [vmem:[#allocation9 + $0xc8] sm:$0xff]
    %v3479 = vld [vmem:[#allocation9 + $0xd0] sm:$0xff]
    %v3480 = vld [vmem:[#allocation9 + $0xd8] sm:$0xff]
    %v3481 = vld [vmem:[#allocation9 + $0xe0] sm:$0xff]
    %v3482 = vld [vmem:[#allocation9 + $0xe8] sm:$0xff]
    %v3483 = vld [vmem:[#allocation9 + $0xf0] sm:$0xff]
    %v3484 = vld [vmem:[#allocation9 + $0xf8] sm:$0xff]
    %v3517 = vunpack.c.l.b16 %v3453
    %v3518 = vunpack.c.h.b16 %v3453
    %v3519 = vunpack.c.l.b16 %v3454
    %v3520 = vunpack.c.h.b16 %v3454
    %v3521 = vunpack.c.l.b16 %v3455
    %v3522 = vunpack.c.h.b16 %v3455
    %v3523 = vunpack.c.l.b16 %v3456
    %v3524 = vunpack.c.h.b16 %v3456
    %v3525 = vunpack.c.l.b16 %v3457
    %v3526 = vunpack.c.h.b16 %v3457
    %v3527 = vunpack.c.l.b16 %v3458
    %v3528 = vunpack.c.h.b16 %v3458
    %v3529 = vunpack.c.l.b16 %v3459
    %v3530 = vunpack.c.h.b16 %v3459
    %v3531 = vunpack.c.l.b16 %v3460
    %v3532 = vunpack.c.h.b16 %v3460
    %v3533 = vunpack.c.l.b16 %v3461
    %v3534 = vunpack.c.h.b16 %v3461
    %v3535 = vunpack.c.l.b16 %v3462
    %v3536 = vunpack.c.h.b16 %v3462
    %v3537 = vunpack.c.l.b16 %v3463
    %v3538 = vunpack.c.h.b16 %v3463
    %v3539 = vunpack.c.l.b16 %v3464
    %v3540 = vunpack.c.h.b16 %v3464
    %v3541 = vunpack.c.l.b16 %v3465
    %v3542 = vunpack.c.h.b16 %v3465
    %v3543 = vunpack.c.l.b16 %v3466
    %v3544 = vunpack.c.h.b16 %v3466
    %v3545 = vunpack.c.l.b16 %v3467
    %v3546 = vunpack.c.h.b16 %v3467
    %v3547 = vunpack.c.l.b16 %v3468
    %v3548 = vunpack.c.h.b16 %v3468
    %v3549 = vunpack.c.l.b16 %v3469
    %v3550 = vunpack.c.h.b16 %v3469
    %v3551 = vunpack.c.l.b16 %v3470
    %v3552 = vunpack.c.h.b16 %v3470
    %v3553 = vunpack.c.l.b16 %v3471
    %v3554 = vunpack.c.h.b16 %v3471
    %v3555 = vunpack.c.l.b16 %v3472
    %v3556 = vunpack.c.h.b16 %v3472
    %v3557 = vunpack.c.l.b16 %v3473
    %v3558 = vunpack.c.h.b16 %v3473
    %v3559 = vunpack.c.l.b16 %v3474
    %v3560 = vunpack.c.h.b16 %v3474
    %v3561 = vunpack.c.l.b16 %v3475
    %v3562 = vunpack.c.h.b16 %v3475
    %v3563 = vunpack.c.l.b16 %v3476
    %v3564 = vunpack.c.h.b16 %v3476
    %v3565 = vunpack.c.l.b16 %v3477
    %v3566 = vunpack.c.h.b16 %v3477
    %v3567 = vunpack.c.l.b16 %v3478
    %v3568 = vunpack.c.h.b16 %v3478
    %v3569 = vunpack.c.l.b16 %v3479
    %v3570 = vunpack.c.h.b16 %v3479
    %v3571 = vunpack.c.l.b16 %v3480
    %v3572 = vunpack.c.h.b16 %v3480
    %v3573 = vunpack.c.l.b16 %v3481
    %v3574 = vunpack.c.h.b16 %v3481
    %v3575 = vunpack.c.l.b16 %v3482
    %v3576 = vunpack.c.h.b16 %v3482
    %v3577 = vunpack.c.l.b16 %v3483
    %v3578 = vunpack.c.h.b16 %v3483
    %v3579 = vunpack.c.l.b16 %v3484
    %v3580 = vunpack.c.h.b16 %v3484
    %v3581 = vpack.c.b16 %v3521, %v3517
    %v3582 = vpack.c.b16 %v3522, %v3518
    %v3583 = vpack.c.b16 %v3523, %v3519
    %v3584 = vpack.c.b16 %v3524, %v3520
    %v3585 = vpack.c.b16 %v3529, %v3525
    %v3586 = vpack.c.b16 %v3530, %v3526
    %v3587 = vpack.c.b16 %v3531, %v3527
    %v3588 = vpack.c.b16 %v3532, %v3528
    %v3589 = vpack.c.b16 %v3537, %v3533
    %v3590 = vpack.c.b16 %v3538, %v3534
    %v3591 = vpack.c.b16 %v3539, %v3535
    %v3592 = vpack.c.b16 %v3540, %v3536
    %v3593 = vpack.c.b16 %v3545, %v3541
    %v3594 = vpack.c.b16 %v3546, %v3542
    %v3595 = vpack.c.b16 %v3547, %v3543
    %v3596 = vpack.c.b16 %v3548, %v3544
    %v3597 = vpack.c.b16 %v3553, %v3549
    %v3598 = vpack.c.b16 %v3554, %v3550
    %v3599 = vpack.c.b16 %v3555, %v3551
    %v3600 = vpack.c.b16 %v3556, %v3552
    %v3601 = vpack.c.b16 %v3561, %v3557
    %v3602 = vpack.c.b16 %v3562, %v3558
    %v3603 = vpack.c.b16 %v3563, %v3559
    %v3604 = vpack.c.b16 %v3564, %v3560
    %v3605 = vpack.c.b16 %v3569, %v3565
    %v3606 = vpack.c.b16 %v3570, %v3566
    %v3607 = vpack.c.b16 %v3571, %v3567
    %v3608 = vpack.c.b16 %v3572, %v3568
    %v3609 = vpack.c.b16 %v3577, %v3573
    %v3610 = vpack.c.b16 %v3578, %v3574
    %v3611 = vpack.c.b16 %v3579, %v3575
    %v3612 = vpack.c.b16 %v3580, %v3576
    %3645 = vmatprep.subr.bf16.mxu0 %v3610
    %3646 = vmatpush1.bf16.msra.mxu0 %v3609
    %3647 = vmatprep.subr.bf16.mxu0 %v3606
    %3648 = vmatpush1.bf16.msra.mxu0 %v3605
    %3649 = vmatprep.subr.bf16.mxu0 %v3602
    %3650 = vmatpush1.bf16.msra.mxu0 %v3601
    %3651 = vmatprep.subr.bf16.mxu0 %v3598
    %3652 = vmatpush1.bf16.msra.mxu0 %v3597
    %3653 = vmatprep.subr.bf16.mxu0 %v3594
    %3654 = vmatpush1.bf16.msra.mxu0 %v3593
    %3655 = vmatprep.subr.bf16.mxu0 %v3590
    %3656 = vmatpush1.bf16.msra.mxu0 %v3589
    %3657 = vmatprep.subr.bf16.mxu0 %v3586
    %3658 = vmatpush1.bf16.msra.mxu0 %v3585
    %3659 = vmatprep.subr.bf16.mxu0 %v3582
    %3660 = vmatpush1.bf16.msra.mxu0 %v3581
    %3661 = vmatprep.subr.bf16.mxu0 0
    %3662 = vmatpush2.bf16.msra.mxu0 0
    %3663 = vmatprep.subr.bf16.mxu0 0
    %3664 = vmatpush2.bf16.msra.mxu0 0
    %3665 = vmatprep.subr.bf16.mxu0 0
    %3666 = vmatpush2.bf16.msra.mxu0 0
    %3667 = vmatprep.subr.bf16.mxu0 0
    %3668 = vmatpush2.bf16.msra.mxu0 0
    %3669 = vmatprep.subr.bf16.mxu0 0
    %3670 = vmatpush2.bf16.msra.mxu0 0
    %3671 = vmatprep.subr.bf16.mxu0 0
    %3672 = vmatpush2.bf16.msra.mxu0 0
    %3673 = vmatprep.subr.bf16.mxu0 0
    %3674 = vmatpush2.bf16.msra.mxu0 0
    %3675 = vmatprep.subr.bf16.mxu0 0
    %3676 = vmatpush2.bf16.msra.mxu0 0
    %3677 = vmatprep.mubr.bf16.mxu0 0
    %3678 = vmatmul.mubr.bf16.gmra.mxu0 0
    %v3679 = vpop.f32.mrf.mxu0
    %v3680 = vadd.f32 0.0, %v3679
    %v3681 = vpop.f32.mrf.mxu0
    %v3682 = vadd.f32 0.0, %v3681
    %v3683 = vpop.f32.mrf.mxu0
    %v3684 = vpop.f32.mrf.mxu0
    %3685 = vdwg.mxu0
    %3686 = vmatprep.subr.bf16.mxu0 %v3612
    %3687 = vmatpush1.bf16.msra.mxu0 %v3611
    %3688 = vmatprep.subr.bf16.mxu0 %v3608
    %3689 = vmatpush1.bf16.msra.mxu0 %v3607
    %3690 = vmatprep.subr.bf16.mxu0 %v3604
    %3691 = vmatpush1.bf16.msra.mxu0 %v3603
    %3692 = vmatprep.subr.bf16.mxu0 %v3600
    %3693 = vmatpush1.bf16.msra.mxu0 %v3599
    %3694 = vmatprep.subr.bf16.mxu0 %v3596
    %3695 = vmatpush1.bf16.msra.mxu0 %v3595
    %3696 = vmatprep.subr.bf16.mxu0 %v3592
    %3697 = vmatpush1.bf16.msra.mxu0 %v3591
    %3698 = vmatprep.subr.bf16.mxu0 %v3588
    %3699 = vmatpush1.bf16.msra.mxu0 %v3587
    %3700 = vmatprep.subr.bf16.mxu0 %v3584
    %3701 = vmatpush1.bf16.msra.mxu0 %v3583
    %3702 = vmatprep.subr.bf16.mxu0 0
    %3703 = vmatpush2.bf16.msra.mxu0 0
    %3704 = vmatprep.subr.bf16.mxu0 0
    %3705 = vmatpush2.bf16.msra.mxu0 0
    %3706 = vmatprep.subr.bf16.mxu0 0
    %3707 = vmatpush2.bf16.msra.mxu0 0
    %3708 = vmatprep.subr.bf16.mxu0 0
    %3709 = vmatpush2.bf16.msra.mxu0 0
    %3710 = vmatprep.subr.bf16.mxu0 0
    %3711 = vmatpush2.bf16.msra.mxu0 0
    %3712 = vmatprep.subr.bf16.mxu0 0
    %3713 = vmatpush2.bf16.msra.mxu0 0
    %3714 = vmatprep.subr.bf16.mxu0 0
    %3715 = vmatpush2.bf16.msra.mxu0 0
    %3716 = vmatprep.subr.bf16.mxu0 0
    %3717 = vmatpush2.bf16.msra.mxu0 0
    %3718 = vmatprep.mubr.bf16.mxu0 0
    %3719 = vmatmul.mubr.bf16.gmra.mxu0 0
    %v3720 = vpop.f32.mrf.mxu0
    %v3721 = vadd.f32 0.0, %v3720
    %v3722 = vpop.f32.mrf.mxu0
    %v3723 = vadd.f32 0.0, %v3722
    %v3724 = vpop.f32.mrf.mxu0
    %v3725 = vpop.f32.mrf.mxu0
    %3726 = vdwg.mxu0
    %v3727 = vadd.f32 %v3449, %v3680
    %v3728 = vadd.f32 %v3450, %v3682
    %v3729 = vadd.f32 %v3451, %v3721
    %v3730 = vadd.f32 %v3452, %v3723
    %v3731 = vxor.u32 %v3727, 2147483648
    %v3732 = vxor.u32 %v3728, 2147483648
    %v3733 = vxor.u32 %v3729, 2147483648
    %v3734 = vmul.f32 %v3731, 1.442695
    %v3735 = vpow.pop %v3734
    %v3736 = vmul.f32 %v3732, 1.442695
    %v3737 = vpow.pop %v3736
    %v3738 = vmul.f32 %v3733, 1.442695
    %v3739 = vpow.pop %v3738
    %v3740 = vadd.f32 %v3735, 1.0
    %v3741 = vadd.f32 %v3737, 1.0
    %v3742 = vadd.f32 %v3739, 1.0
    %v3743 = vrcp.pop %v3740
    %v3744 = vmul.f32 1.0, %v3743
    %v3745 = vrcp.pop %v3741
    %v3746 = vmul.f32 1.0, %v3745
    %v3747 = vrcp.pop %v3742
    %v3748 = vmul.f32 1.0, %v3747
    %v3749 = vtanh.pop %v3730
    %v3750 = vmul.f32 %v3746, 0.0
    %v3751 = vmul.f32 %v3744, %v3749
    %v3752 = vadd.f32 %v3750, %v3751
    %v3753 = vtanh.pop %v3752
    %v3754 = vmul.f32 %v3748, %v3753
    %v3755 = vld [vmem:[#allocation2 + $0x20] sm:$0xff]
    %v3756 = vld [vmem:[#allocation2 + $0x28] sm:$0xff]
    %v3757 = vld [vmem:[#allocation2 + $0x30] sm:$0xff]
    %v3758 = vld [vmem:[#allocation2 + $0x38] sm:$0xff]
    %v3759 = vpack.c.bf16 %v3754, %v3754
    %3760 = vmatprep.subr.bf16.mxu0 %v3610
    %3761 = vmatpush1.bf16.msra.mxu0 %v3609
    %3762 = vmatprep.subr.bf16.mxu0 %v3606
    %3763 = vmatpush1.bf16.msra.mxu0 %v3605
    %3764 = vmatprep.subr.bf16.mxu0 %v3602
    %3765 = vmatpush1.bf16.msra.mxu0 %v3601
    %3766 = vmatprep.subr.bf16.mxu0 %v3598
    %3767 = vmatpush1.bf16.msra.mxu0 %v3597
    %3768 = vmatprep.subr.bf16.mxu0 %v3594
    %3769 = vmatpush1.bf16.msra.mxu0 %v3593
    %3770 = vmatprep.subr.bf16.mxu0 %v3590
    %3771 = vmatpush1.bf16.msra.mxu0 %v3589
    %3772 = vmatprep.subr.bf16.mxu0 %v3586
    %3773 = vmatpush1.bf16.msra.mxu0 %v3585
    %3774 = vmatprep.subr.bf16.mxu0 %v3582
    %3775 = vmatpush1.bf16.msra.mxu0 %v3581
    %3776 = vmatprep.subr.bf16.mxu0 0
    %3777 = vmatpush2.bf16.msra.mxu0 0
    %3778 = vmatprep.subr.bf16.mxu0 0
    %3779 = vmatpush2.bf16.msra.mxu0 0
    %3780 = vmatprep.subr.bf16.mxu0 0
    %3781 = vmatpush2.bf16.msra.mxu0 0
    %3782 = vmatprep.subr.bf16.mxu0 0
    %3783 = vmatpush2.bf16.msra.mxu0 0
    %3784 = vmatprep.subr.bf16.mxu0 0
    %3785 = vmatpush2.bf16.msra.mxu0 0
    %3786 = vmatprep.subr.bf16.mxu0 0
    %3787 = vmatpush2.bf16.msra.mxu0 0
    %3788 = vmatprep.subr.bf16.mxu0 0
    %3789 = vmatpush2.bf16.msra.mxu0 0
    %3790 = vmatprep.subr.bf16.mxu0 0
    %3791 = vmatpush2.bf16.msra.mxu0 0
    %3792 = vmatprep.mubr.bf16.mxu0 0
    %3793 = vmatmul.mubr.bf16.gmra.mxu0 %v3759
    %v3794 = vpop.f32.mrf.mxu0
    %v3795 = vadd.f32 0.0, %v3794
    %v3796 = vpop.f32.mrf.mxu0
    %v3797 = vadd.f32 0.0, %v3796
    %v3798 = vpop.f32.mrf.mxu0
    %v3799 = vpop.f32.mrf.mxu0
    %3800 = vdwg.mxu0
    %3801 = vmatprep.subr.bf16.mxu0 %v3612
    %3802 = vmatpush1.bf16.msra.mxu0 %v3611
    %3803 = vmatprep.subr.bf16.mxu0 %v3608
    %3804 = vmatpush1.bf16.msra.mxu0 %v3607
    %3805 = vmatprep.subr.bf16.mxu0 %v3604
    %3806 = vmatpush1.bf16.msra.mxu0 %v3603
    %3807 = vmatprep.subr.bf16.mxu0 %v3600
    %3808 = vmatpush1.bf16.msra.mxu0 %v3599
    %3809 = vmatprep.subr.bf16.mxu0 %v3596
    %3810 = vmatpush1.bf16.msra.mxu0 %v3595
    %3811 = vmatprep.subr.bf16.mxu0 %v3592
    %3812 = vmatpush1.bf16.msra.mxu0 %v3591
    %3813 = vmatprep.subr.bf16.mxu0 %v3588
    %3814 = vmatpush1.bf16.msra.mxu0 %v3587
    %3815 = vmatprep.subr.bf16.mxu0 %v3584
    %3816 = vmatpush1.bf16.msra.mxu0 %v3583
    %3817 = vmatprep.subr.bf16.mxu0 0
    %3818 = vmatpush2.bf16.msra.mxu0 0
    %3819 = vmatprep.subr.bf16.mxu0 0
    %3820 = vmatpush2.bf16.msra.mxu0 0
    %3821 = vmatprep.subr.bf16.mxu0 0
    %3822 = vmatpush2.bf16.msra.mxu0 0
    %3823 = vmatprep.subr.bf16.mxu0 0
    %3824 = vmatpush2.bf16.msra.mxu0 0
    %3825 = vmatprep.subr.bf16.mxu0 0
    %3826 = vmatpush2.bf16.msra.mxu0 0
    %3827 = vmatprep.subr.bf16.mxu0 0
    %3828 = vmatpush2.bf16.msra.mxu0 0
    %3829 = vmatprep.subr.bf16.mxu0 0
    %3830 = vmatpush2.bf16.msra.mxu0 0
    %3831 = vmatprep.subr.bf16.mxu0 0
    %3832 = vmatpush2.bf16.msra.mxu0 0
    %3833 = vmatprep.mubr.bf16.mxu0 0
    %3834 = vmatmul.mubr.bf16.gmra.mxu0 %v3759
    %v3835 = vpop.f32.mrf.mxu0
    %v3836 = vadd.f32 0.0, %v3835
    %v3837 = vpop.f32.mrf.mxu0
    %v3838 = vadd.f32 0.0, %v3837
    %v3839 = vpop.f32.mrf.mxu0
    %v3840 = vpop.f32.mrf.mxu0
    %3841 = vdwg.mxu0
    %v3842 = vadd.f32 %v3755, %v3795
    %v3843 = vadd.f32 %v3756, %v3797
    %v3844 = vadd.f32 %v3757, %v3836
    %v3845 = vadd.f32 %v3758, %v3838
    %v3846 = vxor.u32 %v3842, 2147483648
    %v3847 = vxor.u32 %v3843, 2147483648
    %v3848 = vxor.u32 %v3844, 2147483648
    %v3849 = vmul.f32 %v3846, 1.442695
    %v3850 = vpow.pop %v3849
    %v3851 = vmul.f32 %v3847, 1.442695
    %v3852 = vpow.pop %v3851
    %v3853 = vmul.f32 %v3848, 1.442695
    %v3854 = vpow.pop %v3853
    %v3855 = vadd.f32 %v3850, 1.0
    %v3856 = vadd.f32 %v3852, 1.0
    %v3857 = vadd.f32 %v3854, 1.0
    %v3858 = vrcp.pop %v3855
    %v3859 = vmul.f32 1.0, %v3858
    %v3860 = vrcp.pop %v3856
    %v3861 = vmul.f32 1.0, %v3860
    %v3862 = vrcp.pop %v3857
    %v3863 = vmul.f32 1.0, %v3862
    %v3864 = vtanh.pop %v3845
    %v3865 = vmul.f32 %v3861, %v3752
    %v3866 = vmul.f32 %v3859, %v3864
    %v3867 = vadd.f32 %v3865, %v3866
    %v3868 = vtanh.pop %v3867
    %v3869 = vmul.f32 %v3863, %v3868
    %v3870 = vld [vmem:[#allocation2 + $0x40] sm:$0xff]
    %v3871 = vld [vmem:[#allocation2 + $0x48] sm:$0xff]
    %v3872 = vld [vmem:[#allocation2 + $0x50] sm:$0xff]
    %v3873 = vld [vmem:[#allocation2 + $0x58] sm:$0xff]
    %v3874 = vpack.c.bf16 %v3869, %v3869
    %3875 = vmatprep.subr.bf16.mxu0 %v3610
    %3876 = vmatpush1.bf16.msra.mxu0 %v3609
    %3877 = vmatprep.subr.bf16.mxu0 %v3606
    %3878 = vmatpush1.bf16.msra.mxu0 %v3605
    %3879 = vmatprep.subr.bf16.mxu0 %v3602
    %3880 = vmatpush1.bf16.msra.mxu0 %v3601
    %3881 = vmatprep.subr.bf16.mxu0 %v3598
    %3882 = vmatpush1.bf16.msra.mxu0 %v3597
    %3883 = vmatprep.subr.bf16.mxu0 %v3594
    %3884 = vmatpush1.bf16.msra.mxu0 %v3593
    %3885 = vmatprep.subr.bf16.mxu0 %v3590
    %3886 = vmatpush1.bf16.msra.mxu0 %v3589
    %3887 = vmatprep.subr.bf16.mxu0 %v3586
    %3888 = vmatpush1.bf16.msra.mxu0 %v3585
    %3889 = vmatprep.subr.bf16.mxu0 %v3582
    %3890 = vmatpush1.bf16.msra.mxu0 %v3581
    %3891 = vmatprep.subr.bf16.mxu0 0
    %3892 = vmatpush2.bf16.msra.mxu0 0
    %3893 = vmatprep.subr.bf16.mxu0 0
    %3894 = vmatpush2.bf16.msra.mxu0 0
    %3895 = vmatprep.subr.bf16.mxu0 0
    %3896 = vmatpush2.bf16.msra.mxu0 0
    %3897 = vmatprep.subr.bf16.mxu0 0
    %3898 = vmatpush2.bf16.msra.mxu0 0
    %3899 = vmatprep.subr.bf16.mxu0 0
    %3900 = vmatpush2.bf16.msra.mxu0 0
    %3901 = vmatprep.subr.bf16.mxu0 0
    %3902 = vmatpush2.bf16.msra.mxu0 0
    %3903 = vmatprep.subr.bf16.mxu0 0
    %3904 = vmatpush2.bf16.msra.mxu0 0
    %3905 = vmatprep.subr.bf16.mxu0 0
    %3906 = vmatpush2.bf16.msra.mxu0 0
    %3907 = vmatprep.mubr.bf16.mxu0 0
    %3908 = vmatmul.mubr.bf16.gmra.mxu0 %v3874
    %v3909 = vpop.f32.mrf.mxu0
    %v3910 = vadd.f32 0.0, %v3909
    %v3911 = vpop.f32.mrf.mxu0
    %v3912 = vadd.f32 0.0, %v3911
    %v3913 = vpop.f32.mrf.mxu0
    %v3914 = vpop.f32.mrf.mxu0
    %3915 = vdwg.mxu0
    %3916 = vmatprep.subr.bf16.mxu0 %v3612
    %3917 = vmatpush1.bf16.msra.mxu0 %v3611
    %3918 = vmatprep.subr.bf16.mxu0 %v3608
    %3919 = vmatpush1.bf16.msra.mxu0 %v3607
    %3920 = vmatprep.subr.bf16.mxu0 %v3604
    %3921 = vmatpush1.bf16.msra.mxu0 %v3603
    %3922 = vmatprep.subr.bf16.mxu0 %v3600
    %3923 = vmatpush1.bf16.msra.mxu0 %v3599
    %3924 = vmatprep.subr.bf16.mxu0 %v3596
    %3925 = vmatpush1.bf16.msra.mxu0 %v3595
    %3926 = vmatprep.subr.bf16.mxu0 %v3592
    %3927 = vmatpush1.bf16.msra.mxu0 %v3591
    %3928 = vmatprep.subr.bf16.mxu0 %v3588
    %3929 = vmatpush1.bf16.msra.mxu0 %v3587
    %3930 = vmatprep.subr.bf16.mxu0 %v3584
    %3931 = vmatpush1.bf16.msra.mxu0 %v3583
    %3932 = vmatprep.subr.bf16.mxu0 0
    %3933 = vmatpush2.bf16.msra.mxu0 0
    %3934 = vmatprep.subr.bf16.mxu0 0
    %3935 = vmatpush2.bf16.msra.mxu0 0
    %3936 = vmatprep.subr.bf16.mxu0 0
    %3937 = vmatpush2.bf16.msra.mxu0 0
    %3938 = vmatprep.subr.bf16.mxu0 0
    %3939 = vmatpush2.bf16.msra.mxu0 0
    %3940 = vmatprep.subr.bf16.mxu0 0
    %3941 = vmatpush2.bf16.msra.mxu0 0
    %3942 = vmatprep.subr.bf16.mxu0 0
    %3943 = vmatpush2.bf16.msra.mxu0 0
    %3944 = vmatprep.subr.bf16.mxu0 0
    %3945 = vmatpush2.bf16.msra.mxu0 0
    %3946 = vmatprep.subr.bf16.mxu0 0
    %3947 = vmatpush2.bf16.msra.mxu0 0
    %3948 = vmatprep.mubr.bf16.mxu0 0
    %3949 = vmatmul.mubr.bf16.gmra.mxu0 %v3874
    %v3950 = vpop.f32.mrf.mxu0
    %v3951 = vadd.f32 0.0, %v3950
    %v3952 = vpop.f32.mrf.mxu0
    %v3953 = vadd.f32 0.0, %v3952
    %v3954 = vpop.f32.mrf.mxu0
    %v3955 = vpop.f32.mrf.mxu0
    %3956 = vdwg.mxu0
    %v3957 = vadd.f32 %v3870, %v3910
    %v3958 = vadd.f32 %v3871, %v3912
    %v3959 = vadd.f32 %v3872, %v3951
    %v3960 = vadd.f32 %v3873, %v3953
    %v3961 = vxor.u32 %v3957, 2147483648
    %v3962 = vxor.u32 %v3958, 2147483648
    %v3963 = vxor.u32 %v3959, 2147483648
    %v3964 = vmul.f32 %v3961, 1.442695
    %v3965 = vpow.pop %v3964
    %v3966 = vmul.f32 %v3962, 1.442695
    %v3967 = vpow.pop %v3966
    %v3968 = vmul.f32 %v3963, 1.442695
    %v3969 = vpow.pop %v3968
    %v3970 = vadd.f32 %v3965, 1.0
    %v3971 = vadd.f32 %v3967, 1.0
    %v3972 = vadd.f32 %v3969, 1.0
    %v3973 = vrcp.pop %v3970
    %v3974 = vmul.f32 1.0, %v3973
    %v3975 = vrcp.pop %v3971
    %v3976 = vmul.f32 1.0, %v3975
    %v3977 = vrcp.pop %v3972
    %v3978 = vmul.f32 1.0, %v3977
    %v3979 = vtanh.pop %v3960
    %v3980 = vmul.f32 %v3976, %v3867
    %v3981 = vmul.f32 %v3974, %v3979
    %v3982 = vadd.f32 %v3980, %v3981
    %v3983 = vtanh.pop %v3982
    %v3984 = vmul.f32 %v3978, %v3983
    %v3985 = vld [vmem:[#allocation2 + $0x60] sm:$0xff]
    %v3986 = vld [vmem:[#allocation2 + $0x68] sm:$0xff]
    %v3987 = vld [vmem:[#allocation2 + $0x70] sm:$0xff]
    %v3988 = vld [vmem:[#allocation2 + $0x78] sm:$0xff]
    %v3989 = vpack.c.bf16 %v3984, %v3984
    %3990 = vmatprep.subr.bf16.mxu0 %v3610
    %3991 = vmatpush1.bf16.msra.mxu0 %v3609
    %3992 = vmatprep.subr.bf16.mxu0 %v3606
    %3993 = vmatpush1.bf16.msra.mxu0 %v3605
    %3994 = vmatprep.subr.bf16.mxu0 %v3602
    %3995 = vmatpush1.bf16.msra.mxu0 %v3601
    %3996 = vmatprep.subr.bf16.mxu0 %v3598
    %3997 = vmatpush1.bf16.msra.mxu0 %v3597
    %3998 = vmatprep.subr.bf16.mxu0 %v3594
    %3999 = vmatpush1.bf16.msra.mxu0 %v3593
    %4000 = vmatprep.subr.bf16.mxu0 %v3590
    %4001 = vmatpush1.bf16.msra.mxu0 %v3589
    %4002 = vmatprep.subr.bf16.mxu0 %v3586
    %4003 = vmatpush1.bf16.msra.mxu0 %v3585
    %4004 = vmatprep.subr.bf16.mxu0 %v3582
    %4005 = vmatpush1.bf16.msra.mxu0 %v3581
    %4006 = vmatprep.subr.bf16.mxu0 0
    %4007 = vmatpush2.bf16.msra.mxu0 0
    %4008 = vmatprep.subr.bf16.mxu0 0
    %4009 = vmatpush2.bf16.msra.mxu0 0
    %4010 = vmatprep.subr.bf16.mxu0 0
    %4011 = vmatpush2.bf16.msra.mxu0 0
    %4012 = vmatprep.subr.bf16.mxu0 0
    %4013 = vmatpush2.bf16.msra.mxu0 0
    %4014 = vmatprep.subr.bf16.mxu0 0
    %4015 = vmatpush2.bf16.msra.mxu0 0
    %4016 = vmatprep.subr.bf16.mxu0 0
    %4017 = vmatpush2.bf16.msra.mxu0 0
    %4018 = vmatprep.subr.bf16.mxu0 0
    %4019 = vmatpush2.bf16.msra.mxu0 0
    %4020 = vmatprep.subr.bf16.mxu0 0
    %4021 = vmatpush2.bf16.msra.mxu0 0
    %4022 = vmatprep.mubr.bf16.mxu0 0
    %4023 = vmatmul.mubr.bf16.gmra.mxu0 %v3989
    %v4024 = vpop.f32.mrf.mxu0
    %v4025 = vadd.f32 0.0, %v4024
    %v4026 = vpop.f32.mrf.mxu0
    %v4027 = vadd.f32 0.0, %v4026
    %v4028 = vpop.f32.mrf.mxu0
    %v4029 = vpop.f32.mrf.mxu0
    %4030 = vdwg.mxu0
    %4031 = vmatprep.subr.bf16.mxu0 %v3612
    %4032 = vmatpush1.bf16.msra.mxu0 %v3611
    %4033 = vmatprep.subr.bf16.mxu0 %v3608
    %4034 = vmatpush1.bf16.msra.mxu0 %v3607
    %4035 = vmatprep.subr.bf16.mxu0 %v3604
    %4036 = vmatpush1.bf16.msra.mxu0 %v3603
    %4037 = vmatprep.subr.bf16.mxu0 %v3600
    %4038 = vmatpush1.bf16.msra.mxu0 %v3599
    %4039 = vmatprep.subr.bf16.mxu0 %v3596
    %4040 = vmatpush1.bf16.msra.mxu0 %v3595
    %4041 = vmatprep.subr.bf16.mxu0 %v3592
    %4042 = vmatpush1.bf16.msra.mxu0 %v3591
    %4043 = vmatprep.subr.bf16.mxu0 %v3588
    %4044 = vmatpush1.bf16.msra.mxu0 %v3587
    %4045 = vmatprep.subr.bf16.mxu0 %v3584
    %4046 = vmatpush1.bf16.msra.mxu0 %v3583
    %4047 = vmatprep.subr.bf16.mxu0 0
    %4048 = vmatpush2.bf16.msra.mxu0 0
    %4049 = vmatprep.subr.bf16.mxu0 0
    %4050 = vmatpush2.bf16.msra.mxu0 0
    %4051 = vmatprep.subr.bf16.mxu0 0
    %4052 = vmatpush2.bf16.msra.mxu0 0
    %4053 = vmatprep.subr.bf16.mxu0 0
    %4054 = vmatpush2.bf16.msra.mxu0 0
    %4055 = vmatprep.subr.bf16.mxu0 0
    %4056 = vmatpush2.bf16.msra.mxu0 0
    %4057 = vmatprep.subr.bf16.mxu0 0
    %4058 = vmatpush2.bf16.msra.mxu0 0
    %4059 = vmatprep.subr.bf16.mxu0 0
    %4060 = vmatpush2.bf16.msra.mxu0 0
    %4061 = vmatprep.subr.bf16.mxu0 0
    %4062 = vmatpush2.bf16.msra.mxu0 0
    %4063 = vmatprep.mubr.bf16.mxu0 0
    %4064 = vmatmul.mubr.bf16.gmra.mxu0 %v3989
    %v4065 = vpop.f32.mrf.mxu0
    %v4066 = vadd.f32 0.0, %v4065
    %v4067 = vpop.f32.mrf.mxu0
    %v4068 = vadd.f32 0.0, %v4067
    %v4069 = vpop.f32.mrf.mxu0
    %v4070 = vpop.f32.mrf.mxu0
    %4071 = vdwg.mxu0
    %v4072 = vadd.f32 %v3985, %v4025
    %v4073 = vadd.f32 %v3986, %v4027
    %v4074 = vadd.f32 %v3987, %v4066
    %v4075 = vadd.f32 %v3988, %v4068
    %v4076 = vxor.u32 %v4072, 2147483648
    %v4077 = vxor.u32 %v4073, 2147483648
    %v4078 = vxor.u32 %v4074, 2147483648
    %v4079 = vmul.f32 %v4076, 1.442695
    %v4080 = vpow.pop %v4079
    %v4081 = vmul.f32 %v4077, 1.442695
    %v4082 = vpow.pop %v4081
    %v4083 = vmul.f32 %v4078, 1.442695
    %v4084 = vpow.pop %v4083
    %v4085 = vadd.f32 %v4080, 1.0
    %v4086 = vadd.f32 %v4082, 1.0
    %v4087 = vadd.f32 %v4084, 1.0
    %v4088 = vrcp.pop %v4085
    %v4089 = vmul.f32 1.0, %v4088
    %v4090 = vrcp.pop %v4086
    %v4091 = vmul.f32 1.0, %v4090
    %v4092 = vrcp.pop %v4087
    %v4093 = vmul.f32 1.0, %v4092
    %v4094 = vtanh.pop %v4075
    %v4095 = vmul.f32 %v4091, %v3982
    %v4096 = vmul.f32 %v4089, %v4094
    %v4097 = vadd.f32 %v4095, %v4096
    %v4098 = vtanh.pop %v4097
    %v4099 = vmul.f32 %v4093, %v4098
    %v4100 = vld [vmem:[#allocation2 + $0x80] sm:$0xff]
    %v4101 = vld [vmem:[#allocation2 + $0x88] sm:$0xff]
    %v4102 = vld [vmem:[#allocation2 + $0x90] sm:$0xff]
    %v4103 = vld [vmem:[#allocation2 + $0x98] sm:$0xff]
    %v4104 = vpack.c.bf16 %v4099, %v4099
    %4105 = vmatprep.subr.bf16.mxu0 %v3610
    %4106 = vmatpush1.bf16.msra.mxu0 %v3609
    %4107 = vmatprep.subr.bf16.mxu0 %v3606
    %4108 = vmatpush1.bf16.msra.mxu0 %v3605
    %4109 = vmatprep.subr.bf16.mxu0 %v3602
    %4110 = vmatpush1.bf16.msra.mxu0 %v3601
    %4111 = vmatprep.subr.bf16.mxu0 %v3598
    %4112 = vmatpush1.bf16.msra.mxu0 %v3597
    %4113 = vmatprep.subr.bf16.mxu0 %v3594
    %4114 = vmatpush1.bf16.msra.mxu0 %v3593
    %4115 = vmatprep.subr.bf16.mxu0 %v3590
    %4116 = vmatpush1.bf16.msra.mxu0 %v3589
    %4117 = vmatprep.subr.bf16.mxu0 %v3586
    %4118 = vmatpush1.bf16.msra.mxu0 %v3585
    %4119 = vmatprep.subr.bf16.mxu0 %v3582
    %4120 = vmatpush1.bf16.msra.mxu0 %v3581
    %4121 = vmatprep.subr.bf16.mxu0 0
    %4122 = vmatpush2.bf16.msra.mxu0 0
    %4123 = vmatprep.subr.bf16.mxu0 0
    %4124 = vmatpush2.bf16.msra.mxu0 0
    %4125 = vmatprep.subr.bf16.mxu0 0
    %4126 = vmatpush2.bf16.msra.mxu0 0
    %4127 = vmatprep.subr.bf16.mxu0 0
    %4128 = vmatpush2.bf16.msra.mxu0 0
    %4129 = vmatprep.subr.bf16.mxu0 0
    %4130 = vmatpush2.bf16.msra.mxu0 0
    %4131 = vmatprep.subr.bf16.mxu0 0
    %4132 = vmatpush2.bf16.msra.mxu0 0
    %4133 = vmatprep.subr.bf16.mxu0 0
    %4134 = vmatpush2.bf16.msra.mxu0 0
    %4135 = vmatprep.subr.bf16.mxu0 0
    %4136 = vmatpush2.bf16.msra.mxu0 0
    %4137 = vmatprep.mubr.bf16.mxu0 0
    %4138 = vmatmul.mubr.bf16.gmra.mxu0 %v4104
    %v4139 = vpop.f32.mrf.mxu0
    %v4140 = vadd.f32 0.0, %v4139
    %v4141 = vpop.f32.mrf.mxu0
    %v4142 = vadd.f32 0.0, %v4141
    %v4143 = vpop.f32.mrf.mxu0
    %v4144 = vpop.f32.mrf.mxu0
    %4145 = vdwg.mxu0
    %4146 = vmatprep.subr.bf16.mxu0 %v3612
    %4147 = vmatpush1.bf16.msra.mxu0 %v3611
    %4148 = vmatprep.subr.bf16.mxu0 %v3608
    %4149 = vmatpush1.bf16.msra.mxu0 %v3607
    %4150 = vmatprep.subr.bf16.mxu0 %v3604
    %4151 = vmatpush1.bf16.msra.mxu0 %v3603
    %4152 = vmatprep.subr.bf16.mxu0 %v3600
    %4153 = vmatpush1.bf16.msra.mxu0 %v3599
    %4154 = vmatprep.subr.bf16.mxu0 %v3596
    %4155 = vmatpush1.bf16.msra.mxu0 %v3595
    %4156 = vmatprep.subr.bf16.mxu0 %v3592
    %4157 = vmatpush1.bf16.msra.mxu0 %v3591
    %4158 = vmatprep.subr.bf16.mxu0 %v3588
    %4159 = vmatpush1.bf16.msra.mxu0 %v3587
    %4160 = vmatprep.subr.bf16.mxu0 %v3584
    %4161 = vmatpush1.bf16.msra.mxu0 %v3583
    %4162 = vmatprep.subr.bf16.mxu0 0
    %4163 = vmatpush2.bf16.msra.mxu0 0
    %4164 = vmatprep.subr.bf16.mxu0 0
    %4165 = vmatpush2.bf16.msra.mxu0 0
    %4166 = vmatprep.subr.bf16.mxu0 0
    %4167 = vmatpush2.bf16.msra.mxu0 0
    %4168 = vmatprep.subr.bf16.mxu0 0
    %4169 = vmatpush2.bf16.msra.mxu0 0
    %4170 = vmatprep.subr.bf16.mxu0 0
    %4171 = vmatpush2.bf16.msra.mxu0 0
    %4172 = vmatprep.subr.bf16.mxu0 0
    %4173 = vmatpush2.bf16.msra.mxu0 0
    %4174 = vmatprep.subr.bf16.mxu0 0
    %4175 = vmatpush2.bf16.msra.mxu0 0
    %4176 = vmatprep.subr.bf16.mxu0 0
    %4177 = vmatpush2.bf16.msra.mxu0 0
    %4178 = vmatprep.mubr.bf16.mxu0 0
    %4179 = vmatmul.mubr.bf16.gmra.mxu0 %v4104
    %v4180 = vpop.f32.mrf.mxu0
    %v4181 = vadd.f32 0.0, %v4180
    %v4182 = vpop.f32.mrf.mxu0
    %v4183 = vadd.f32 0.0, %v4182
    %v4184 = vpop.f32.mrf.mxu0
    %v4185 = vpop.f32.mrf.mxu0
    %4186 = vdwg.mxu0
    %v4187 = vadd.f32 %v4100, %v4140
    %v4188 = vadd.f32 %v4101, %v4142
    %v4189 = vadd.f32 %v4102, %v4181
    %v4190 = vadd.f32 %v4103, %v4183
    %v4191 = vxor.u32 %v4187, 2147483648
    %v4192 = vxor.u32 %v4188, 2147483648
    %v4193 = vxor.u32 %v4189, 2147483648
    %v4194 = vmul.f32 %v4191, 1.442695
    %v4195 = vpow.pop %v4194
    %v4196 = vmul.f32 %v4192, 1.442695
    %v4197 = vpow.pop %v4196
    %v4198 = vmul.f32 %v4193, 1.442695
    %v4199 = vpow.pop %v4198
    %v4200 = vadd.f32 %v4195, 1.0
    %v4201 = vadd.f32 %v4197, 1.0
    %v4202 = vadd.f32 %v4199, 1.0
    %v4203 = vrcp.pop %v4200
    %v4204 = vmul.f32 1.0, %v4203
    %v4205 = vrcp.pop %v4201
    %v4206 = vmul.f32 1.0, %v4205
    %v4207 = vrcp.pop %v4202
    %v4208 = vmul.f32 1.0, %v4207
    %v4209 = vtanh.pop %v4190
    %v4210 = vmul.f32 %v4206, %v4097
    %v4211 = vmul.f32 %v4204, %v4209
    %v4212 = vadd.f32 %v4210, %v4211
    %v4213 = vtanh.pop %v4212
    %v4214 = vmul.f32 %v4208, %v4213
    %v4215 = vld [vmem:[#allocation2 + $0xa0] sm:$0xff]
    %v4216 = vld [vmem:[#allocation2 + $0xa8] sm:$0xff]
    %v4217 = vld [vmem:[#allocation2 + $0xb0] sm:$0xff]
    %v4218 = vld [vmem:[#allocation2 + $0xb8] sm:$0xff]
    %v4219 = vpack.c.bf16 %v4214, %v4214
    %4220 = vmatprep.subr.bf16.mxu0 %v3610
    %4221 = vmatpush1.bf16.msra.mxu0 %v3609
    %4222 = vmatprep.subr.bf16.mxu0 %v3606
    %4223 = vmatpush1.bf16.msra.mxu0 %v3605
    %4224 = vmatprep.subr.bf16.mxu0 %v3602
    %4225 = vmatpush1.bf16.msra.mxu0 %v3601
    %4226 = vmatprep.subr.bf16.mxu0 %v3598
    %4227 = vmatpush1.bf16.msra.mxu0 %v3597
    %4228 = vmatprep.subr.bf16.mxu0 %v3594
    %4229 = vmatpush1.bf16.msra.mxu0 %v3593
    %4230 = vmatprep.subr.bf16.mxu0 %v3590
    %4231 = vmatpush1.bf16.msra.mxu0 %v3589
    %4232 = vmatprep.subr.bf16.mxu0 %v3586
    %4233 = vmatpush1.bf16.msra.mxu0 %v3585
    %4234 = vmatprep.subr.bf16.mxu0 %v3582
    %4235 = vmatpush1.bf16.msra.mxu0 %v3581
    %4236 = vmatprep.subr.bf16.mxu0 0
    %4237 = vmatpush2.bf16.msra.mxu0 0
    %4238 = vmatprep.subr.bf16.mxu0 0
    %4239 = vmatpush2.bf16.msra.mxu0 0
    %4240 = vmatprep.subr.bf16.mxu0 0
    %4241 = vmatpush2.bf16.msra.mxu0 0
    %4242 = vmatprep.subr.bf16.mxu0 0
    %4243 = vmatpush2.bf16.msra.mxu0 0
    %4244 = vmatprep.subr.bf16.mxu0 0
    %4245 = vmatpush2.bf16.msra.mxu0 0
    %4246 = vmatprep.subr.bf16.mxu0 0
    %4247 = vmatpush2.bf16.msra.mxu0 0
    %4248 = vmatprep.subr.bf16.mxu0 0
    %4249 = vmatpush2.bf16.msra.mxu0 0
    %4250 = vmatprep.subr.bf16.mxu0 0
    %4251 = vmatpush2.bf16.msra.mxu0 0
    %4252 = vmatprep.mubr.bf16.mxu0 0
    %4253 = vmatmul.mubr.bf16.gmra.mxu0 %v4219
    %v4254 = vpop.f32.mrf.mxu0
    %v4255 = vadd.f32 0.0, %v4254
    %v4256 = vpop.f32.mrf.mxu0
    %v4257 = vadd.f32 0.0, %v4256
    %v4258 = vpop.f32.mrf.mxu0
    %v4259 = vpop.f32.mrf.mxu0
    %4260 = vdwg.mxu0
    %4261 = vmatprep.subr.bf16.mxu0 %v3612
    %4262 = vmatpush1.bf16.msra.mxu0 %v3611
    %4263 = vmatprep.subr.bf16.mxu0 %v3608
    %4264 = vmatpush1.bf16.msra.mxu0 %v3607
    %4265 = vmatprep.subr.bf16.mxu0 %v3604
    %4266 = vmatpush1.bf16.msra.mxu0 %v3603
    %4267 = vmatprep.subr.bf16.mxu0 %v3600
    %4268 = vmatpush1.bf16.msra.mxu0 %v3599
    %4269 = vmatprep.subr.bf16.mxu0 %v3596
    %4270 = vmatpush1.bf16.msra.mxu0 %v3595
    %4271 = vmatprep.subr.bf16.mxu0 %v3592
    %4272 = vmatpush1.bf16.msra.mxu0 %v3591
    %4273 = vmatprep.subr.bf16.mxu0 %v3588
    %4274 = vmatpush1.bf16.msra.mxu0 %v3587
    %4275 = vmatprep.subr.bf16.mxu0 %v3584
    %4276 = vmatpush1.bf16.msra.mxu0 %v3583
    %4277 = vmatprep.subr.bf16.mxu0 0
    %4278 = vmatpush2.bf16.msra.mxu0 0
    %4279 = vmatprep.subr.bf16.mxu0 0
    %4280 = vmatpush2.bf16.msra.mxu0 0
    %4281 = vmatprep.subr.bf16.mxu0 0
    %4282 = vmatpush2.bf16.msra.mxu0 0
    %4283 = vmatprep.subr.bf16.mxu0 0
    %4284 = vmatpush2.bf16.msra.mxu0 0
    %4285 = vmatprep.subr.bf16.mxu0 0
    %4286 = vmatpush2.bf16.msra.mxu0 0
    %4287 = vmatprep.subr.bf16.mxu0 0
    %4288 = vmatpush2.bf16.msra.mxu0 0
    %4289 = vmatprep.subr.bf16.mxu0 0
    %4290 = vmatpush2.bf16.msra.mxu0 0
    %4291 = vmatprep.subr.bf16.mxu0 0
    %4292 = vmatpush2.bf16.msra.mxu0 0
    %4293 = vmatprep.mubr.bf16.mxu0 0
    %4294 = vmatmul.mubr.bf16.gmra.mxu0 %v4219
    %v4295 = vpop.f32.mrf.mxu0
    %v4296 = vadd.f32 0.0, %v4295
    %v4297 = vpop.f32.mrf.mxu0
    %v4298 = vadd.f32 0.0, %v4297
    %v4299 = vpop.f32.mrf.mxu0
    %v4300 = vpop.f32.mrf.mxu0
    %4301 = vdwg.mxu0
    %v4302 = vadd.f32 %v4215, %v4255
    %v4303 = vadd.f32 %v4216, %v4257
    %v4304 = vadd.f32 %v4217, %v4296
    %v4305 = vadd.f32 %v4218, %v4298
    %v4306 = vxor.u32 %v4302, 2147483648
    %v4307 = vxor.u32 %v4303, 2147483648
    %v4308 = vxor.u32 %v4304, 2147483648
    %v4309 = vmul.f32 %v4306, 1.442695
    %v4310 = vpow.pop %v4309
    %v4311 = vmul.f32 %v4307, 1.442695
    %v4312 = vpow.pop %v4311
    %v4313 = vmul.f32 %v4308, 1.442695
    %v4314 = vpow.pop %v4313
    %v4315 = vadd.f32 %v4310, 1.0
    %v4316 = vadd.f32 %v4312, 1.0
    %v4317 = vadd.f32 %v4314, 1.0
    %v4318 = vrcp.pop %v4315
    %v4319 = vmul.f32 1.0, %v4318
    %v4320 = vrcp.pop %v4316
    %v4321 = vmul.f32 1.0, %v4320
    %v4322 = vrcp.pop %v4317
    %v4323 = vmul.f32 1.0, %v4322
    %v4324 = vtanh.pop %v4305
    %v4325 = vmul.f32 %v4321, %v4212
    %v4326 = vmul.f32 %v4319, %v4324
    %v4327 = vadd.f32 %v4325, %v4326
    %v4328 = vtanh.pop %v4327
    %v4329 = vmul.f32 %v4323, %v4328
    %v4330 = vld [vmem:[#allocation2 + $0xc0] sm:$0xff]
    %v4331 = vld [vmem:[#allocation2 + $0xc8] sm:$0xff]
    %v4332 = vld [vmem:[#allocation2 + $0xd0] sm:$0xff]
    %v4333 = vld [vmem:[#allocation2 + $0xd8] sm:$0xff]
    %v4334 = vpack.c.bf16 %v4329, %v4329
    %4335 = vmatprep.subr.bf16.mxu0 %v3610
    %4336 = vmatpush1.bf16.msra.mxu0 %v3609
    %4337 = vmatprep.subr.bf16.mxu0 %v3606
    %4338 = vmatpush1.bf16.msra.mxu0 %v3605
    %4339 = vmatprep.subr.bf16.mxu0 %v3602
    %4340 = vmatpush1.bf16.msra.mxu0 %v3601
    %4341 = vmatprep.subr.bf16.mxu0 %v3598
    %4342 = vmatpush1.bf16.msra.mxu0 %v3597
    %4343 = vmatprep.subr.bf16.mxu0 %v3594
    %4344 = vmatpush1.bf16.msra.mxu0 %v3593
    %4345 = vmatprep.subr.bf16.mxu0 %v3590
    %4346 = vmatpush1.bf16.msra.mxu0 %v3589
    %4347 = vmatprep.subr.bf16.mxu0 %v3586
    %4348 = vmatpush1.bf16.msra.mxu0 %v3585
    %4349 = vmatprep.subr.bf16.mxu0 %v3582
    %4350 = vmatpush1.bf16.msra.mxu0 %v3581
    %4351 = vmatprep.subr.bf16.mxu0 0
    %4352 = vmatpush2.bf16.msra.mxu0 0
    %4353 = vmatprep.subr.bf16.mxu0 0
    %4354 = vmatpush2.bf16.msra.mxu0 0
    %4355 = vmatprep.subr.bf16.mxu0 0
    %4356 = vmatpush2.bf16.msra.mxu0 0
    %4357 = vmatprep.subr.bf16.mxu0 0
    %4358 = vmatpush2.bf16.msra.mxu0 0
    %4359 = vmatprep.subr.bf16.mxu0 0
    %4360 = vmatpush2.bf16.msra.mxu0 0
    %4361 = vmatprep.subr.bf16.mxu0 0
    %4362 = vmatpush2.bf16.msra.mxu0 0
    %4363 = vmatprep.subr.bf16.mxu0 0
    %4364 = vmatpush2.bf16.msra.mxu0 0
    %4365 = vmatprep.subr.bf16.mxu0 0
    %4366 = vmatpush2.bf16.msra.mxu0 0
    %4367 = vmatprep.mubr.bf16.mxu0 0
    %4368 = vmatmul.mubr.bf16.gmra.mxu0 %v4334
    %v4369 = vpop.f32.mrf.mxu0
    %v4370 = vadd.f32 0.0, %v4369
    %v4371 = vpop.f32.mrf.mxu0
    %v4372 = vadd.f32 0.0, %v4371
    %v4373 = vpop.f32.mrf.mxu0
    %v4374 = vpop.f32.mrf.mxu0
    %4375 = vdwg.mxu0
    %4376 = vmatprep.subr.bf16.mxu0 %v3612
    %4377 = vmatpush1.bf16.msra.mxu0 %v3611
    %4378 = vmatprep.subr.bf16.mxu0 %v3608
    %4379 = vmatpush1.bf16.msra.mxu0 %v3607
    %4380 = vmatprep.subr.bf16.mxu0 %v3604
    %4381 = vmatpush1.bf16.msra.mxu0 %v3603
    %4382 = vmatprep.subr.bf16.mxu0 %v3600
    %4383 = vmatpush1.bf16.msra.mxu0 %v3599
    %4384 = vmatprep.subr.bf16.mxu0 %v3596
    %4385 = vmatpush1.bf16.msra.mxu0 %v3595
    %4386 = vmatprep.subr.bf16.mxu0 %v3592
    %4387 = vmatpush1.bf16.msra.mxu0 %v3591
    %4388 = vmatprep.subr.bf16.mxu0 %v3588
    %4389 = vmatpush1.bf16.msra.mxu0 %v3587
    %4390 = vmatprep.subr.bf16.mxu0 %v3584
    %4391 = vmatpush1.bf16.msra.mxu0 %v3583
    %4392 = vmatprep.subr.bf16.mxu0 0
    %4393 = vmatpush2.bf16.msra.mxu0 0
    %4394 = vmatprep.subr.bf16.mxu0 0
    %4395 = vmatpush2.bf16.msra.mxu0 0
    %4396 = vmatprep.subr.bf16.mxu0 0
    %4397 = vmatpush2.bf16.msra.mxu0 0
    %4398 = vmatprep.subr.bf16.mxu0 0
    %4399 = vmatpush2.bf16.msra.mxu0 0
    %4400 = vmatprep.subr.bf16.mxu0 0
    %4401 = vmatpush2.bf16.msra.mxu0 0
    %4402 = vmatprep.subr.bf16.mxu0 0
    %4403 = vmatpush2.bf16.msra.mxu0 0
    %4404 = vmatprep.subr.bf16.mxu0 0
    %4405 = vmatpush2.bf16.msra.mxu0 0
    %4406 = vmatprep.subr.bf16.mxu0 0
    %4407 = vmatpush2.bf16.msra.mxu0 0
    %4408 = vmatprep.mubr.bf16.mxu0 0
    %4409 = vmatmul.mubr.bf16.gmra.mxu0 %v4334
    %v4410 = vpop.f32.mrf.mxu0
    %v4411 = vadd.f32 0.0, %v4410
    %v4412 = vpop.f32.mrf.mxu0
    %v4413 = vadd.f32 0.0, %v4412
    %v4414 = vpop.f32.mrf.mxu0
    %v4415 = vpop.f32.mrf.mxu0
    %4416 = vdwg.mxu0
    %v4417 = vadd.f32 %v4330, %v4370
    %v4418 = vadd.f32 %v4331, %v4372
    %v4419 = vadd.f32 %v4332, %v4411
    %v4420 = vadd.f32 %v4333, %v4413
    %v4421 = vxor.u32 %v4417, 2147483648
    %v4422 = vxor.u32 %v4418, 2147483648
    %v4423 = vxor.u32 %v4419, 2147483648
    %v4424 = vmul.f32 %v4421, 1.442695
    %v4425 = vpow.pop %v4424
    %v4426 = vmul.f32 %v4422, 1.442695
    %v4427 = vpow.pop %v4426
    %v4428 = vmul.f32 %v4423, 1.442695
    %v4429 = vpow.pop %v4428
    %v4430 = vadd.f32 %v4425, 1.0
    %v4431 = vadd.f32 %v4427, 1.0
    %v4432 = vadd.f32 %v4429, 1.0
    %v4433 = vrcp.pop %v4430
    %v4434 = vmul.f32 1.0, %v4433
    %v4435 = vrcp.pop %v4431
    %v4436 = vmul.f32 1.0, %v4435
    %v4437 = vrcp.pop %v4432
    %v4438 = vmul.f32 1.0, %v4437
    %v4439 = vtanh.pop %v4420
    %v4440 = vmul.f32 %v4436, %v4327
    %v4441 = vmul.f32 %v4434, %v4439
    %v4442 = vadd.f32 %v4440, %v4441
    %v4443 = vtanh.pop %v4442
    %v4444 = vmul.f32 %v4438, %v4443
    %v4445 = vld [vmem:[#allocation2 + $0xe0] sm:$0xff]
    %v4446 = vld [vmem:[#allocation2 + $0xe8] sm:$0xff]
    %v4447 = vld [vmem:[#allocation2 + $0xf0] sm:$0xff]
    %v4448 = vld [vmem:[#allocation2 + $0xf8] sm:$0xff]
    %v4449 = vpack.c.bf16 %v4444, %v4444
    %4450 = vmatprep.subr.bf16.mxu0 %v3610
    %4451 = vmatpush1.bf16.msra.mxu0 %v3609
    %4452 = vmatprep.subr.bf16.mxu0 %v3606
    %4453 = vmatpush1.bf16.msra.mxu0 %v3605
    %4454 = vmatprep.subr.bf16.mxu0 %v3602
    %4455 = vmatpush1.bf16.msra.mxu0 %v3601
    %4456 = vmatprep.subr.bf16.mxu0 %v3598
    %4457 = vmatpush1.bf16.msra.mxu0 %v3597
    %4458 = vmatprep.subr.bf16.mxu0 %v3594
    %4459 = vmatpush1.bf16.msra.mxu0 %v3593
    %4460 = vmatprep.subr.bf16.mxu0 %v3590
    %4461 = vmatpush1.bf16.msra.mxu0 %v3589
    %4462 = vmatprep.subr.bf16.mxu0 %v3586
    %4463 = vmatpush1.bf16.msra.mxu0 %v3585
    %4464 = vmatprep.subr.bf16.mxu0 %v3582
    %4465 = vmatpush1.bf16.msra.mxu0 %v3581
    %4466 = vmatprep.subr.bf16.mxu0 0
    %4467 = vmatpush2.bf16.msra.mxu0 0
    %4468 = vmatprep.subr.bf16.mxu0 0
    %4469 = vmatpush2.bf16.msra.mxu0 0
    %4470 = vmatprep.subr.bf16.mxu0 0
    %4471 = vmatpush2.bf16.msra.mxu0 0
    %4472 = vmatprep.subr.bf16.mxu0 0
    %4473 = vmatpush2.bf16.msra.mxu0 0
    %4474 = vmatprep.subr.bf16.mxu0 0
    %4475 = vmatpush2.bf16.msra.mxu0 0
    %4476 = vmatprep.subr.bf16.mxu0 0
    %4477 = vmatpush2.bf16.msra.mxu0 0
    %4478 = vmatprep.subr.bf16.mxu0 0
    %4479 = vmatpush2.bf16.msra.mxu0 0
    %4480 = vmatprep.subr.bf16.mxu0 0
    %4481 = vmatpush2.bf16.msra.mxu0 0
    %4482 = vmatprep.mubr.bf16.mxu0 0
    %4483 = vmatmul.mubr.bf16.gmra.mxu0 %v4449
    %v4484 = vpop.f32.mrf.mxu0
    %v4485 = vadd.f32 0.0, %v4484
    %v4486 = vpop.f32.mrf.mxu0
    %v4487 = vadd.f32 0.0, %v4486
    %v4488 = vpop.f32.mrf.mxu0
    %v4489 = vpop.f32.mrf.mxu0
    %4490 = vdwg.mxu0
    %4491 = vmatprep.subr.bf16.mxu0 %v3612
    %4492 = vmatpush1.bf16.msra.mxu0 %v3611
    %4493 = vmatprep.subr.bf16.mxu0 %v3608
    %4494 = vmatpush1.bf16.msra.mxu0 %v3607
    %4495 = vmatprep.subr.bf16.mxu0 %v3604
    %4496 = vmatpush1.bf16.msra.mxu0 %v3603
    %4497 = vmatprep.subr.bf16.mxu0 %v3600
    %4498 = vmatpush1.bf16.msra.mxu0 %v3599
    %4499 = vmatprep.subr.bf16.mxu0 %v3596
    %4500 = vmatpush1.bf16.msra.mxu0 %v3595
    %4501 = vmatprep.subr.bf16.mxu0 %v3592
    %4502 = vmatpush1.bf16.msra.mxu0 %v3591
    %4503 = vmatprep.subr.bf16.mxu0 %v3588
    %4504 = vmatpush1.bf16.msra.mxu0 %v3587
    %4505 = vmatprep.subr.bf16.mxu0 %v3584
    %4506 = vmatpush1.bf16.msra.mxu0 %v3583
    %4507 = vmatprep.subr.bf16.mxu0 0
    %4508 = vmatpush2.bf16.msra.mxu0 0
    %4509 = vmatprep.subr.bf16.mxu0 0
    %4510 = vmatpush2.bf16.msra.mxu0 0
    %4511 = vmatprep.subr.bf16.mxu0 0
    %4512 = vmatpush2.bf16.msra.mxu0 0
    %4513 = vmatprep.subr.bf16.mxu0 0
    %4514 = vmatpush2.bf16.msra.mxu0 0
    %4515 = vmatprep.subr.bf16.mxu0 0
    %4516 = vmatpush2.bf16.msra.mxu0 0
    %4517 = vmatprep.subr.bf16.mxu0 0
    %4518 = vmatpush2.bf16.msra.mxu0 0
    %4519 = vmatprep.subr.bf16.mxu0 0
    %4520 = vmatpush2.bf16.msra.mxu0 0
    %4521 = vmatprep.subr.bf16.mxu0 0
    %4522 = vmatpush2.bf16.msra.mxu0 0
    %4523 = vmatprep.mubr.bf16.mxu0 0
    %4524 = vmatmul.mubr.bf16.gmra.mxu0 %v4449
    %v4525 = vpop.f32.mrf.mxu0
    %v4526 = vadd.f32 0.0, %v4525
    %v4527 = vpop.f32.mrf.mxu0
    %v4528 = vadd.f32 0.0, %v4527
    %v4529 = vpop.f32.mrf.mxu0
    %v4530 = vpop.f32.mrf.mxu0
    %4531 = vdwg.mxu0
    %v4532 = vadd.f32 %v4445, %v4485
    %v4533 = vadd.f32 %v4446, %v4487
    %v4534 = vadd.f32 %v4447, %v4526
    %v4535 = vadd.f32 %v4448, %v4528
    %v4536 = vxor.u32 %v4532, 2147483648
    %v4537 = vxor.u32 %v4533, 2147483648
    %v4538 = vxor.u32 %v4534, 2147483648
    %v4539 = vmul.f32 %v4536, 1.442695
    %v4540 = vpow.pop %v4539
    %v4541 = vmul.f32 %v4537, 1.442695
    %v4542 = vpow.pop %v4541
    %v4543 = vmul.f32 %v4538, 1.442695
    %v4544 = vpow.pop %v4543
    %v4545 = vadd.f32 %v4540, 1.0
    %v4546 = vadd.f32 %v4542, 1.0
    %v4547 = vadd.f32 %v4544, 1.0
    %v4548 = vrcp.pop %v4545
    %v4549 = vmul.f32 1.0, %v4548
    %v4550 = vrcp.pop %v4546
    %v4551 = vmul.f32 1.0, %v4550
    %v4552 = vrcp.pop %v4547
    %v4553 = vmul.f32 1.0, %v4552
    %v4554 = vtanh.pop %v4535
    %v4555 = vmul.f32 %v4551, %v4442
    %v4556 = vmul.f32 %v4549, %v4554
    %v4557 = vadd.f32 %v4555, %v4556
    %v4558 = vtanh.pop %v4557
    %v4559 = vmul.f32 %v4553, %v4558
    %v4560 = vtanh.pop %v4559
    %4561 = vst [vmem:[%s7] sm:$0xff] %v4560
    // Predicated region
    $region46: #{_forward_impl.1} parent=1 // pred_check
      _
    $region47: #{_forward_impl.1} parent=1 // pred_check_branch
      %4563 = sbr.rel (0) target = $region49
    $region48: #{_forward_impl.1} parent=1 // pred_region
      _
    $region49: #{_forward_impl.1} parent=1 // pred_fallthru
      _
    // Predicated region
    $region50: #{_forward_impl.1} parent=1 // pred_check
      _
    $region51: #{_forward_impl.1} parent=1 // pred_check_branch
      %4565 = sbr.rel (0) target = $region53
    $region52: #{_forward_impl.1} parent=1 // pred_region
      _
    $region53: #{_forward_impl.1} parent=1 // pred_fallthru
      _
    %4566 = vsyncpa [#allocation5], 1
    %4567 = vsyncpa [#allocation7], 1
    %4568 = vsyncpa [#allocation10], 1

</llo_original>
